<compile_context>
chip_gen: v6e
topology: v6e:2x2x1
jax: 0.10.0
libtpu: 0.0.40
codegen_flags: <defaults>
</compile_context>

<pallas_src>
import functools

import jax
import jax.numpy as jnp
from jax.experimental import pallas as pl
from jax.experimental.pallas import tpu as pltpu

LN_EPS = 1e-5    # torch.nn.LayerNorm default
L2_EPS = 1e-12   # F.normalize default
N_L = 20         # self.n_l in the module


# ----------------------------------------------------------------------------
# in-kernel helpers (all f32 elementwise math)
# ----------------------------------------------------------------------------
def _layernorm(x, g, b):
    mu = jnp.mean(x, axis=-1, keepdims=True)
    xc = x - mu
    var = jnp.mean(xc * xc, axis=-1, keepdims=True)
    return xc * jax.lax.rsqrt(var + LN_EPS) * g + b


def _l2normalize(x):
    # F.normalize: x / max(||x||, eps)  ==  x * rsqrt(max(||x||^2, eps^2))  -- one EUP op.
    ss = jnp.sum(x * x, axis=-1, keepdims=True)
    return x * jax.lax.rsqrt(jnp.maximum(ss, L2_EPS * L2_EPS))


def _gelu_tanh(x):
    # TODO(synk): PyTorch nn.GELU defaults to the exact erf form; the tanh approximation is
    # used here for a guaranteed Mosaic lowering (Block source is not in the reference).
    return 0.5 * x * (1.0 + jnp.tanh(0.7978845608028654 * (x + 0.044715 * x * x * x)))


# ----------------------------------------------------------------------------
# The fused kernel: one batch item per grid step, everything resident in VMEM.
# ----------------------------------------------------------------------------
def _mm_fusion_kernel(x_v_ref, x_l_ref, lang_ref,
                      pvw, pvb, plw, plb, seed_ref,
                      ln1g, ln1b, wq, wkT, wv, bq, bkT, bv, wpr, bpr,
                      ln2g, ln2b, w1, b1, w2, b2,
                      normg, normb, wpat, wcls,
                      pred_ref,
                      *, n_heads, n_layers):
    D = wpr.shape[-1]
    hd = D // n_heads
    scale = float(hd) ** -0.5
    bf16 = jnp.bfloat16

    def block(x, l):
        # ---- pre-norm MHSA: full-width lane-dense Q/K/V, K directly in (D,S) layout ----
        h = _layernorm(x, ln1g[l], ln1b[l])
        hb = h.astype(bf16)
        q = jnp.dot(hb, wq[l], preferred_element_type=jnp.float32) + bq[l]          # (S, D)
        kT = jax.lax.dot_general(wkT[l], hb, (((1,), (1,)), ((), ())),
                                 preferred_element_type=jnp.float32) + bkT[l]       # (D, S)
        v = jnp.dot(hb, wv[l], preferred_element_type=jnp.float32) + bv[l]          # (S, D)
        qb, kTb, vb = q.astype(bf16), kT.astype(bf16), v.astype(bf16)

        ctx_parts = []
        for hi in range(n_heads):                                    # short static unroll
            sl = slice(hi * hd, (hi + 1) * hd)
            s = jnp.dot(qb[:, sl], kTb[sl, :],
                        preferred_element_type=jnp.float32) * scale                 # (S, S)
            s = s - jnp.max(s, axis=-1, keepdims=True)
            p = jnp.exp(s)
            p = p * pl.reciprocal(jnp.sum(p, axis=-1, keepdims=True), approx=True)
            ctx_parts.append(jnp.dot(p.astype(bf16), vb[:, sl],
                                     preferred_element_type=jnp.float32))           # (S, hd)
        ctx = jnp.concatenate(ctx_parts, axis=-1)                                    # (S, D)

        attn = jnp.dot(ctx.astype(bf16), wpr[l],
                       preferred_element_type=jnp.float32) + bpr[l]                 # ONE out-proj
        x = x + attn

        # ---- pre-norm MLP ----
        h2 = _layernorm(x, ln2g[l], ln2b[l])
        h2 = jnp.dot(h2.astype(bf16), w1[l], preferred_element_type=jnp.float32) + b1[l]
        h2 = _gelu_tanh(h2)
        h2 = jnp.dot(h2.astype(bf16), w2[l], preferred_element_type=jnp.float32) + b2[l]
        return x + h2

    # ---- F.normalize + proj_v / proj_l + language-token masking ----
    xv_raw = x_v_ref[0].astype(jnp.float32)            # cls(+dist) tokens already dropped
    xv = jnp.dot(_l2normalize(xv_raw).astype(bf16), pvw[...],
                 preferred_element_type=jnp.float32) + pvb[...]                     # (P, D)
    xl_raw = x_l_ref[0].astype(jnp.float32)
    xl = jnp.dot(_l2normalize(xl_raw).astype(bf16), plw[...],
                 preferred_element_type=jnp.float32) + plb[...]                     # (n_l, D)
    xl = jnp.where(lang_ref[0] == 0, 0.0, xl)           # zero masked language tokens

    P = xv.shape[0]

    # ---- x = cat((x_v, x_l), 1); blocks_vl ----
    x = jnp.concatenate([xv, xl], axis=0)
    x = jax.lax.fori_loop(0, n_layers, lambda l, xx: block(xx, l), x)

    # ---- split; x = cat((x_l, seed_emb), 1); blocks_ls ----
    patches = x[:P, :]
    x2 = jnp.concatenate([x[P:, :], seed_ref[0]], axis=0)
    x2 = jax.lax.fori_loop(n_layers, 2 * n_layers, lambda l, xx: block(xx, l), x2)

    # ---- head: final LayerNorm, proj_patch / proj_cls, lane-dense (1, P) prediction ----
    xn = _layernorm(x2, normg[...], normb[...])
    cls = xn[xn.shape[0] - 1:, :]                                                    # (1, D)
    pp = jnp.dot(patches.astype(bf16), wpat[...], preferred_element_type=jnp.float32)
    cc = jnp.dot(cls.astype(bf16), wcls[...], preferred_element_type=jnp.float32)
    pred_row = jax.lax.dot_general(cc.astype(bf16), pp.astype(bf16),
                                   (((1,), (1,)), ((), ())),
                                   preferred_element_type=jnp.float32)               # (1, P)
    pred_ref[0] = pred_row.astype(pred_ref.dtype)
    # TODO(synk): masked_patches is only consumed by the is_decoder=True path (not
    # implemented), so it is not computed / written here.


def _pallas_forward(packed, x_v, x_l, lang, *, n_heads):
    B, P, _ = x_v.shape                     # cls(+dist) tokens already stripped in the wrapper
    _, n_l, _ = x_l.shape
    n_layers = packed["wq"].shape[0] // 2

    lang3 = lang.astype(jnp.int32).reshape(B, n_l, 1)   # metadata-only prep

    def batch_spec(shape):
        nd = len(shape)
        return pl.BlockSpec((1,) + tuple(shape[1:]), lambda b: (b,) + (0,) * (nd - 1))

    def const_spec(shape):
        nd = len(shape)
        return pl.BlockSpec(tuple(shape), lambda b: (0,) * nd)

    weight_names = ["proj_v_w", "proj_v_b", "proj_l_w", "proj_l_b", "seed_emb",
                    "ln1_g", "ln1_b", "wq", "wkT", "wv", "bq", "bkT", "bv",
                    "wproj", "bproj", "ln2_g", "ln2_b", "w1", "b1", "w2", "b2",
                    "norm_g", "norm_b", "proj_patch", "proj_cls"]
    weights = [packed[n] for n in weight_names]

    kernel = functools.partial(_mm_fusion_kernel, n_heads=n_heads, n_layers=n_layers)

    pred = pl.pallas_call(
        kernel,
        out_shape=jax.ShapeDtypeStruct((B, 1, P), jnp.float32),
        grid=(B,),
        in_specs=[batch_spec(x_v.shape), batch_spec(x_l.shape), batch_spec(lang3.shape)]
                + [const_spec(w.shape) for w in weights],
        out_specs=pl.BlockSpec((1, 1, P), lambda b: (b, 0, 0)),
        compiler_params=pltpu.CompilerParams(
            dimension_semantics=("parallel",),
            vmem_limit_bytes=32 * 1024 * 1024),
    )(x_v, x_l, lang3, *weights)
    return pred


# ----------------------------------------------------------------------------
# MM_fusion.forward
# ----------------------------------------------------------------------------
def mm_fusion_forward(packed, x_v, x_l, lang, is_distilled, im_size, patch_size, n_heads):
    H, W = im_size
    GS = H // patch_size
    B = x_v.shape[0]
    num_extra = 1 + int(is_distilled)
    x_v = x_v[:, num_extra:, :]                   # drop cls(+dist) tokens outside the kernel
    pred = _pallas_forward(packed, x_v, x_l, lang, n_heads=n_heads)
    patch_pred = pred.reshape(B, 1, GS, GS)       # rearrange 'b (h w) n -> b n h w'
    # TODO(synk): is_decoder=True path (uplinearBlock upsampling decoder + 1x1 Conv2d) is not
    # implemented (those classes are not defined in the reference); this is the
    # is_decoder=False branch where pixel_pred = patch_pred.
    pixel_pred = patch_pred
    return pixel_pred, None, patch_pred


# ----------------------------------------------------------------------------
# Deterministic parameter init (synthetic; mirrors shapes from __init__) + packing
# ----------------------------------------------------------------------------
def init_params(key, d_v_encoder, d_l_encoder, n_layers, d_model, d_ff, n_seed=1):
    keys = iter(jax.random.split(key, 64))

    def nrm(shape, std=0.02):
        return (std * jax.random.normal(next(keys), shape)).astype(jnp.float32)

    def block_params():
        return dict(
            ln1_g=jnp.ones((1, d_model), jnp.float32), ln1_b=jnp.zeros((1, d_model), jnp.float32),
            wqkv=nrm((d_model, 3 * d_model)), bqkv=jnp.zeros((1, 3 * d_model), jnp.float32),
            wproj=nrm((d_model, d_model)), bproj=jnp.zeros((1, d_model), jnp.float32),
            ln2_g=jnp.ones((1, d_model), jnp.float32), ln2_b=jnp.zeros((1, d_model), jnp.float32),
            w1=nrm((d_model, d_ff)), b1=jnp.zeros((1, d_ff), jnp.float32),
            w2=nrm((d_ff, d_model)), b2=jnp.zeros((1, d_model), jnp.float32),
        )

    scale = d_model ** (-0.5)
    return dict(
        proj_v_w=nrm((d_v_encoder, d_model)), proj_v_b=jnp.zeros((1, d_model), jnp.float32),
        proj_l_w=nrm((d_l_encoder, d_model)), proj_l_b=jnp.zeros((1, d_model), jnp.float32),
        seed_emb=nrm((1, n_seed, d_model)),
        proj_patch=(scale * jax.random.normal(next(keys), (d_model, d_model))).astype(jnp.float32),
        proj_cls=(scale * jax.random.normal(next(keys), (d_model, d_model))).astype(jnp.float32),
        norm_g=jnp.ones((1, d_model), jnp.float32), norm_b=jnp.zeros((1, d_model), jnp.float32),
        blocks_vl=[block_params() for _ in range(n_layers)],
        blocks_ls=[block_params() for _ in range(n_layers)],
    )


def pack_params(params):
    """One-time repacking: stack per-layer weights along a (2*n_layers) axis, split QKV into
    full-width Q / K^T / V weights, and store all matmul weights in bfloat16 (biases / LN
    params stay f32)."""
    blocks = list(params["blocks_vl"]) + list(params["blocks_ls"])
    D = blocks[0]["wproj"].shape[0]
    names = ["ln1_g", "ln1_b", "wq", "wkT", "wv", "bq", "bkT", "bv",
             "wproj", "bproj", "ln2_g", "ln2_b", "w1", "b1", "w2", "b2"]
    per_layer = {k: [] for k in names}
    for blk in blocks:
        per_layer["ln1_g"].append(blk["ln1_g"])
        per_layer["ln1_b"].append(blk["ln1_b"])
        wqkv, bqkv = blk["wqkv"], blk["bqkv"]
        per_layer["wq"].append(wqkv[:, 0 * D:1 * D])                     # (D, D)
        per_layer["wkT"].append(wqkv[:, 1 * D:2 * D].T)                  # (D_out, D_in)
        per_layer["wv"].append(wqkv[:, 2 * D:3 * D])                     # (D, D)
        per_layer["bq"].append(bqkv[:, 0 * D:1 * D])                     # (1, D)
        per_layer["bkT"].append(bqkv[0, 1 * D:2 * D].reshape(D, 1))      # (D, 1)
        per_layer["bv"].append(bqkv[:, 2 * D:3 * D])                     # (1, D)
        per_layer["wproj"].append(blk["wproj"])
        per_layer["bproj"].append(blk["bproj"])
        per_layer["ln2_g"].append(blk["ln2_g"])
        per_layer["ln2_b"].append(blk["ln2_b"])
        per_layer["w1"].append(blk["w1"]); per_layer["b1"].append(blk["b1"])
        per_layer["w2"].append(blk["w2"]); per_layer["b2"].append(blk["b2"])

    packed = {k: params[k] for k in ["proj_v_w", "proj_v_b", "proj_l_w", "proj_l_b",
                                     "seed_emb", "proj_patch", "proj_cls",
                                     "norm_g", "norm_b"]}
    packed.update({k: jnp.stack(v, axis=0) for k, v in per_layer.items()})
    # bf16 MXU operands (halves resident-weight VMEM & HBM traffic), f32 accumulation.
    for k in ["wq", "wkT", "wv", "wproj", "w1", "w2",
              "proj_v_w", "proj_l_w", "proj_patch", "proj_cls"]:
        packed[k] = packed[k].astype(jnp.bfloat16)
    return packed


if __name__ == "__main__":
    # small shapes consistent with the module
    patch_size = 4
    H = W = 16
    d_v_encoder, d_l_encoder = 48, 24
    n_layers, n_heads = 2, 4
    d_model, d_ff = 32, 64
    B = 2
    GS = H // patch_size
    P = GS * GS
    is_distilled = 0

    key = jax.random.PRNGKey(0)
    kp, kv, kl, km = jax.random.split(key, 4)
    params = init_params(kp, d_v_encoder, d_l_encoder, n_layers, d_model, d_ff)
    packed = pack_params(params)

    x_v = jax.random.normal(kv, (B, 1 + is_distilled + P, d_v_encoder), jnp.float32)
    x_l = jax.random.normal(kl, (B, N_L, d_l_encoder), jnp.float32)
    lang = (jax.random.uniform(km, (B, N_L)) > 0.3).astype(jnp.int32)

    pixel_pred, _, patch_pred = mm_fusion_forward(
        packed, x_v, x_l, lang, is_distilled, (H, W), patch_size, n_heads)
    jax.block_until_ready(pixel_pred)
    jax.block_until_ready(patch_pred)

    assert pixel_pred.shape == (B, 1, GS, GS)
    assert patch_pred.shape == (B, 1, GS, GS)
    print("KERNEL_OK")
</pallas_src>

<mosaic_0001>
module attributes {stable_mosaic.version = 11 : i64} {
  func.func @_mm_fusion_kernel(%arg0: i32, %arg1: memref<1x16x48xf32, #tpu.memory_space<vmem>>, %arg2: memref<1x20x24xf32, #tpu.memory_space<vmem>>, %arg3: memref<1x20x1xi32, #tpu.memory_space<vmem>>, %arg4: memref<48x32xbf16, #tpu.memory_space<vmem>>, %arg5: memref<1x32xf32, #tpu.memory_space<vmem>>, %arg6: memref<24x32xbf16, #tpu.memory_space<vmem>>, %arg7: memref<1x32xf32, #tpu.memory_space<vmem>>, %arg8: memref<1x1x32xf32, #tpu.memory_space<vmem>>, %arg9: memref<4x1x32xf32, #tpu.memory_space<vmem>>, %arg10: memref<4x1x32xf32, #tpu.memory_space<vmem>>, %arg11: memref<4x32x32xbf16, #tpu.memory_space<vmem>>, %arg12: memref<4x32x32xbf16, #tpu.memory_space<vmem>>, %arg13: memref<4x32x32xbf16, #tpu.memory_space<vmem>>, %arg14: memref<4x1x32xf32, #tpu.memory_space<vmem>>, %arg15: memref<4x32x1xf32, #tpu.memory_space<vmem>>, %arg16: memref<4x1x32xf32, #tpu.memory_space<vmem>>, %arg17: memref<4x32x32xbf16, #tpu.memory_space<vmem>>, %arg18: memref<4x1x32xf32, #tpu.memory_space<vmem>>, %arg19: memref<4x1x32xf32, #tpu.memory_space<vmem>>, %arg20: memref<4x1x32xf32, #tpu.memory_space<vmem>>, %arg21: memref<4x32x64xbf16, #tpu.memory_space<vmem>>, %arg22: memref<4x1x64xf32, #tpu.memory_space<vmem>>, %arg23: memref<4x64x32xbf16, #tpu.memory_space<vmem>>, %arg24: memref<4x1x32xf32, #tpu.memory_space<vmem>>, %arg25: memref<1x32xf32, #tpu.memory_space<vmem>>, %arg26: memref<1x32xf32, #tpu.memory_space<vmem>>, %arg27: memref<32x32xbf16, #tpu.memory_space<vmem>>, %arg28: memref<32x32xbf16, #tpu.memory_space<vmem>>, %arg29: memref<1x1x16xf32, #tpu.memory_space<vmem>>) attributes {dimension_semantics = [#tpu.dimension_semantics<parallel>], iteration_bounds = array<i64: 2>, scalar_prefetch = 0 : i64, scratch_operands = 0 : i64, tpu.core_type = #tpu.core_type<tc>, window_params = [{transform_indices = @transform_0, window_bounds = array<i64: 1, 16, 48>}, {transform_indices = @transform_1, window_bounds = array<i64: 1, 20, 24>}, {transform_indices = @transform_2, window_bounds = array<i64: 1, 20, 1>}, {pipeline_mode = #tpu.pipeline_mode<synchronous>, transform_indices = @transform_3, window_bounds = array<i64: 48, 32>}, {pipeline_mode = #tpu.pipeline_mode<synchronous>, transform_indices = @transform_4, window_bounds = array<i64: 1, 32>}, {pipeline_mode = #tpu.pipeline_mode<synchronous>, transform_indices = @transform_5, window_bounds = array<i64: 24, 32>}, {pipeline_mode = #tpu.pipeline_mode<synchronous>, transform_indices = @transform_6, window_bounds = array<i64: 1, 32>}, {pipeline_mode = #tpu.pipeline_mode<synchronous>, transform_indices = @transform_7, window_bounds = array<i64: 1, 1, 32>}, {pipeline_mode = #tpu.pipeline_mode<synchronous>, transform_indices = @transform_8, window_bounds = array<i64: 4, 1, 32>}, {pipeline_mode = #tpu.pipeline_mode<synchronous>, transform_indices = @transform_9, window_bounds = array<i64: 4, 1, 32>}, {pipeline_mode = #tpu.pipeline_mode<synchronous>, transform_indices = @transform_10, window_bounds = array<i64: 4, 32, 32>}, {pipeline_mode = #tpu.pipeline_mode<synchronous>, transform_indices = @transform_11, window_bounds = array<i64: 4, 32, 32>}, {pipeline_mode = #tpu.pipeline_mode<synchronous>, transform_indices = @transform_12, window_bounds = array<i64: 4, 32, 32>}, {pipeline_mode = #tpu.pipeline_mode<synchronous>, transform_indices = @transform_13, window_bounds = array<i64: 4, 1, 32>}, {pipeline_mode = #tpu.pipeline_mode<synchronous>, transform_indices = @transform_14, window_bounds = array<i64: 4, 32, 1>}, {pipeline_mode = #tpu.pipeline_mode<synchronous>, transform_indices = @transform_15, window_bounds = array<i64: 4, 1, 32>}, {pipeline_mode = #tpu.pipeline_mode<synchronous>, transform_indices = @transform_16, window_bounds = array<i64: 4, 32, 32>}, {pipeline_mode = #tpu.pipeline_mode<synchronous>, transform_indices = @transform_17, window_bounds = array<i64: 4, 1, 32>}, {pipeline_mode = #tpu.pipeline_mode<synchronous>, transform_indices = @transform_18, window_bounds = array<i64: 4, 1, 32>}, {pipeline_mode = #tpu.pipeline_mode<synchronous>, transform_indices = @transform_19, window_bounds = array<i64: 4, 1, 32>}, {pipeline_mode = #tpu.pipeline_mode<synchronous>, transform_indices = @transform_20, window_bounds = array<i64: 4, 32, 64>}, {pipeline_mode = #tpu.pipeline_mode<synchronous>, transform_indices = @transform_21, window_bounds = array<i64: 4, 1, 64>}, {pipeline_mode = #tpu.pipeline_mode<synchronous>, transform_indices = @transform_22, window_bounds = array<i64: 4, 64, 32>}, {pipeline_mode = #tpu.pipeline_mode<synchronous>, transform_indices = @transform_23, window_bounds = array<i64: 4, 1, 32>}, {pipeline_mode = #tpu.pipeline_mode<synchronous>, transform_indices = @transform_24, window_bounds = array<i64: 1, 32>}, {pipeline_mode = #tpu.pipeline_mode<synchronous>, transform_indices = @transform_25, window_bounds = array<i64: 1, 32>}, {pipeline_mode = #tpu.pipeline_mode<synchronous>, transform_indices = @transform_26, window_bounds = array<i64: 32, 32>}, {pipeline_mode = #tpu.pipeline_mode<synchronous>, transform_indices = @transform_27, window_bounds = array<i64: 32, 32>}, {transform_indices = @transform_28, window_bounds = array<i64: 1, 1, 16>}]} {
    %c0 = arith.constant 0 : index
    %c0_0 = arith.constant 0 : index
    %c0_1 = arith.constant 0 : index
    %0 = vector.load %arg1[%c0, %c0_0, %c0_1] : memref<1x16x48xf32, #tpu.memory_space<vmem>>, vector<1x16x48xf32>
    %1 = vector.shape_cast %0 : vector<1x16x48xf32> to vector<16x48xf32>
    %2 = arith.mulf %1, %1 : vector<16x48xf32>
    %cst = arith.constant dense<0.000000e+00> : vector<16xf32>
    %3 = vector.multi_reduction <add>, %2, %cst [1] : vector<16x48xf32> to vector<16xf32>
    %4 = vector.shape_cast %3 : vector<16xf32> to vector<16x1xf32>
    %cst_2 = arith.constant 1.000000e-24 : f32
    %5 = vector.broadcast %cst_2 : f32 to vector<16x1xf32>
    %6 = arith.maximumf %4, %5 : vector<16x1xf32>
    %7 = math.rsqrt %6 : vector<16x1xf32>
    %8 = vector.broadcast %7 : vector<16x1xf32> to vector<16x48xf32>
    %9 = arith.mulf %1, %8 : vector<16x48xf32>
    %10 = arith.truncf %9 : vector<16x48xf32> to vector<16x48xbf16>
    %c0_3 = arith.constant 0 : index
    %c0_4 = arith.constant 0 : index
    %11 = vector.load %arg4[%c0_3, %c0_4] : memref<48x32xbf16, #tpu.memory_space<vmem>>, vector<48x32xbf16>
    %cst_5 = arith.constant dense<0.000000e+00> : vector<16x32xf32>
    %12 = tpu.matmul %10, %11, %cst_5 {dimension_numbers = #tpu.dot_dimension_numbers<[1], [0], [0], [1], [0, 0, 1, 1], [], []>} : vector<16x48xbf16>, vector<48x32xbf16>, vector<16x32xf32> -> vector<16x32xf32>
    %c0_6 = arith.constant 0 : index
    %c0_7 = arith.constant 0 : index
    %13 = vector.load %arg5[%c0_6, %c0_7] : memref<1x32xf32, #tpu.memory_space<vmem>>, vector<1x32xf32>
    %14 = vector.broadcast %13 : vector<1x32xf32> to vector<16x32xf32>
    %15 = arith.addf %12, %14 : vector<16x32xf32>
    %c0_8 = arith.constant 0 : index
    %c0_9 = arith.constant 0 : index
    %c0_10 = arith.constant 0 : index
    %16 = vector.load %arg2[%c0_8, %c0_9, %c0_10] : memref<1x20x24xf32, #tpu.memory_space<vmem>>, vector<1x20x24xf32>
    %17 = vector.shape_cast %16 : vector<1x20x24xf32> to vector<20x24xf32>
    %18 = arith.mulf %17, %17 : vector<20x24xf32>
    %cst_11 = arith.constant dense<0.000000e+00> : vector<20xf32>
    %19 = vector.multi_reduction <add>, %18, %cst_11 [1] : vector<20x24xf32> to vector<20xf32>
    %20 = vector.shape_cast %19 : vector<20xf32> to vector<20x1xf32>
    %cst_12 = arith.constant 1.000000e-24 : f32
    %21 = vector.broadcast %cst_12 : f32 to vector<20x1xf32>
    %22 = arith.maximumf %20, %21 : vector<20x1xf32>
    %23 = math.rsqrt %22 : vector<20x1xf32>
    %24 = vector.broadcast %23 : vector<20x1xf32> to vector<20x24xf32>
    %25 = arith.mulf %17, %24 : vector<20x24xf32>
    %26 = arith.truncf %25 : vector<20x24xf32> to vector<20x24xbf16>
    %c0_13 = arith.constant 0 : index
    %c0_14 = arith.constant 0 : index
    %27 = vector.load %arg6[%c0_13, %c0_14] : memref<24x32xbf16, #tpu.memory_space<vmem>>, vector<24x32xbf16>
    %cst_15 = arith.constant dense<0.000000e+00> : vector<20x32xf32>
    %28 = tpu.matmul %26, %27, %cst_15 {dimension_numbers = #tpu.dot_dimension_numbers<[1], [0], [0], [1], [0, 0, 1, 1], [], []>} : vector<20x24xbf16>, vector<24x32xbf16>, vector<20x32xf32> -> vector<20x32xf32>
    %c0_16 = arith.constant 0 : index
    %c0_17 = arith.constant 0 : index
    %29 = vector.load %arg7[%c0_16, %c0_17] : memref<1x32xf32, #tpu.memory_space<vmem>>, vector<1x32xf32>
    %30 = vector.broadcast %29 : vector<1x32xf32> to vector<20x32xf32>
    %31 = arith.addf %28, %30 : vector<20x32xf32>
    %c0_18 = arith.constant 0 : index
    %c0_19 = arith.constant 0 : index
    %c0_20 = arith.constant 0 : index
    %32 = vector.load %arg3[%c0_18, %c0_19, %c0_20] : memref<1x20x1xi32, #tpu.memory_space<vmem>>, vector<1x20x1xi32>
    %33 = vector.shape_cast %32 : vector<1x20x1xi32> to vector<20x1xi32>
    %c0_i32 = arith.constant 0 : i32
    %34 = vector.broadcast %c0_i32 : i32 to vector<20x1xi32>
    %35 = arith.cmpi eq, %33, %34 : vector<20x1xi32>
    %cst_21 = arith.constant 0.000000e+00 : f32
    %36 = vector.shape_cast %35 : vector<20x1xi1> to vector<20x1xi1>
    %37 = vector.broadcast %36 : vector<20x1xi1> to vector<20x32xi1>
    %38 = vector.broadcast %cst_21 : f32 to vector<20x32xf32>
    %39 = arith.select %37, %38, %31 : vector<20x32xi1>, vector<20x32xf32>
    %40 = tpu.concatenate %15, %39 in 0 : vector<16x32xf32>, vector<20x32xf32> -> vector<36x32xf32>
    %c0_i32_22 = arith.constant 0 : i32
    %c2_i32 = arith.constant 2 : i32
    %41 = arith.addi %c0_i32_22, %c2_i32 : i32
    %c1_i32 = arith.constant 1 : i32
    %42 = scf.for %arg30 = %c0_i32_22 to %41 step %c1_i32 iter_args(%arg31 = %40) -> (vector<36x32xf32>)  : i32 {
      %85 = arith.index_cast %arg30 : i32 to index
      %c0_50 = arith.constant 0 : index
      %c0_51 = arith.constant 0 : index
      %86 = vector.load %arg9[%85, %c0_50, %c0_51] : memref<4x1x32xf32, #tpu.memory_space<vmem>>, vector<1x1x32xf32>
      %87 = vector.shape_cast %86 : vector<1x1x32xf32> to vector<1x32xf32>
      %88 = arith.index_cast %arg30 : i32 to index
      %c0_52 = arith.constant 0 : index
      %c0_53 = arith.constant 0 : index
      %89 = vector.load %arg10[%88, %c0_52, %c0_53] : memref<4x1x32xf32, #tpu.memory_space<vmem>>, vector<1x1x32xf32>
      %90 = vector.shape_cast %89 : vector<1x1x32xf32> to vector<1x32xf32>
      %cst_54 = arith.constant dense<0.000000e+00> : vector<36xf32>
      %91 = vector.multi_reduction <add>, %arg31, %cst_54 [1] : vector<36x32xf32> to vector<36xf32>
      %92 = vector.shape_cast %91 : vector<36xf32> to vector<36x1xf32>
      %cst_55 = arith.constant 3.200000e+01 : f32
      %93 = vector.broadcast %cst_55 : f32 to vector<36x1xf32>
      %94 = arith.divf %92, %93 : vector<36x1xf32>
      %95 = vector.broadcast %94 : vector<36x1xf32> to vector<36x32xf32>
      %96 = arith.subf %arg31, %95 : vector<36x32xf32>
      %97 = arith.mulf %96, %96 : vector<36x32xf32>
      %cst_56 = arith.constant dense<0.000000e+00> : vector<36xf32>
      %98 = vector.multi_reduction <add>, %97, %cst_56 [1] : vector<36x32xf32> to vector<36xf32>
      %99 = vector.shape_cast %98 : vector<36xf32> to vector<36x1xf32>
      %cst_57 = arith.constant 3.200000e+01 : f32
      %100 = vector.broadcast %cst_57 : f32 to vector<36x1xf32>
      %101 = arith.divf %99, %100 : vector<36x1xf32>
      %cst_58 = arith.constant 9.99999974E-6 : f32
      %102 = vector.broadcast %cst_58 : f32 to vector<36x1xf32>
      %103 = arith.addf %101, %102 : vector<36x1xf32>
      %104 = math.rsqrt %103 : vector<36x1xf32>
      %105 = vector.broadcast %104 : vector<36x1xf32> to vector<36x32xf32>
      %106 = arith.mulf %96, %105 : vector<36x32xf32>
      %107 = vector.broadcast %87 : vector<1x32xf32> to vector<36x32xf32>
      %108 = arith.mulf %106, %107 : vector<36x32xf32>
      %109 = vector.broadcast %90 : vector<1x32xf32> to vector<36x32xf32>
      %110 = arith.addf %108, %109 : vector<36x32xf32>
      %111 = arith.truncf %110 : vector<36x32xf32> to vector<36x32xbf16>
      %112 = arith.index_cast %arg30 : i32 to index
      %c0_59 = arith.constant 0 : index
      %c0_60 = arith.constant 0 : index
      %113 = vector.load %arg11[%112, %c0_59, %c0_60] : memref<4x32x32xbf16, #tpu.memory_space<vmem>>, vector<1x32x32xbf16>
      %114 = vector.shape_cast %113 : vector<1x32x32xbf16> to vector<32x32xbf16>
      %cst_61 = arith.constant dense<0.000000e+00> : vector<36x32xf32>
      %115 = tpu.matmul %111, %114, %cst_61 {dimension_numbers = #tpu.dot_dimension_numbers<[1], [0], [0], [1], [0, 0, 1, 1], [], []>} : vector<36x32xbf16>, vector<32x32xbf16>, vector<36x32xf32> -> vector<36x32xf32>
      %116 = arith.index_cast %arg30 : i32 to index
      %c0_62 = arith.constant 0 : index
      %c0_63 = arith.constant 0 : index
      %117 = vector.load %arg14[%116, %c0_62, %c0_63] : memref<4x1x32xf32, #tpu.memory_space<vmem>>, vector<1x1x32xf32>
      %118 = vector.shape_cast %117 : vector<1x1x32xf32> to vector<1x32xf32>
      %119 = vector.broadcast %118 : vector<1x32xf32> to vector<36x32xf32>
      %120 = arith.addf %115, %119 : vector<36x32xf32>
      %121 = arith.index_cast %arg30 : i32 to index
      %c0_64 = arith.constant 0 : index
      %c0_65 = arith.constant 0 : index
      %122 = vector.load %arg12[%121, %c0_64, %c0_65] : memref<4x32x32xbf16, #tpu.memory_space<vmem>>, vector<1x32x32xbf16>
      %123 = vector.shape_cast %122 : vector<1x32x32xbf16> to vector<32x32xbf16>
      %cst_66 = arith.constant dense<0.000000e+00> : vector<32x36xf32>
      %124 = tpu.matmul %123, %111, %cst_66 {dimension_numbers = #tpu.dot_dimension_numbers<[1], [1], [0], [0], [0, 0, 1, 0], [], []>} : vector<32x32xbf16>, vector<36x32xbf16>, vector<32x36xf32> -> vector<32x36xf32>
      %125 = arith.index_cast %arg30 : i32 to index
      %c0_67 = arith.constant 0 : index
      %c0_68 = arith.constant 0 : index
      %126 = vector.load %arg15[%125, %c0_67, %c0_68] : memref<4x32x1xf32, #tpu.memory_space<vmem>>, vector<1x32x1xf32>
      %127 = vector.shape_cast %126 : vector<1x32x1xf32> to vector<32x1xf32>
      %128 = vector.broadcast %127 : vector<32x1xf32> to vector<32x36xf32>
      %129 = arith.addf %124, %128 : vector<32x36xf32>
      %130 = arith.index_cast %arg30 : i32 to index
      %c0_69 = arith.constant 0 : index
      %c0_70 = arith.constant 0 : index
      %131 = vector.load %arg13[%130, %c0_69, %c0_70] : memref<4x32x32xbf16, #tpu.memory_space<vmem>>, vector<1x32x32xbf16>
      %132 = vector.shape_cast %131 : vector<1x32x32xbf16> to vector<32x32xbf16>
      %cst_71 = arith.constant dense<0.000000e+00> : vector<36x32xf32>
      %133 = tpu.matmul %111, %132, %cst_71 {dimension_numbers = #tpu.dot_dimension_numbers<[1], [0], [0], [1], [0, 0, 1, 1], [], []>} : vector<36x32xbf16>, vector<32x32xbf16>, vector<36x32xf32> -> vector<36x32xf32>
      %134 = arith.index_cast %arg30 : i32 to index
      %c0_72 = arith.constant 0 : index
      %c0_73 = arith.constant 0 : index
      %135 = vector.load %arg16[%134, %c0_72, %c0_73] : memref<4x1x32xf32, #tpu.memory_space<vmem>>, vector<1x1x32xf32>
      %136 = vector.shape_cast %135 : vector<1x1x32xf32> to vector<1x32xf32>
      %137 = vector.broadcast %136 : vector<1x32xf32> to vector<36x32xf32>
      %138 = arith.addf %133, %137 : vector<36x32xf32>
      %139 = arith.truncf %120 : vector<36x32xf32> to vector<36x32xbf16>
      %140 = arith.truncf %129 : vector<32x36xf32> to vector<32x36xbf16>
      %141 = arith.truncf %138 : vector<36x32xf32> to vector<36x32xbf16>
      %142 = vector.extract_strided_slice %139 {offsets = [0, 0], sizes = [36, 8], strides = [1, 1]} : vector<36x32xbf16> to vector<36x8xbf16>
      %143 = vector.extract_strided_slice %140 {offsets = [0, 0], sizes = [8, 36], strides = [1, 1]} : vector<32x36xbf16> to vector<8x36xbf16>
      %cst_74 = arith.constant dense<0.000000e+00> : vector<36x36xf32>
      %144 = tpu.matmul %142, %143, %cst_74 {dimension_numbers = #tpu.dot_dimension_numbers<[1], [0], [0], [1], [0, 0, 1, 1], [], []>} : vector<36x8xbf16>, vector<8x36xbf16>, vector<36x36xf32> -> vector<36x36xf32>
      %cst_75 = arith.constant 0.353553385 : f32
      %145 = vector.broadcast %cst_75 : f32 to vector<36x36xf32>
      %146 = arith.mulf %144, %145 : vector<36x36xf32>
      %cst_76 = arith.constant dense<0xFF800000> : vector<36xf32>
      %147 = vector.multi_reduction <maximumf>, %146, %cst_76 [1] : vector<36x36xf32> to vector<36xf32>
      %148 = vector.shape_cast %147 : vector<36xf32> to vector<36x1xf32>
      %149 = vector.broadcast %148 : vector<36x1xf32> to vector<36x36xf32>
      %150 = arith.subf %146, %149 : vector<36x36xf32>
      %151 = math.exp %150 : vector<36x36xf32>
      %cst_77 = arith.constant dense<0.000000e+00> : vector<36xf32>
      %152 = vector.multi_reduction <add>, %151, %cst_77 [1] : vector<36x36xf32> to vector<36xf32>
      %153 = vector.shape_cast %152 : vector<36xf32> to vector<36x1xf32>
      %154 = tpu.reciprocal %153 {approx = true} : vector<36x1xf32> -> vector<36x1xf32>
      %155 = vector.broadcast %154 : vector<36x1xf32> to vector<36x36xf32>
      %156 = arith.mulf %151, %155 : vector<36x36xf32>
      %157 = arith.truncf %156 : vector<36x36xf32> to vector<36x36xbf16>
      %158 = vector.extract_strided_slice %141 {offsets = [0, 0], sizes = [36, 8], strides = [1, 1]} : vector<36x32xbf16> to vector<36x8xbf16>
      %cst_78 = arith.constant dense<0.000000e+00> : vector<36x8xf32>
      %159 = tpu.matmul %157, %158, %cst_78 {dimension_numbers = #tpu.dot_dimension_numbers<[1], [0], [0], [1], [0, 0, 1, 1], [], []>} : vector<36x36xbf16>, vector<36x8xbf16>, vector<36x8xf32> -> vector<36x8xf32>
      %160 = vector.extract_strided_slice %139 {offsets = [0, 8], sizes = [36, 8], strides = [1, 1]} : vector<36x32xbf16> to vector<36x8xbf16>
      %161 = vector.extract_strided_slice %140 {offsets = [8, 0], sizes = [8, 36], strides = [1, 1]} : vector<32x36xbf16> to vector<8x36xbf16>
      %cst_79 = arith.constant dense<0.000000e+00> : vector<36x36xf32>
      %162 = tpu.matmul %160, %161, %cst_79 {dimension_numbers = #tpu.dot_dimension_numbers<[1], [0], [0], [1], [0, 0, 1, 1], [], []>} : vector<36x8xbf16>, vector<8x36xbf16>, vector<36x36xf32> -> vector<36x36xf32>
      %cst_80 = arith.constant 0.353553385 : f32
      %163 = vector.broadcast %cst_80 : f32 to vector<36x36xf32>
      %164 = arith.mulf %162, %163 : vector<36x36xf32>
      %cst_81 = arith.constant dense<0xFF800000> : vector<36xf32>
      %165 = vector.multi_reduction <maximumf>, %164, %cst_81 [1] : vector<36x36xf32> to vector<36xf32>
      %166 = vector.shape_cast %165 : vector<36xf32> to vector<36x1xf32>
      %167 = vector.broadcast %166 : vector<36x1xf32> to vector<36x36xf32>
      %168 = arith.subf %164, %167 : vector<36x36xf32>
      %169 = math.exp %168 : vector<36x36xf32>
      %cst_82 = arith.constant dense<0.000000e+00> : vector<36xf32>
      %170 = vector.multi_reduction <add>, %169, %cst_82 [1] : vector<36x36xf32> to vector<36xf32>
      %171 = vector.shape_cast %170 : vector<36xf32> to vector<36x1xf32>
      %172 = tpu.reciprocal %171 {approx = true} : vector<36x1xf32> -> vector<36x1xf32>
      %173 = vector.broadcast %172 : vector<36x1xf32> to vector<36x36xf32>
      %174 = arith.mulf %169, %173 : vector<36x36xf32>
      %175 = arith.truncf %174 : vector<36x36xf32> to vector<36x36xbf16>
      %176 = vector.extract_strided_slice %141 {offsets = [0, 8], sizes = [36, 8], strides = [1, 1]} : vector<36x32xbf16> to vector<36x8xbf16>
      %cst_83 = arith.constant dense<0.000000e+00> : vector<36x8xf32>
      %177 = tpu.matmul %175, %176, %cst_83 {dimension_numbers = #tpu.dot_dimension_numbers<[1], [0], [0], [1], [0, 0, 1, 1], [], []>} : vector<36x36xbf16>, vector<36x8xbf16>, vector<36x8xf32> -> vector<36x8xf32>
      %178 = vector.extract_strided_slice %139 {offsets = [0, 16], sizes = [36, 8], strides = [1, 1]} : vector<36x32xbf16> to vector<36x8xbf16>
      %179 = vector.extract_strided_slice %140 {offsets = [16, 0], sizes = [8, 36], strides = [1, 1]} : vector<32x36xbf16> to vector<8x36xbf16>
      %cst_84 = arith.constant dense<0.000000e+00> : vector<36x36xf32>
      %180 = tpu.matmul %178, %179, %cst_84 {dimension_numbers = #tpu.dot_dimension_numbers<[1], [0], [0], [1], [0, 0, 1, 1], [], []>} : vector<36x8xbf16>, vector<8x36xbf16>, vector<36x36xf32> -> vector<36x36xf32>
      %cst_85 = arith.constant 0.353553385 : f32
      %181 = vector.broadcast %cst_85 : f32 to vector<36x36xf32>
      %182 = arith.mulf %180, %181 : vector<36x36xf32>
      %cst_86 = arith.constant dense<0xFF800000> : vector<36xf32>
      %183 = vector.multi_reduction <maximumf>, %182, %cst_86 [1] : vector<36x36xf32> to vector<36xf32>
      %184 = vector.shape_cast %183 : vector<36xf32> to vector<36x1xf32>
      %185 = vector.broadcast %184 : vector<36x1xf32> to vector<36x36xf32>
      %186 = arith.subf %182, %185 : vector<36x36xf32>
      %187 = math.exp %186 : vector<36x36xf32>
      %cst_87 = arith.constant dense<0.000000e+00> : vector<36xf32>
      %188 = vector.multi_reduction <add>, %187, %cst_87 [1] : vector<36x36xf32> to vector<36xf32>
      %189 = vector.shape_cast %188 : vector<36xf32> to vector<36x1xf32>
      %190 = tpu.reciprocal %189 {approx = true} : vector<36x1xf32> -> vector<36x1xf32>
      %191 = vector.broadcast %190 : vector<36x1xf32> to vector<36x36xf32>
      %192 = arith.mulf %187, %191 : vector<36x36xf32>
      %193 = arith.truncf %192 : vector<36x36xf32> to vector<36x36xbf16>
      %194 = vector.extract_strided_slice %141 {offsets = [0, 16], sizes = [36, 8], strides = [1, 1]} : vector<36x32xbf16> to vector<36x8xbf16>
      %cst_88 = arith.constant dense<0.000000e+00> : vector<36x8xf32>
      %195 = tpu.matmul %193, %194, %cst_88 {dimension_numbers = #tpu.dot_dimension_numbers<[1], [0], [0], [1], [0, 0, 1, 1], [], []>} : vector<36x36xbf16>, vector<36x8xbf16>, vector<36x8xf32> -> vector<36x8xf32>
      %196 = vector.extract_strided_slice %139 {offsets = [0, 24], sizes = [36, 8], strides = [1, 1]} : vector<36x32xbf16> to vector<36x8xbf16>
      %197 = vector.extract_strided_slice %140 {offsets = [24, 0], sizes = [8, 36], strides = [1, 1]} : vector<32x36xbf16> to vector<8x36xbf16>
      %cst_89 = arith.constant dense<0.000000e+00> : vector<36x36xf32>
      %198 = tpu.matmul %196, %197, %cst_89 {dimension_numbers = #tpu.dot_dimension_numbers<[1], [0], [0], [1], [0, 0, 1, 1], [], []>} : vector<36x8xbf16>, vector<8x36xbf16>, vector<36x36xf32> -> vector<36x36xf32>
      %cst_90 = arith.constant 0.353553385 : f32
      %199 = vector.broadcast %cst_90 : f32 to vector<36x36xf32>
      %200 = arith.mulf %198, %199 : vector<36x36xf32>
      %cst_91 = arith.constant dense<0xFF800000> : vector<36xf32>
      %201 = vector.multi_reduction <maximumf>, %200, %cst_91 [1] : vector<36x36xf32> to vector<36xf32>
      %202 = vector.shape_cast %201 : vector<36xf32> to vector<36x1xf32>
      %203 = vector.broadcast %202 : vector<36x1xf32> to vector<36x36xf32>
      %204 = arith.subf %200, %203 : vector<36x36xf32>
      %205 = math.exp %204 : vector<36x36xf32>
      %cst_92 = arith.constant dense<0.000000e+00> : vector<36xf32>
      %206 = vector.multi_reduction <add>, %205, %cst_92 [1] : vector<36x36xf32> to vector<36xf32>
      %207 = vector.shape_cast %206 : vector<36xf32> to vector<36x1xf32>
      %208 = tpu.reciprocal %207 {approx = true} : vector<36x1xf32> -> vector<36x1xf32>
      %209 = vector.broadcast %208 : vector<36x1xf32> to vector<36x36xf32>
      %210 = arith.mulf %205, %209 : vector<36x36xf32>
      %211 = arith.truncf %210 : vector<36x36xf32> to vector<36x36xbf16>
      %212 = vector.extract_strided_slice %141 {offsets = [0, 24], sizes = [36, 8], strides = [1, 1]} : vector<36x32xbf16> to vector<36x8xbf16>
      %cst_93 = arith.constant dense<0.000000e+00> : vector<36x8xf32>
      %213 = tpu.matmul %211, %212, %cst_93 {dimension_numbers = #tpu.dot_dimension_numbers<[1], [0], [0], [1], [0, 0, 1, 1], [], []>} : vector<36x36xbf16>, vector<36x8xbf16>, vector<36x8xf32> -> vector<36x8xf32>
      %214 = tpu.concatenate %159, %177, %195, %213 in 1 : vector<36x8xf32>, vector<36x8xf32>, vector<36x8xf32>, vector<36x8xf32> -> vector<36x32xf32>
      %215 = arith.truncf %214 : vector<36x32xf32> to vector<36x32xbf16>
      %216 = arith.index_cast %arg30 : i32 to index
      %c0_94 = arith.constant 0 : index
      %c0_95 = arith.constant 0 : index
      %217 = vector.load %arg17[%216, %c0_94, %c0_95] : memref<4x32x32xbf16, #tpu.memory_space<vmem>>, vector<1x32x32xbf16>
      %218 = vector.shape_cast %217 : vector<1x32x32xbf16> to vector<32x32xbf16>
      %cst_96 = arith.constant dense<0.000000e+00> : vector<36x32xf32>
      %219 = tpu.matmul %215, %218, %cst_96 {dimension_numbers = #tpu.dot_dimension_numbers<[1], [0], [0], [1], [0, 0, 1, 1], [], []>} : vector<36x32xbf16>, vector<32x32xbf16>, vector<36x32xf32> -> vector<36x32xf32>
      %220 = arith.index_cast %arg30 : i32 to index
      %c0_97 = arith.constant 0 : index
      %c0_98 = arith.constant 0 : index
      %221 = vector.load %arg18[%220, %c0_97, %c0_98] : memref<4x1x32xf32, #tpu.memory_space<vmem>>, vector<1x1x32xf32>
      %222 = vector.shape_cast %221 : vector<1x1x32xf32> to vector<1x32xf32>
      %223 = vector.broadcast %222 : vector<1x32xf32> to vector<36x32xf32>
      %224 = arith.addf %219, %223 : vector<36x32xf32>
      %225 = arith.addf %arg31, %224 : vector<36x32xf32>
      %226 = arith.index_cast %arg30 : i32 to index
      %c0_99 = arith.constant 0 : index
      %c0_100 = arith.constant 0 : index
      %227 = vector.load %arg19[%226, %c0_99, %c0_100] : memref<4x1x32xf32, #tpu.memory_space<vmem>>, vector<1x1x32xf32>
      %228 = vector.shape_cast %227 : vector<1x1x32xf32> to vector<1x32xf32>
      %229 = arith.index_cast %arg30 : i32 to index
      %c0_101 = arith.constant 0 : index
      %c0_102 = arith.constant 0 : index
      %230 = vector.load %arg20[%229, %c0_101, %c0_102] : memref<4x1x32xf32, #tpu.memory_space<vmem>>, vector<1x1x32xf32>
      %231 = vector.shape_cast %230 : vector<1x1x32xf32> to vector<1x32xf32>
      %cst_103 = arith.constant dense<0.000000e+00> : vector<36xf32>
      %232 = vector.multi_reduction <add>, %225, %cst_103 [1] : vector<36x32xf32> to vector<36xf32>
      %233 = vector.shape_cast %232 : vector<36xf32> to vector<36x1xf32>
      %cst_104 = arith.constant 3.200000e+01 : f32
      %234 = vector.broadcast %cst_104 : f32 to vector<36x1xf32>
      %235 = arith.divf %233, %234 : vector<36x1xf32>
      %236 = vector.broadcast %235 : vector<36x1xf32> to vector<36x32xf32>
      %237 = arith.subf %225, %236 : vector<36x32xf32>
      %238 = arith.mulf %237, %237 : vector<36x32xf32>
      %cst_105 = arith.constant dense<0.000000e+00> : vector<36xf32>
      %239 = vector.multi_reduction <add>, %238, %cst_105 [1] : vector<36x32xf32> to vector<36xf32>
      %240 = vector.shape_cast %239 : vector<36xf32> to vector<36x1xf32>
      %cst_106 = arith.constant 3.200000e+01 : f32
      %241 = vector.broadcast %cst_106 : f32 to vector<36x1xf32>
      %242 = arith.divf %240, %241 : vector<36x1xf32>
      %cst_107 = arith.constant 9.99999974E-6 : f32
      %243 = vector.broadcast %cst_107 : f32 to vector<36x1xf32>
      %244 = arith.addf %242, %243 : vector<36x1xf32>
      %245 = math.rsqrt %244 : vector<36x1xf32>
      %246 = vector.broadcast %245 : vector<36x1xf32> to vector<36x32xf32>
      %247 = arith.mulf %237, %246 : vector<36x32xf32>
      %248 = vector.broadcast %228 : vector<1x32xf32> to vector<36x32xf32>
      %249 = arith.mulf %247, %248 : vector<36x32xf32>
      %250 = vector.broadcast %231 : vector<1x32xf32> to vector<36x32xf32>
      %251 = arith.addf %249, %250 : vector<36x32xf32>
      %252 = arith.truncf %251 : vector<36x32xf32> to vector<36x32xbf16>
      %253 = arith.index_cast %arg30 : i32 to index
      %c0_108 = arith.constant 0 : index
      %c0_109 = arith.constant 0 : index
      %254 = vector.load %arg21[%253, %c0_108, %c0_109] : memref<4x32x64xbf16, #tpu.memory_space<vmem>>, vector<1x32x64xbf16>
      %255 = vector.shape_cast %254 : vector<1x32x64xbf16> to vector<32x64xbf16>
      %cst_110 = arith.constant dense<0.000000e+00> : vector<36x64xf32>
      %256 = tpu.matmul %252, %255, %cst_110 {dimension_numbers = #tpu.dot_dimension_numbers<[1], [0], [0], [1], [0, 0, 1, 1], [], []>} : vector<36x32xbf16>, vector<32x64xbf16>, vector<36x64xf32> -> vector<36x64xf32>
      %257 = arith.index_cast %arg30 : i32 to index
      %c0_111 = arith.constant 0 : index
      %c0_112 = arith.constant 0 : index
      %258 = vector.load %arg22[%257, %c0_111, %c0_112] : memref<4x1x64xf32, #tpu.memory_space<vmem>>, vector<1x1x64xf32>
      %259 = vector.shape_cast %258 : vector<1x1x64xf32> to vector<1x64xf32>
      %260 = vector.broadcast %259 : vector<1x64xf32> to vector<36x64xf32>
      %261 = arith.addf %256, %260 : vector<36x64xf32>
      %cst_113 = arith.constant 5.000000e-01 : f32
      %262 = vector.broadcast %cst_113 : f32 to vector<36x64xf32>
      %263 = arith.mulf %262, %261 : vector<36x64xf32>
      %cst_114 = arith.constant 4.471500e-02 : f32
      %264 = vector.broadcast %cst_114 : f32 to vector<36x64xf32>
      %265 = arith.mulf %264, %261 : vector<36x64xf32>
      %266 = arith.mulf %265, %261 : vector<36x64xf32>
      %267 = arith.mulf %266, %261 : vector<36x64xf32>
      %268 = arith.addf %261, %267 : vector<36x64xf32>
      %cst_115 = arith.constant 0.797884583 : f32
      %269 = vector.broadcast %cst_115 : f32 to vector<36x64xf32>
      %270 = arith.mulf %269, %268 : vector<36x64xf32>
      %271 = math.tanh %270 : vector<36x64xf32>
      %cst_116 = arith.constant 1.000000e+00 : f32
      %272 = vector.broadcast %cst_116 : f32 to vector<36x64xf32>
      %273 = arith.addf %272, %271 : vector<36x64xf32>
      %274 = arith.mulf %263, %273 : vector<36x64xf32>
      %275 = arith.truncf %274 : vector<36x64xf32> to vector<36x64xbf16>
      %276 = arith.index_cast %arg30 : i32 to index
      %c0_117 = arith.constant 0 : index
      %c0_118 = arith.constant 0 : index
      %277 = vector.load %arg23[%276, %c0_117, %c0_118] : memref<4x64x32xbf16, #tpu.memory_space<vmem>>, vector<1x64x32xbf16>
      %278 = vector.shape_cast %277 : vector<1x64x32xbf16> to vector<64x32xbf16>
      %cst_119 = arith.constant dense<0.000000e+00> : vector<36x32xf32>
      %279 = tpu.matmul %275, %278, %cst_119 {dimension_numbers = #tpu.dot_dimension_numbers<[1], [0], [0], [1], [0, 0, 1, 1], [], []>} : vector<36x64xbf16>, vector<64x32xbf16>, vector<36x32xf32> -> vector<36x32xf32>
      %280 = arith.index_cast %arg30 : i32 to index
      %c0_120 = arith.constant 0 : index
      %c0_121 = arith.constant 0 : index
      %281 = vector.load %arg24[%280, %c0_120, %c0_121] : memref<4x1x32xf32, #tpu.memory_space<vmem>>, vector<1x1x32xf32>
      %282 = vector.shape_cast %281 : vector<1x1x32xf32> to vector<1x32xf32>
      %283 = vector.broadcast %282 : vector<1x32xf32> to vector<36x32xf32>
      %284 = arith.addf %279, %283 : vector<36x32xf32>
      %285 = arith.addf %225, %284 : vector<36x32xf32>
      scf.yield %285 : vector<36x32xf32>
    }
    %c2_i32_23 = arith.constant 2 : i32
    %43 = vector.extract_strided_slice %42 {offsets = [0, 0], sizes = [16, 32], strides = [1, 1]} : vector<36x32xf32> to vector<16x32xf32>
    %44 = vector.extract_strided_slice %42 {offsets = [16, 0], sizes = [20, 32], strides = [1, 1]} : vector<36x32xf32> to vector<20x32xf32>
    %c0_24 = arith.constant 0 : index
    %c0_25 = arith.constant 0 : index
    %c0_26 = arith.constant 0 : index
    %45 = vector.load %arg8[%c0_24, %c0_25, %c0_26] : memref<1x1x32xf32, #tpu.memory_space<vmem>>, vector<1x1x32xf32>
    %46 = vector.shape_cast %45 : vector<1x1x32xf32> to vector<1x32xf32>
    %47 = tpu.concatenate %44, %46 in 0 : vector<20x32xf32>, vector<1x32xf32> -> vector<21x32xf32>
    %c2_i32_27 = arith.constant 2 : i32
    %c2_i32_28 = arith.constant 2 : i32
    %48 = arith.addi %c2_i32_27, %c2_i32_28 : i32
    %c1_i32_29 = arith.constant 1 : i32
    %49 = scf.for %arg30 = %c2_i32_27 to %48 step %c1_i32_29 iter_args(%arg31 = %47) -> (vector<21x32xf32>)  : i32 {
      %85 = arith.index_cast %arg30 : i32 to index
      %c0_50 = arith.constant 0 : index
      %c0_51 = arith.constant 0 : index
      %86 = vector.load %arg9[%85, %c0_50, %c0_51] : memref<4x1x32xf32, #tpu.memory_space<vmem>>, vector<1x1x32xf32>
      %87 = vector.shape_cast %86 : vector<1x1x32xf32> to vector<1x32xf32>
      %88 = arith.index_cast %arg30 : i32 to index
      %c0_52 = arith.constant 0 : index
      %c0_53 = arith.constant 0 : index
      %89 = vector.load %arg10[%88, %c0_52, %c0_53] : memref<4x1x32xf32, #tpu.memory_space<vmem>>, vector<1x1x32xf32>
      %90 = vector.shape_cast %89 : vector<1x1x32xf32> to vector<1x32xf32>
      %cst_54 = arith.constant dense<0.000000e+00> : vector<21xf32>
      %91 = vector.multi_reduction <add>, %arg31, %cst_54 [1] : vector<21x32xf32> to vector<21xf32>
      %92 = vector.shape_cast %91 : vector<21xf32> to vector<21x1xf32>
      %cst_55 = arith.constant 3.200000e+01 : f32
      %93 = vector.broadcast %cst_55 : f32 to vector<21x1xf32>
      %94 = arith.divf %92, %93 : vector<21x1xf32>
      %95 = vector.broadcast %94 : vector<21x1xf32> to vector<21x32xf32>
      %96 = arith.subf %arg31, %95 : vector<21x32xf32>
      %97 = arith.mulf %96, %96 : vector<21x32xf32>
      %cst_56 = arith.constant dense<0.000000e+00> : vector<21xf32>
      %98 = vector.multi_reduction <add>, %97, %cst_56 [1] : vector<21x32xf32> to vector<21xf32>
      %99 = vector.shape_cast %98 : vector<21xf32> to vector<21x1xf32>
      %cst_57 = arith.constant 3.200000e+01 : f32
      %100 = vector.broadcast %cst_57 : f32 to vector<21x1xf32>
      %101 = arith.divf %99, %100 : vector<21x1xf32>
      %cst_58 = arith.constant 9.99999974E-6 : f32
      %102 = vector.broadcast %cst_58 : f32 to vector<21x1xf32>
      %103 = arith.addf %101, %102 : vector<21x1xf32>
      %104 = math.rsqrt %103 : vector<21x1xf32>
      %105 = vector.broadcast %104 : vector<21x1xf32> to vector<21x32xf32>
      %106 = arith.mulf %96, %105 : vector<21x32xf32>
      %107 = vector.broadcast %87 : vector<1x32xf32> to vector<21x32xf32>
      %108 = arith.mulf %106, %107 : vector<21x32xf32>
      %109 = vector.broadcast %90 : vector<1x32xf32> to vector<21x32xf32>
      %110 = arith.addf %108, %109 : vector<21x32xf32>
      %111 = arith.truncf %110 : vector<21x32xf32> to vector<21x32xbf16>
      %112 = arith.index_cast %arg30 : i32 to index
      %c0_59 = arith.constant 0 : index
      %c0_60 = arith.constant 0 : index
      %113 = vector.load %arg11[%112, %c0_59, %c0_60] : memref<4x32x32xbf16, #tpu.memory_space<vmem>>, vector<1x32x32xbf16>
      %114 = vector.shape_cast %113 : vector<1x32x32xbf16> to vector<32x32xbf16>
      %cst_61 = arith.constant dense<0.000000e+00> : vector<21x32xf32>
      %115 = tpu.matmul %111, %114, %cst_61 {dimension_numbers = #tpu.dot_dimension_numbers<[1], [0], [0], [1], [0, 0, 1, 1], [], []>} : vector<21x32xbf16>, vector<32x32xbf16>, vector<21x32xf32> -> vector<21x32xf32>
      %116 = arith.index_cast %arg30 : i32 to index
      %c0_62 = arith.constant 0 : index
      %c0_63 = arith.constant 0 : index
      %117 = vector.load %arg14[%116, %c0_62, %c0_63] : memref<4x1x32xf32, #tpu.memory_space<vmem>>, vector<1x1x32xf32>
      %118 = vector.shape_cast %117 : vector<1x1x32xf32> to vector<1x32xf32>
      %119 = vector.broadcast %118 : vector<1x32xf32> to vector<21x32xf32>
      %120 = arith.addf %115, %119 : vector<21x32xf32>
      %121 = arith.index_cast %arg30 : i32 to index
      %c0_64 = arith.constant 0 : index
      %c0_65 = arith.constant 0 : index
      %122 = vector.load %arg12[%121, %c0_64, %c0_65] : memref<4x32x32xbf16, #tpu.memory_space<vmem>>, vector<1x32x32xbf16>
      %123 = vector.shape_cast %122 : vector<1x32x32xbf16> to vector<32x32xbf16>
      %cst_66 = arith.constant dense<0.000000e+00> : vector<32x21xf32>
      %124 = tpu.matmul %123, %111, %cst_66 {dimension_numbers = #tpu.dot_dimension_numbers<[1], [1], [0], [0], [0, 0, 1, 0], [], []>} : vector<32x32xbf16>, vector<21x32xbf16>, vector<32x21xf32> -> vector<32x21xf32>
      %125 = arith.index_cast %arg30 : i32 to index
      %c0_67 = arith.constant 0 : index
      %c0_68 = arith.constant 0 : index
      %126 = vector.load %arg15[%125, %c0_67, %c0_68] : memref<4x32x1xf32, #tpu.memory_space<vmem>>, vector<1x32x1xf32>
      %127 = vector.shape_cast %126 : vector<1x32x1xf32> to vector<32x1xf32>
      %128 = vector.broadcast %127 : vector<32x1xf32> to vector<32x21xf32>
      %129 = arith.addf %124, %128 : vector<32x21xf32>
      %130 = arith.index_cast %arg30 : i32 to index
      %c0_69 = arith.constant 0 : index
      %c0_70 = arith.constant 0 : index
      %131 = vector.load %arg13[%130, %c0_69, %c0_70] : memref<4x32x32xbf16, #tpu.memory_space<vmem>>, vector<1x32x32xbf16>
      %132 = vector.shape_cast %131 : vector<1x32x32xbf16> to vector<32x32xbf16>
      %cst_71 = arith.constant dense<0.000000e+00> : vector<21x32xf32>
      %133 = tpu.matmul %111, %132, %cst_71 {dimension_numbers = #tpu.dot_dimension_numbers<[1], [0], [0], [1], [0, 0, 1, 1], [], []>} : vector<21x32xbf16>, vector<32x32xbf16>, vector<21x32xf32> -> vector<21x32xf32>
      %134 = arith.index_cast %arg30 : i32 to index
      %c0_72 = arith.constant 0 : index
      %c0_73 = arith.constant 0 : index
      %135 = vector.load %arg16[%134, %c0_72, %c0_73] : memref<4x1x32xf32, #tpu.memory_space<vmem>>, vector<1x1x32xf32>
      %136 = vector.shape_cast %135 : vector<1x1x32xf32> to vector<1x32xf32>
      %137 = vector.broadcast %136 : vector<1x32xf32> to vector<21x32xf32>
      %138 = arith.addf %133, %137 : vector<21x32xf32>
      %139 = arith.truncf %120 : vector<21x32xf32> to vector<21x32xbf16>
      %140 = arith.truncf %129 : vector<32x21xf32> to vector<32x21xbf16>
      %141 = arith.truncf %138 : vector<21x32xf32> to vector<21x32xbf16>
      %142 = vector.extract_strided_slice %139 {offsets = [0, 0], sizes = [21, 8], strides = [1, 1]} : vector<21x32xbf16> to vector<21x8xbf16>
      %143 = vector.extract_strided_slice %140 {offsets = [0, 0], sizes = [8, 21], strides = [1, 1]} : vector<32x21xbf16> to vector<8x21xbf16>
      %cst_74 = arith.constant dense<0.000000e+00> : vector<21x21xf32>
      %144 = tpu.matmul %142, %143, %cst_74 {dimension_numbers = #tpu.dot_dimension_numbers<[1], [0], [0], [1], [0, 0, 1, 1], [], []>} : vector<21x8xbf16>, vector<8x21xbf16>, vector<21x21xf32> -> vector<21x21xf32>
      %cst_75 = arith.constant 0.353553385 : f32
      %145 = vector.broadcast %cst_75 : f32 to vector<21x21xf32>
      %146 = arith.mulf %144, %145 : vector<21x21xf32>
      %cst_76 = arith.constant dense<0xFF800000> : vector<21xf32>
      %147 = vector.multi_reduction <maximumf>, %146, %cst_76 [1] : vector<21x21xf32> to vector<21xf32>
      %148 = vector.shape_cast %147 : vector<21xf32> to vector<21x1xf32>
      %149 = vector.broadcast %148 : vector<21x1xf32> to vector<21x21xf32>
      %150 = arith.subf %146, %149 : vector<21x21xf32>
      %151 = math.exp %150 : vector<21x21xf32>
      %cst_77 = arith.constant dense<0.000000e+00> : vector<21xf32>
      %152 = vector.multi_reduction <add>, %151, %cst_77 [1] : vector<21x21xf32> to vector<21xf32>
      %153 = vector.shape_cast %152 : vector<21xf32> to vector<21x1xf32>
      %154 = tpu.reciprocal %153 {approx = true} : vector<21x1xf32> -> vector<21x1xf32>
      %155 = vector.broadcast %154 : vector<21x1xf32> to vector<21x21xf32>
      %156 = arith.mulf %151, %155 : vector<21x21xf32>
      %157 = arith.truncf %156 : vector<21x21xf32> to vector<21x21xbf16>
      %158 = vector.extract_strided_slice %141 {offsets = [0, 0], sizes = [21, 8], strides = [1, 1]} : vector<21x32xbf16> to vector<21x8xbf16>
      %cst_78 = arith.constant dense<0.000000e+00> : vector<21x8xf32>
      %159 = tpu.matmul %157, %158, %cst_78 {dimension_numbers = #tpu.dot_dimension_numbers<[1], [0], [0], [1], [0, 0, 1, 1], [], []>} : vector<21x21xbf16>, vector<21x8xbf16>, vector<21x8xf32> -> vector<21x8xf32>
      %160 = vector.extract_strided_slice %139 {offsets = [0, 8], sizes = [21, 8], strides = [1, 1]} : vector<21x32xbf16> to vector<21x8xbf16>
      %161 = vector.extract_strided_slice %140 {offsets = [8, 0], sizes = [8, 21], strides = [1, 1]} : vector<32x21xbf16> to vector<8x21xbf16>
      %cst_79 = arith.constant dense<0.000000e+00> : vector<21x21xf32>
      %162 = tpu.matmul %160, %161, %cst_79 {dimension_numbers = #tpu.dot_dimension_numbers<[1], [0], [0], [1], [0, 0, 1, 1], [], []>} : vector<21x8xbf16>, vector<8x21xbf16>, vector<21x21xf32> -> vector<21x21xf32>
      %cst_80 = arith.constant 0.353553385 : f32
      %163 = vector.broadcast %cst_80 : f32 to vector<21x21xf32>
      %164 = arith.mulf %162, %163 : vector<21x21xf32>
      %cst_81 = arith.constant dense<0xFF800000> : vector<21xf32>
      %165 = vector.multi_reduction <maximumf>, %164, %cst_81 [1] : vector<21x21xf32> to vector<21xf32>
      %166 = vector.shape_cast %165 : vector<21xf32> to vector<21x1xf32>
      %167 = vector.broadcast %166 : vector<21x1xf32> to vector<21x21xf32>
      %168 = arith.subf %164, %167 : vector<21x21xf32>
      %169 = math.exp %168 : vector<21x21xf32>
      %cst_82 = arith.constant dense<0.000000e+00> : vector<21xf32>
      %170 = vector.multi_reduction <add>, %169, %cst_82 [1] : vector<21x21xf32> to vector<21xf32>
      %171 = vector.shape_cast %170 : vector<21xf32> to vector<21x1xf32>
      %172 = tpu.reciprocal %171 {approx = true} : vector<21x1xf32> -> vector<21x1xf32>
      %173 = vector.broadcast %172 : vector<21x1xf32> to vector<21x21xf32>
      %174 = arith.mulf %169, %173 : vector<21x21xf32>
      %175 = arith.truncf %174 : vector<21x21xf32> to vector<21x21xbf16>
      %176 = vector.extract_strided_slice %141 {offsets = [0, 8], sizes = [21, 8], strides = [1, 1]} : vector<21x32xbf16> to vector<21x8xbf16>
      %cst_83 = arith.constant dense<0.000000e+00> : vector<21x8xf32>
      %177 = tpu.matmul %175, %176, %cst_83 {dimension_numbers = #tpu.dot_dimension_numbers<[1], [0], [0], [1], [0, 0, 1, 1], [], []>} : vector<21x21xbf16>, vector<21x8xbf16>, vector<21x8xf32> -> vector<21x8xf32>
      %178 = vector.extract_strided_slice %139 {offsets = [0, 16], sizes = [21, 8], strides = [1, 1]} : vector<21x32xbf16> to vector<21x8xbf16>
      %179 = vector.extract_strided_slice %140 {offsets = [16, 0], sizes = [8, 21], strides = [1, 1]} : vector<32x21xbf16> to vector<8x21xbf16>
      %cst_84 = arith.constant dense<0.000000e+00> : vector<21x21xf32>
      %180 = tpu.matmul %178, %179, %cst_84 {dimension_numbers = #tpu.dot_dimension_numbers<[1], [0], [0], [1], [0, 0, 1, 1], [], []>} : vector<21x8xbf16>, vector<8x21xbf16>, vector<21x21xf32> -> vector<21x21xf32>
      %cst_85 = arith.constant 0.353553385 : f32
      %181 = vector.broadcast %cst_85 : f32 to vector<21x21xf32>
      %182 = arith.mulf %180, %181 : vector<21x21xf32>
      %cst_86 = arith.constant dense<0xFF800000> : vector<21xf32>
      %183 = vector.multi_reduction <maximumf>, %182, %cst_86 [1] : vector<21x21xf32> to vector<21xf32>
      %184 = vector.shape_cast %183 : vector<21xf32> to vector<21x1xf32>
      %185 = vector.broadcast %184 : vector<21x1xf32> to vector<21x21xf32>
      %186 = arith.subf %182, %185 : vector<21x21xf32>
      %187 = math.exp %186 : vector<21x21xf32>
      %cst_87 = arith.constant dense<0.000000e+00> : vector<21xf32>
      %188 = vector.multi_reduction <add>, %187, %cst_87 [1] : vector<21x21xf32> to vector<21xf32>
      %189 = vector.shape_cast %188 : vector<21xf32> to vector<21x1xf32>
      %190 = tpu.reciprocal %189 {approx = true} : vector<21x1xf32> -> vector<21x1xf32>
      %191 = vector.broadcast %190 : vector<21x1xf32> to vector<21x21xf32>
      %192 = arith.mulf %187, %191 : vector<21x21xf32>
      %193 = arith.truncf %192 : vector<21x21xf32> to vector<21x21xbf16>
      %194 = vector.extract_strided_slice %141 {offsets = [0, 16], sizes = [21, 8], strides = [1, 1]} : vector<21x32xbf16> to vector<21x8xbf16>
      %cst_88 = arith.constant dense<0.000000e+00> : vector<21x8xf32>
      %195 = tpu.matmul %193, %194, %cst_88 {dimension_numbers = #tpu.dot_dimension_numbers<[1], [0], [0], [1], [0, 0, 1, 1], [], []>} : vector<21x21xbf16>, vector<21x8xbf16>, vector<21x8xf32> -> vector<21x8xf32>
      %196 = vector.extract_strided_slice %139 {offsets = [0, 24], sizes = [21, 8], strides = [1, 1]} : vector<21x32xbf16> to vector<21x8xbf16>
      %197 = vector.extract_strided_slice %140 {offsets = [24, 0], sizes = [8, 21], strides = [1, 1]} : vector<32x21xbf16> to vector<8x21xbf16>
      %cst_89 = arith.constant dense<0.000000e+00> : vector<21x21xf32>
      %198 = tpu.matmul %196, %197, %cst_89 {dimension_numbers = #tpu.dot_dimension_numbers<[1], [0], [0], [1], [0, 0, 1, 1], [], []>} : vector<21x8xbf16>, vector<8x21xbf16>, vector<21x21xf32> -> vector<21x21xf32>
      %cst_90 = arith.constant 0.353553385 : f32
      %199 = vector.broadcast %cst_90 : f32 to vector<21x21xf32>
      %200 = arith.mulf %198, %199 : vector<21x21xf32>
      %cst_91 = arith.constant dense<0xFF800000> : vector<21xf32>
      %201 = vector.multi_reduction <maximumf>, %200, %cst_91 [1] : vector<21x21xf32> to vector<21xf32>
      %202 = vector.shape_cast %201 : vector<21xf32> to vector<21x1xf32>
      %203 = vector.broadcast %202 : vector<21x1xf32> to vector<21x21xf32>
      %204 = arith.subf %200, %203 : vector<21x21xf32>
      %205 = math.exp %204 : vector<21x21xf32>
      %cst_92 = arith.constant dense<0.000000e+00> : vector<21xf32>
      %206 = vector.multi_reduction <add>, %205, %cst_92 [1] : vector<21x21xf32> to vector<21xf32>
      %207 = vector.shape_cast %206 : vector<21xf32> to vector<21x1xf32>
      %208 = tpu.reciprocal %207 {approx = true} : vector<21x1xf32> -> vector<21x1xf32>
      %209 = vector.broadcast %208 : vector<21x1xf32> to vector<21x21xf32>
      %210 = arith.mulf %205, %209 : vector<21x21xf32>
      %211 = arith.truncf %210 : vector<21x21xf32> to vector<21x21xbf16>
      %212 = vector.extract_strided_slice %141 {offsets = [0, 24], sizes = [21, 8], strides = [1, 1]} : vector<21x32xbf16> to vector<21x8xbf16>
      %cst_93 = arith.constant dense<0.000000e+00> : vector<21x8xf32>
      %213 = tpu.matmul %211, %212, %cst_93 {dimension_numbers = #tpu.dot_dimension_numbers<[1], [0], [0], [1], [0, 0, 1, 1], [], []>} : vector<21x21xbf16>, vector<21x8xbf16>, vector<21x8xf32> -> vector<21x8xf32>
      %214 = tpu.concatenate %159, %177, %195, %213 in 1 : vector<21x8xf32>, vector<21x8xf32>, vector<21x8xf32>, vector<21x8xf32> -> vector<21x32xf32>
      %215 = arith.truncf %214 : vector<21x32xf32> to vector<21x32xbf16>
      %216 = arith.index_cast %arg30 : i32 to index
      %c0_94 = arith.constant 0 : index
      %c0_95 = arith.constant 0 : index
      %217 = vector.load %arg17[%216, %c0_94, %c0_95] : memref<4x32x32xbf16, #tpu.memory_space<vmem>>, vector<1x32x32xbf16>
      %218 = vector.shape_cast %217 : vector<1x32x32xbf16> to vector<32x32xbf16>
      %cst_96 = arith.constant dense<0.000000e+00> : vector<21x32xf32>
      %219 = tpu.matmul %215, %218, %cst_96 {dimension_numbers = #tpu.dot_dimension_numbers<[1], [0], [0], [1], [0, 0, 1, 1], [], []>} : vector<21x32xbf16>, vector<32x32xbf16>, vector<21x32xf32> -> vector<21x32xf32>
      %220 = arith.index_cast %arg30 : i32 to index
      %c0_97 = arith.constant 0 : index
      %c0_98 = arith.constant 0 : index
      %221 = vector.load %arg18[%220, %c0_97, %c0_98] : memref<4x1x32xf32, #tpu.memory_space<vmem>>, vector<1x1x32xf32>
      %222 = vector.shape_cast %221 : vector<1x1x32xf32> to vector<1x32xf32>
      %223 = vector.broadcast %222 : vector<1x32xf32> to vector<21x32xf32>
      %224 = arith.addf %219, %223 : vector<21x32xf32>
      %225 = arith.addf %arg31, %224 : vector<21x32xf32>
      %226 = arith.index_cast %arg30 : i32 to index
      %c0_99 = arith.constant 0 : index
      %c0_100 = arith.constant 0 : index
      %227 = vector.load %arg19[%226, %c0_99, %c0_100] : memref<4x1x32xf32, #tpu.memory_space<vmem>>, vector<1x1x32xf32>
      %228 = vector.shape_cast %227 : vector<1x1x32xf32> to vector<1x32xf32>
      %229 = arith.index_cast %arg30 : i32 to index
      %c0_101 = arith.constant 0 : index
      %c0_102 = arith.constant 0 : index
      %230 = vector.load %arg20[%229, %c0_101, %c0_102] : memref<4x1x32xf32, #tpu.memory_space<vmem>>, vector<1x1x32xf32>
      %231 = vector.shape_cast %230 : vector<1x1x32xf32> to vector<1x32xf32>
      %cst_103 = arith.constant dense<0.000000e+00> : vector<21xf32>
      %232 = vector.multi_reduction <add>, %225, %cst_103 [1] : vector<21x32xf32> to vector<21xf32>
      %233 = vector.shape_cast %232 : vector<21xf32> to vector<21x1xf32>
      %cst_104 = arith.constant 3.200000e+01 : f32
      %234 = vector.broadcast %cst_104 : f32 to vector<21x1xf32>
      %235 = arith.divf %233, %234 : vector<21x1xf32>
      %236 = vector.broadcast %235 : vector<21x1xf32> to vector<21x32xf32>
      %237 = arith.subf %225, %236 : vector<21x32xf32>
      %238 = arith.mulf %237, %237 : vector<21x32xf32>
      %cst_105 = arith.constant dense<0.000000e+00> : vector<21xf32>
      %239 = vector.multi_reduction <add>, %238, %cst_105 [1] : vector<21x32xf32> to vector<21xf32>
      %240 = vector.shape_cast %239 : vector<21xf32> to vector<21x1xf32>
      %cst_106 = arith.constant 3.200000e+01 : f32
      %241 = vector.broadcast %cst_106 : f32 to vector<21x1xf32>
      %242 = arith.divf %240, %241 : vector<21x1xf32>
      %cst_107 = arith.constant 9.99999974E-6 : f32
      %243 = vector.broadcast %cst_107 : f32 to vector<21x1xf32>
      %244 = arith.addf %242, %243 : vector<21x1xf32>
      %245 = math.rsqrt %244 : vector<21x1xf32>
      %246 = vector.broadcast %245 : vector<21x1xf32> to vector<21x32xf32>
      %247 = arith.mulf %237, %246 : vector<21x32xf32>
      %248 = vector.broadcast %228 : vector<1x32xf32> to vector<21x32xf32>
      %249 = arith.mulf %247, %248 : vector<21x32xf32>
      %250 = vector.broadcast %231 : vector<1x32xf32> to vector<21x32xf32>
      %251 = arith.addf %249, %250 : vector<21x32xf32>
      %252 = arith.truncf %251 : vector<21x32xf32> to vector<21x32xbf16>
      %253 = arith.index_cast %arg30 : i32 to index
      %c0_108 = arith.constant 0 : index
      %c0_109 = arith.constant 0 : index
      %254 = vector.load %arg21[%253, %c0_108, %c0_109] : memref<4x32x64xbf16, #tpu.memory_space<vmem>>, vector<1x32x64xbf16>
      %255 = vector.shape_cast %254 : vector<1x32x64xbf16> to vector<32x64xbf16>
      %cst_110 = arith.constant dense<0.000000e+00> : vector<21x64xf32>
      %256 = tpu.matmul %252, %255, %cst_110 {dimension_numbers = #tpu.dot_dimension_numbers<[1], [0], [0], [1], [0, 0, 1, 1], [], []>} : vector<21x32xbf16>, vector<32x64xbf16>, vector<21x64xf32> -> vector<21x64xf32>
      %257 = arith.index_cast %arg30 : i32 to index
      %c0_111 = arith.constant 0 : index
      %c0_112 = arith.constant 0 : index
      %258 = vector.load %arg22[%257, %c0_111, %c0_112] : memref<4x1x64xf32, #tpu.memory_space<vmem>>, vector<1x1x64xf32>
      %259 = vector.shape_cast %258 : vector<1x1x64xf32> to vector<1x64xf32>
      %260 = vector.broadcast %259 : vector<1x64xf32> to vector<21x64xf32>
      %261 = arith.addf %256, %260 : vector<21x64xf32>
      %cst_113 = arith.constant 5.000000e-01 : f32
      %262 = vector.broadcast %cst_113 : f32 to vector<21x64xf32>
      %263 = arith.mulf %262, %261 : vector<21x64xf32>
      %cst_114 = arith.constant 4.471500e-02 : f32
      %264 = vector.broadcast %cst_114 : f32 to vector<21x64xf32>
      %265 = arith.mulf %264, %261 : vector<21x64xf32>
      %266 = arith.mulf %265, %261 : vector<21x64xf32>
      %267 = arith.mulf %266, %261 : vector<21x64xf32>
      %268 = arith.addf %261, %267 : vector<21x64xf32>
      %cst_115 = arith.constant 0.797884583 : f32
      %269 = vector.broadcast %cst_115 : f32 to vector<21x64xf32>
      %270 = arith.mulf %269, %268 : vector<21x64xf32>
      %271 = math.tanh %270 : vector<21x64xf32>
      %cst_116 = arith.constant 1.000000e+00 : f32
      %272 = vector.broadcast %cst_116 : f32 to vector<21x64xf32>
      %273 = arith.addf %272, %271 : vector<21x64xf32>
      %274 = arith.mulf %263, %273 : vector<21x64xf32>
      %275 = arith.truncf %274 : vector<21x64xf32> to vector<21x64xbf16>
      %276 = arith.index_cast %arg30 : i32 to index
      %c0_117 = arith.constant 0 : index
      %c0_118 = arith.constant 0 : index
      %277 = vector.load %arg23[%276, %c0_117, %c0_118] : memref<4x64x32xbf16, #tpu.memory_space<vmem>>, vector<1x64x32xbf16>
      %278 = vector.shape_cast %277 : vector<1x64x32xbf16> to vector<64x32xbf16>
      %cst_119 = arith.constant dense<0.000000e+00> : vector<21x32xf32>
      %279 = tpu.matmul %275, %278, %cst_119 {dimension_numbers = #tpu.dot_dimension_numbers<[1], [0], [0], [1], [0, 0, 1, 1], [], []>} : vector<21x64xbf16>, vector<64x32xbf16>, vector<21x32xf32> -> vector<21x32xf32>
      %280 = arith.index_cast %arg30 : i32 to index
      %c0_120 = arith.constant 0 : index
      %c0_121 = arith.constant 0 : index
      %281 = vector.load %arg24[%280, %c0_120, %c0_121] : memref<4x1x32xf32, #tpu.memory_space<vmem>>, vector<1x1x32xf32>
      %282 = vector.shape_cast %281 : vector<1x1x32xf32> to vector<1x32xf32>
      %283 = vector.broadcast %282 : vector<1x32xf32> to vector<21x32xf32>
      %284 = arith.addf %279, %283 : vector<21x32xf32>
      %285 = arith.addf %225, %284 : vector<21x32xf32>
      scf.yield %285 : vector<21x32xf32>
    }
    %c2_i32_30 = arith.constant 2 : i32
    %c0_31 = arith.constant 0 : index
    %c0_32 = arith.constant 0 : index
    %50 = vector.load %arg25[%c0_31, %c0_32] : memref<1x32xf32, #tpu.memory_space<vmem>>, vector<1x32xf32>
    %c0_33 = arith.constant 0 : index
    %c0_34 = arith.constant 0 : index
    %51 = vector.load %arg26[%c0_33, %c0_34] : memref<1x32xf32, #tpu.memory_space<vmem>>, vector<1x32xf32>
    %cst_35 = arith.constant dense<0.000000e+00> : vector<21xf32>
    %52 = vector.multi_reduction <add>, %49, %cst_35 [1] : vector<21x32xf32> to vector<21xf32>
    %53 = vector.shape_cast %52 : vector<21xf32> to vector<21x1xf32>
    %cst_36 = arith.constant 3.200000e+01 : f32
    %54 = vector.broadcast %cst_36 : f32 to vector<21x1xf32>
    %55 = arith.divf %53, %54 : vector<21x1xf32>
    %56 = vector.broadcast %55 : vector<21x1xf32> to vector<21x32xf32>
    %57 = arith.subf %49, %56 : vector<21x32xf32>
    %58 = arith.mulf %57, %57 : vector<21x32xf32>
    %cst_37 = arith.constant dense<0.000000e+00> : vector<21xf32>
    %59 = vector.multi_reduction <add>, %58, %cst_37 [1] : vector<21x32xf32> to vector<21xf32>
    %60 = vector.shape_cast %59 : vector<21xf32> to vector<21x1xf32>
    %cst_38 = arith.constant 3.200000e+01 : f32
    %61 = vector.broadcast %cst_38 : f32 to vector<21x1xf32>
    %62 = arith.divf %60, %61 : vector<21x1xf32>
    %cst_39 = arith.constant 9.99999974E-6 : f32
    %63 = vector.broadcast %cst_39 : f32 to vector<21x1xf32>
    %64 = arith.addf %62, %63 : vector<21x1xf32>
    %65 = math.rsqrt %64 : vector<21x1xf32>
    %66 = vector.broadcast %65 : vector<21x1xf32> to vector<21x32xf32>
    %67 = arith.mulf %57, %66 : vector<21x32xf32>
    %68 = vector.broadcast %50 : vector<1x32xf32> to vector<21x32xf32>
    %69 = arith.mulf %67, %68 : vector<21x32xf32>
    %70 = vector.broadcast %51 : vector<1x32xf32> to vector<21x32xf32>
    %71 = arith.addf %69, %70 : vector<21x32xf32>
    %72 = vector.extract_strided_slice %71 {offsets = [20, 0], sizes = [1, 32], strides = [1, 1]} : vector<21x32xf32> to vector<1x32xf32>
    %73 = arith.truncf %43 : vector<16x32xf32> to vector<16x32xbf16>
    %c0_40 = arith.constant 0 : index
    %c0_41 = arith.constant 0 : index
    %74 = vector.load %arg27[%c0_40, %c0_41] : memref<32x32xbf16, #tpu.memory_space<vmem>>, vector<32x32xbf16>
    %cst_42 = arith.constant dense<0.000000e+00> : vector<16x32xf32>
    %75 = tpu.matmul %73, %74, %cst_42 {dimension_numbers = #tpu.dot_dimension_numbers<[1], [0], [0], [1], [0, 0, 1, 1], [], []>} : vector<16x32xbf16>, vector<32x32xbf16>, vector<16x32xf32> -> vector<16x32xf32>
    %76 = arith.truncf %72 : vector<1x32xf32> to vector<1x32xbf16>
    %c0_43 = arith.constant 0 : index
    %c0_44 = arith.constant 0 : index
    %77 = vector.load %arg28[%c0_43, %c0_44] : memref<32x32xbf16, #tpu.memory_space<vmem>>, vector<32x32xbf16>
    %cst_45 = arith.constant dense<0.000000e+00> : vector<1x32xf32>
    %78 = tpu.matmul %76, %77, %cst_45 {dimension_numbers = #tpu.dot_dimension_numbers<[1], [0], [0], [1], [0, 0, 1, 1], [], []>} : vector<1x32xbf16>, vector<32x32xbf16>, vector<1x32xf32> -> vector<1x32xf32>
    %79 = arith.truncf %78 : vector<1x32xf32> to vector<1x32xbf16>
    %80 = arith.truncf %75 : vector<16x32xf32> to vector<16x32xbf16>
    %cst_46 = arith.constant dense<0.000000e+00> : vector<1x16xf32>
    %81 = tpu.matmul %79, %80, %cst_46 {dimension_numbers = #tpu.dot_dimension_numbers<[1], [1], [0], [0], [0, 0, 1, 0], [], []>} : vector<1x32xbf16>, vector<16x32xbf16>, vector<1x16xf32> -> vector<1x16xf32>
    %c0_47 = arith.constant 0 : index
    %c0_48 = arith.constant 0 : index
    %c0_49 = arith.constant 0 : index
    %82 = vector.load %arg29[%c0_47, %c0_48, %c0_49] : memref<1x1x16xf32, #tpu.memory_space<vmem>>, vector<1x1x16xf32>
    %83 = vector.shape_cast %82 : vector<1x1x16xf32> to vector<1x16xf32>
    %84 = vector.shape_cast %81 : vector<1x16xf32> to vector<1x1x16xf32>
    tpu.vector_store %arg29[%c0_47, %c0_48, %c0_49], %84 {strides = array<i32>} : memref<1x1x16xf32, #tpu.memory_space<vmem>>, vector<1x1x16xf32>,
    return
  }
  func.func @transform_0(%arg0: i32) -> (i32, i32, i32) {
    %c0_i32 = arith.constant 0 : i32
    %c0_i32_0 = arith.constant 0 : i32
    %c0_i32_1 = arith.constant 0 : i32
    return %arg0, %c0_i32, %c0_i32_0 : i32, i32, i32
  }
  func.func @transform_1(%arg0: i32) -> (i32, i32, i32) {
    %c0_i32 = arith.constant 0 : i32
    %c0_i32_0 = arith.constant 0 : i32
    %c0_i32_1 = arith.constant 0 : i32
    return %arg0, %c0_i32, %c0_i32_0 : i32, i32, i32
  }
  func.func @transform_2(%arg0: i32) -> (i32, i32, i32) {
    %c0_i32 = arith.constant 0 : i32
    %c0_i32_0 = arith.constant 0 : i32
    %c0_i32_1 = arith.constant 0 : i32
    return %arg0, %c0_i32, %c0_i32_0 : i32, i32, i32
  }
  func.func @transform_3(%arg0: i32) -> (i32, i32) {
    %c0_i32 = arith.constant 0 : i32
    %c0_i32_0 = arith.constant 0 : i32
    %c0_i32_1 = arith.constant 0 : i32
    return %c0_i32, %c0_i32_0 : i32, i32
  }
  func.func @transform_4(%arg0: i32) -> (i32, i32) {
    %c0_i32 = arith.constant 0 : i32
    %c0_i32_0 = arith.constant 0 : i32
    %c0_i32_1 = arith.constant 0 : i32
    return %c0_i32, %c0_i32_0 : i32, i32
  }
  func.func @transform_5(%arg0: i32) -> (i32, i32) {
    %c0_i32 = arith.constant 0 : i32
    %c0_i32_0 = arith.constant 0 : i32
    %c0_i32_1 = arith.constant 0 : i32
    return %c0_i32, %c0_i32_0 : i32, i32
  }
  func.func @transform_6(%arg0: i32) -> (i32, i32) {
    %c0_i32 = arith.constant 0 : i32
    %c0_i32_0 = arith.constant 0 : i32
    %c0_i32_1 = arith.constant 0 : i32
    return %c0_i32, %c0_i32_0 : i32, i32
  }
  func.func @transform_7(%arg0: i32) -> (i32, i32, i32) {
    %c0_i32 = arith.constant 0 : i32
    %c0_i32_0 = arith.constant 0 : i32
    %c0_i32_1 = arith.constant 0 : i32
    %c0_i32_2 = arith.constant 0 : i32
    return %c0_i32, %c0_i32_0, %c0_i32_1 : i32, i32, i32
  }
  func.func @transform_8(%arg0: i32) -> (i32, i32, i32) {
    %c0_i32 = arith.constant 0 : i32
    %c0_i32_0 = arith.constant 0 : i32
    %c0_i32_1 = arith.constant 0 : i32
    %c0_i32_2 = arith.constant 0 : i32
    return %c0_i32, %c0_i32_0, %c0_i32_1 : i32, i32, i32
  }
  func.func @transform_9(%arg0: i32) -> (i32, i32, i32) {
    %c0_i32 = arith.constant 0 : i32
    %c0_i32_0 = arith.constant 0 : i32
    %c0_i32_1 = arith.constant 0 : i32
    %c0_i32_2 = arith.constant 0 : i32
    return %c0_i32, %c0_i32_0, %c0_i32_1 : i32, i32, i32
  }
  func.func @transform_10(%arg0: i32) -> (i32, i32, i32) {
    %c0_i32 = arith.constant 0 : i32
    %c0_i32_0 = arith.constant 0 : i32
    %c0_i32_1 = arith.constant 0 : i32
    %c0_i32_2 = arith.constant 0 : i32
    return %c0_i32, %c0_i32_0, %c0_i32_1 : i32, i32, i32
  }
  func.func @transform_11(%arg0: i32) -> (i32, i32, i32) {
    %c0_i32 = arith.constant 0 : i32
    %c0_i32_0 = arith.constant 0 : i32
    %c0_i32_1 = arith.constant 0 : i32
    %c0_i32_2 = arith.constant 0 : i32
    return %c0_i32, %c0_i32_0, %c0_i32_1 : i32, i32, i32
  }
  func.func @transform_12(%arg0: i32) -> (i32, i32, i32) {
    %c0_i32 = arith.constant 0 : i32
    %c0_i32_0 = arith.constant 0 : i32
    %c0_i32_1 = arith.constant 0 : i32
    %c0_i32_2 = arith.constant 0 : i32
    return %c0_i32, %c0_i32_0, %c0_i32_1 : i32, i32, i32
  }
  func.func @transform_13(%arg0: i32) -> (i32, i32, i32) {
    %c0_i32 = arith.constant 0 : i32
    %c0_i32_0 = arith.constant 0 : i32
    %c0_i32_1 = arith.constant 0 : i32
    %c0_i32_2 = arith.constant 0 : i32
    return %c0_i32, %c0_i32_0, %c0_i32_1 : i32, i32, i32
  }
  func.func @transform_14(%arg0: i32) -> (i32, i32, i32) {
    %c0_i32 = arith.constant 0 : i32
    %c0_i32_0 = arith.constant 0 : i32
    %c0_i32_1 = arith.constant 0 : i32
    %c0_i32_2 = arith.constant 0 : i32
    return %c0_i32, %c0_i32_0, %c0_i32_1 : i32, i32, i32
  }
  func.func @transform_15(%arg0: i32) -> (i32, i32, i32) {
    %c0_i32 = arith.constant 0 : i32
    %c0_i32_0 = arith.constant 0 : i32
    %c0_i32_1 = arith.constant 0 : i32
    %c0_i32_2 = arith.constant 0 : i32
    return %c0_i32, %c0_i32_0, %c0_i32_1 : i32, i32, i32
  }
  func.func @transform_16(%arg0: i32) -> (i32, i32, i32) {
    %c0_i32 = arith.constant 0 : i32
    %c0_i32_0 = arith.constant 0 : i32
    %c0_i32_1 = arith.constant 0 : i32
    %c0_i32_2 = arith.constant 0 : i32
    return %c0_i32, %c0_i32_0, %c0_i32_1 : i32, i32, i32
  }
  func.func @transform_17(%arg0: i32) -> (i32, i32, i32) {
    %c0_i32 = arith.constant 0 : i32
    %c0_i32_0 = arith.constant 0 : i32
    %c0_i32_1 = arith.constant 0 : i32
    %c0_i32_2 = arith.constant 0 : i32
    return %c0_i32, %c0_i32_0, %c0_i32_1 : i32, i32, i32
  }
  func.func @transform_18(%arg0: i32) -> (i32, i32, i32) {
    %c0_i32 = arith.constant 0 : i32
    %c0_i32_0 = arith.constant 0 : i32
    %c0_i32_1 = arith.constant 0 : i32
    %c0_i32_2 = arith.constant 0 : i32
    return %c0_i32, %c0_i32_0, %c0_i32_1 : i32, i32, i32
  }
  func.func @transform_19(%arg0: i32) -> (i32, i32, i32) {
    %c0_i32 = arith.constant 0 : i32
    %c0_i32_0 = arith.constant 0 : i32
    %c0_i32_1 = arith.constant 0 : i32
    %c0_i32_2 = arith.constant 0 : i32
    return %c0_i32, %c0_i32_0, %c0_i32_1 : i32, i32, i32
  }
  func.func @transform_20(%arg0: i32) -> (i32, i32, i32) {
    %c0_i32 = arith.constant 0 : i32
    %c0_i32_0 = arith.constant 0 : i32
    %c0_i32_1 = arith.constant 0 : i32
    %c0_i32_2 = arith.constant 0 : i32
    return %c0_i32, %c0_i32_0, %c0_i32_1 : i32, i32, i32
  }
  func.func @transform_21(%arg0: i32) -> (i32, i32, i32) {
    %c0_i32 = arith.constant 0 : i32
    %c0_i32_0 = arith.constant 0 : i32
    %c0_i32_1 = arith.constant 0 : i32
    %c0_i32_2 = arith.constant 0 : i32
    return %c0_i32, %c0_i32_0, %c0_i32_1 : i32, i32, i32
  }
  func.func @transform_22(%arg0: i32) -> (i32, i32, i32) {
    %c0_i32 = arith.constant 0 : i32
    %c0_i32_0 = arith.constant 0 : i32
    %c0_i32_1 = arith.constant 0 : i32
    %c0_i32_2 = arith.constant 0 : i32
    return %c0_i32, %c0_i32_0, %c0_i32_1 : i32, i32, i32
  }
  func.func @transform_23(%arg0: i32) -> (i32, i32, i32) {
    %c0_i32 = arith.constant 0 : i32
    %c0_i32_0 = arith.constant 0 : i32
    %c0_i32_1 = arith.constant 0 : i32
    %c0_i32_2 = arith.constant 0 : i32
    return %c0_i32, %c0_i32_0, %c0_i32_1 : i32, i32, i32
  }
  func.func @transform_24(%arg0: i32) -> (i32, i32) {
    %c0_i32 = arith.constant 0 : i32
    %c0_i32_0 = arith.constant 0 : i32
    %c0_i32_1 = arith.constant 0 : i32
    return %c0_i32, %c0_i32_0 : i32, i32
  }
  func.func @transform_25(%arg0: i32) -> (i32, i32) {
    %c0_i32 = arith.constant 0 : i32
    %c0_i32_0 = arith.constant 0 : i32
    %c0_i32_1 = arith.constant 0 : i32
    return %c0_i32, %c0_i32_0 : i32, i32
  }
  func.func @transform_26(%arg0: i32) -> (i32, i32) {
    %c0_i32 = arith.constant 0 : i32
    %c0_i32_0 = arith.constant 0 : i32
    %c0_i32_1 = arith.constant 0 : i32
    return %c0_i32, %c0_i32_0 : i32, i32
  }
  func.func @transform_27(%arg0: i32) -> (i32, i32) {
    %c0_i32 = arith.constant 0 : i32
    %c0_i32_0 = arith.constant 0 : i32
    %c0_i32_1 = arith.constant 0 : i32
    return %c0_i32, %c0_i32_0 : i32, i32
  }
  func.func @transform_28(%arg0: i32) -> (i32, i32, i32) {
    %c0_i32 = arith.constant 0 : i32
    %c0_i32_0 = arith.constant 0 : i32
    %c0_i32_1 = arith.constant 0 : i32
    return %arg0, %c0_i32, %c0_i32_0 : i32, i32, i32
  }
}

</mosaic_0001>

<llo_original>
// kernel: tpu_custom_call.1
$region0: #{tpu_custom_call.1}
  #allocation0 [shape = 'u32[]', space=smem, size = 0x4, offset = 0x4, fixed_abs, tag = 'smem constant byte address 0x4 - core index']
  #allocation1 [shape = 'u32[144,128]{1,0:T(1,128)}', space=vmem, size = 0x12000, scoped, tag = 'internal scratch']
  %s0 = inlined_call_operand.vmem [shape: f32[2,16,48], index: 0, kind: input, shape index: {}]
  %s1 = inlined_call_operand.vmem [shape: f32[2,20,24], index: 1, kind: input, shape index: {}]
  %s2 = inlined_call_operand.vmem [shape: s32[2,20,1], index: 2, kind: input, shape index: {}]
  %s3 = inlined_call_operand.vmem [shape: bf16[48,32], index: 3, kind: input, shape index: {}]
  %s4 = inlined_call_operand.hbm [shape: f32[1,32], index: 4, kind: input, shape index: {}]
  %s5 = inlined_call_operand.vmem [shape: bf16[24,32], index: 5, kind: input, shape index: {}]
  %s6 = inlined_call_operand.hbm [shape: f32[1,32], index: 6, kind: input, shape index: {}]
  %s7 = inlined_call_operand.hbm [shape: f32[1,1,32], index: 7, kind: input, shape index: {}]
  %s8 = inlined_call_operand.vmem [shape: f32[4,1,32], index: 8, kind: input, shape index: {}]
  %s9 = inlined_call_operand.vmem [shape: f32[4,1,32], index: 9, kind: input, shape index: {}]
  %s10 = inlined_call_operand.vmem [shape: bf16[4,32,32], index: 10, kind: input, shape index: {}]
  %s11 = inlined_call_operand.vmem [shape: bf16[4,32,32], index: 11, kind: input, shape index: {}]
  %s12 = inlined_call_operand.vmem [shape: bf16[4,32,32], index: 12, kind: input, shape index: {}]
  %s13 = inlined_call_operand.vmem [shape: f32[4,1,32], index: 13, kind: input, shape index: {}]
  %s14 = inlined_call_operand.vmem [shape: f32[4,32,1], index: 14, kind: input, shape index: {}]
  %s15 = inlined_call_operand.vmem [shape: f32[4,1,32], index: 15, kind: input, shape index: {}]
  %s16 = inlined_call_operand.vmem [shape: bf16[4,32,32], index: 16, kind: input, shape index: {}]
  %s17 = inlined_call_operand.vmem [shape: f32[4,1,32], index: 17, kind: input, shape index: {}]
  %s18 = inlined_call_operand.vmem [shape: f32[4,1,32], index: 18, kind: input, shape index: {}]
  %s19 = inlined_call_operand.vmem [shape: f32[4,1,32], index: 19, kind: input, shape index: {}]
  %s20 = inlined_call_operand.vmem [shape: bf16[4,32,64], index: 20, kind: input, shape index: {}]
  %s21 = inlined_call_operand.vmem [shape: f32[4,1,64], index: 21, kind: input, shape index: {}]
  %s22 = inlined_call_operand.vmem [shape: bf16[4,64,32], index: 22, kind: input, shape index: {}]
  %s23 = inlined_call_operand.hbm [shape: f32[4,1,32], index: 23, kind: input, shape index: {}]
  %s24 = inlined_call_operand.vmem [shape: f32[1,32], index: 24, kind: input, shape index: {}]
  %s25 = inlined_call_operand.vmem [shape: f32[1,32], index: 25, kind: input, shape index: {}]
  %s26 = inlined_call_operand.vmem [shape: bf16[32,32], index: 26, kind: input, shape index: {}]
  %s27 = inlined_call_operand.vmem [shape: bf16[32,32], index: 27, kind: input, shape index: {}]
  %s28 = inlined_call_operand.hbm [shape: f32[2,1,16], index: 28, kind: output, shape index: {}]
  %s29 = sld [smem:[#allocation0]]
  $region175: #{tpu_custom_call.1} parent=0
    _
  %s31 = ssub.s32 1, %s29
  %s32 = scalar_select 0, %s31, %s29
  $region1: #{tpu_custom_call.1} parent=0
    #allocation2 [shape = 'u8[512]{0}', space=vmem, size = 0x400, scoped, tag = 'input window, operand 4, single buffered']
    #allocation3 [shape = 's32[2]{0}', space=sflag, size = 0x8, scoped, tag = 'scoped memory for tpu_custom_call.1']
    #allocation4 [shape = 's32[2]{0}', space=sflag, size = 0x8, scoped, tag = 'scoped memory for tpu_custom_call.1']
    #allocation5 [shape = 'u8[512]{0}', space=vmem, size = 0x400, scoped, tag = 'input window, operand 6, single buffered']
    #allocation6 [shape = 's32[1]{0}', space=sflag, size = 0x4, scoped, tag = 'scoped memory for tpu_custom_call.1']
    #allocation7 [shape = 'u8[512]{0}', space=vmem, size = 0x400, scoped, tag = 'input window, operand 7, single buffered']
    #allocation8 [shape = 'u8[2048]{0}', space=vmem, size = 0x800, scoped, tag = 'input window, operand 23, single buffered']
    #allocation9 [shape = 's32[1]{0}', space=sflag, size = 0x4, scoped, tag = 'scoped memory for tpu_custom_call.1']
    #allocation10 [shape = 'u8[1024]{0}', space=vmem, size = 0x400, scoped, tag = 'output window, operand 0']
    %33 = vsyncpa [#allocation3], 0
    %34 = vsyncpa [#allocation6], 0
    %35 = vsyncpa [#allocation9], 0
    %36 = vsyncpa [#allocation4], 0
    %s37 = scalar_lea.sflag [#allocation4], 1
    %38 = vsyncpa %s37, 0
    loop: start=0, step=1, limit=4
    $region2: #{tpu_custom_call.1} parent=1 // loop_pre_header
      _
    $region3: #{tpu_custom_call.1} parent=1 // loop_header
      %s40 = sphi 0, %s44
      %p41 = scmp.ge.s32.totalorder %s40, 4
      %s50 = sphi 0, %s52
      %s53 = sphi 0, %s50
      %s54 = sphi 0, %s53
      %s70 = sphi 0, %s54
      %s76 = sphi 0, %s78
      %s79 = sphi 0, %s76
      %s80 = sphi 0, %s79
      %s96 = sphi 0, %s80
      %s102 = sphi 0, %s104
      %s105 = sphi 0, %s102
      %s106 = sphi 0, %s105
      %s122 = sphi 0, %s106
      %s126 = sphi 0, %s126
      %s128 = sphi 0, %s126
      %s129 = sphi 0, %s128
      %s143 = sphi 0, %s129
      %s147 = sphi 0, %s147
      %s149 = sphi 0, %s147
      %s150 = sphi 0, %s149
      %s164 = sphi 0, %s150
      %s168 = sphi 0, %s168
      %s170 = sphi 0, %s168
      %s171 = sphi 0, %s170
      %s185 = sphi 0, %s171
      %s189 = sphi 0, %s189
      %s191 = sphi 0, %s189
      %s192 = sphi 0, %s191
      %s206 = sphi 0, %s192
      %s210 = sphi 0, %s210
      %s212 = sphi 0, %s210
      %s213 = sphi 0, %s212
      %s227 = sphi 0, %s213
      %s231 = sphi 0, %s231
      %s233 = sphi 0, %s231
      %s234 = sphi 0, %s233
      %s248 = sphi 0, %s234
      %s252 = sphi 0, %s252
      %s254 = sphi 0, %s252
      %s255 = sphi 0, %s254
      %s269 = sphi 0, %s255
      %s273 = sphi 0, %s273
      %s275 = sphi 0, %s273
      %s276 = sphi 0, %s275
      %s290 = sphi 0, %s276
      %s294 = sphi 0, %s294
      %s296 = sphi 0, %s294
      %s297 = sphi 0, %s296
      %s311 = sphi 0, %s297
      %s315 = sphi 0, %s315
      %s317 = sphi 0, %s315
      %s318 = sphi 0, %s317
      %s332 = sphi 0, %s318
      %s336 = sphi 0, %s336
      %s338 = sphi 0, %s336
      %s339 = sphi 0, %s338
      %s353 = sphi 0, %s339
      %s357 = sphi 0, %s357
      %s359 = sphi 0, %s357
      %s360 = sphi 0, %s359
      %s374 = sphi 0, %s360
      %s378 = sphi 0, %s378
      %s380 = sphi 0, %s378
      %s381 = sphi 0, %s380
      %s395 = sphi 0, %s381
      %s399 = sphi 0, %s399
      %s401 = sphi 0, %s399
      %s402 = sphi 0, %s401
      %s416 = sphi 0, %s402
      %s420 = sphi 0, %s420
      %s422 = sphi 0, %s420
      %s423 = sphi 0, %s422
      %s437 = sphi 0, %s423
      %s441 = sphi 0, %s441
      %s443 = sphi 0, %s441
      %s444 = sphi 0, %s443
      %s458 = sphi 0, %s444
      %s462 = sphi 0, %s462
      %s464 = sphi 0, %s462
      %s465 = sphi 0, %s464
      %s479 = sphi 0, %s465
      %s483 = sphi 0, %s483
      %s485 = sphi 0, %s483
      %s486 = sphi 0, %s485
      %s500 = sphi 0, %s486
      %s504 = sphi 0, %s504
      %s506 = sphi 0, %s504
      %s507 = sphi 0, %s506
      %s521 = sphi 0, %s507
      %s525 = sphi 0, %s525
      %s527 = sphi 0, %s525
      %s528 = sphi 0, %s527
      %s542 = sphi 0, %s528
      %s546 = sphi 0, %s546
      %s548 = sphi 0, %s546
      %s549 = sphi 0, %s548
      %s563 = sphi 0, %s549
      %s567 = sphi 0, %s567
      %s569 = sphi 0, %s567
      %s570 = sphi 0, %s569
      %s584 = sphi 0, %s570
      %s588 = sphi 0, %s588
      %s590 = sphi 0, %s588
      %s591 = sphi 0, %s590
      %s605 = sphi 0, %s591
      %s609 = sphi 0, %s609
      %s611 = sphi 0, %s609
      %s612 = sphi 0, %s611
      %s626 = sphi 0, %s612
      %s630 = sphi 0, %s630
      %s632 = sphi 0, %s630
      %s633 = sphi 0, %s632
      %s647 = sphi 0, %s633
      %s653 = sphi 0, %s655
      %s656 = sphi 0, %s653
      %s657 = sphi 0, %s656
      %s673 = sphi 0, %s657
    $region4: #{tpu_custom_call.1} parent=1 // loop_header_branch
      %43 = sbr.rel (%p41) target = $region8
    $region5: #{tpu_custom_call.1} parent=1 // loop_body
      %s45 = ssub.s32 %s40, 1
      %s46 = ssub.s32 %s40, 2
      %s47 = sadd.s32 %s40, 1
      %s48 = ssub.s32 %s40, %s47
      %p49 = scmp.eq.s32.totalorder %s48, 0
      %s51 = sadd.s32 %s50, 1
      %s52 = scalar_select %p49, %s50, %s51
      %p55 = pneg %p49
      %p56 = scmp.eq.s32.totalorder %s40, 1
      %p57 = por %p55, %p56
      %p58 = scmp.ne.s32.totalorder %s50, %s53
      %p59 = scmp.eq.s32.totalorder %s40, 0
      %p60 = por %p58, %p59
      %p61 = scmp.ne.s32.totalorder %s50, %s53
      %p62 = scmp.eq.s32.totalorder %s45, 1
      %p63 = por %p61, %p62
      %p64 = scmp.ne.s32.totalorder %s53, %s54
      %p65 = scmp.eq.s32.totalorder %s45, 0
      %p66 = por %p64, %p65
      %p67 = scmp.ne.s32.totalorder %s53, %s54
      %p68 = scmp.eq.s32.totalorder %s46, 1
      %p69 = por %p67, %p68
      %p71 = scmp.ne.s32.totalorder %s54, %s70
      %p72 = scmp.eq.s32.totalorder %s46, 0
      %p73 = por %p71, %p72
      %s74 = ssub.s32 %s40, %s47
      %p75 = scmp.eq.s32.totalorder %s74, 0
      %s77 = sadd.s32 %s76, 1
      %s78 = scalar_select %p75, %s76, %s77
      %p81 = pneg %p75
      %p82 = scmp.eq.s32.totalorder %s40, 1
      %p83 = por %p81, %p82
      %p84 = scmp.ne.s32.totalorder %s76, %s79
      %p85 = scmp.eq.s32.totalorder %s40, 0
      %p86 = por %p84, %p85
      %p87 = scmp.ne.s32.totalorder %s76, %s79
      %p88 = scmp.eq.s32.totalorder %s45, 1
      %p89 = por %p87, %p88
      %p90 = scmp.ne.s32.totalorder %s79, %s80
      %p91 = scmp.eq.s32.totalorder %s45, 0
      %p92 = por %p90, %p91
      %p93 = scmp.ne.s32.totalorder %s79, %s80
      %p94 = scmp.eq.s32.totalorder %s46, 1
      %p95 = por %p93, %p94
      %p97 = scmp.ne.s32.totalorder %s80, %s96
      %p98 = scmp.eq.s32.totalorder %s46, 0
      %p99 = por %p97, %p98
      %s100 = ssub.s32 %s40, %s47
      %p101 = scmp.eq.s32.totalorder %s100, 0
      %s103 = sadd.s32 %s102, 1
      %s104 = scalar_select %p101, %s102, %s103
      %p107 = pneg %p101
      %p108 = scmp.eq.s32.totalorder %s40, 1
      %p109 = por %p107, %p108
      %p110 = scmp.ne.s32.totalorder %s102, %s105
      %p111 = scmp.eq.s32.totalorder %s40, 0
      %p112 = por %p110, %p111
      %p113 = scmp.ne.s32.totalorder %s102, %s105
      %p114 = scmp.eq.s32.totalorder %s45, 1
      %p115 = por %p113, %p114
      %p116 = scmp.ne.s32.totalorder %s105, %s106
      %p117 = scmp.eq.s32.totalorder %s45, 0
      %p118 = por %p116, %p117
      %p119 = scmp.ne.s32.totalorder %s105, %s106
      %p120 = scmp.eq.s32.totalorder %s46, 1
      %p121 = por %p119, %p120
      %p123 = scmp.ne.s32.totalorder %s106, %s122
      %p124 = scmp.eq.s32.totalorder %s46, 0
      %p125 = por %p123, %p124
      %s127 = sadd.s32 %s126, 1
      %p130 = scmp.eq.s32.totalorder %s40, 1
      %p131 = scmp.ne.s32.totalorder %s126, %s128
      %p132 = scmp.eq.s32.totalorder %s40, 0
      %p133 = por %p131, %p132
      %p134 = scmp.ne.s32.totalorder %s126, %s128
      %p135 = scmp.eq.s32.totalorder %s45, 1
      %p136 = por %p134, %p135
      %p137 = scmp.ne.s32.totalorder %s128, %s129
      %p138 = scmp.eq.s32.totalorder %s45, 0
      %p139 = por %p137, %p138
      %p140 = scmp.ne.s32.totalorder %s128, %s129
      %p141 = scmp.eq.s32.totalorder %s46, 1
      %p142 = por %p140, %p141
      %p144 = scmp.ne.s32.totalorder %s129, %s143
      %p145 = scmp.eq.s32.totalorder %s46, 0
      %p146 = por %p144, %p145
      %s148 = sadd.s32 %s147, 1
      %p151 = scmp.eq.s32.totalorder %s40, 1
      %p152 = scmp.ne.s32.totalorder %s147, %s149
      %p153 = scmp.eq.s32.totalorder %s40, 0
      %p154 = por %p152, %p153
      %p155 = scmp.ne.s32.totalorder %s147, %s149
      %p156 = scmp.eq.s32.totalorder %s45, 1
      %p157 = por %p155, %p156
      %p158 = scmp.ne.s32.totalorder %s149, %s150
      %p159 = scmp.eq.s32.totalorder %s45, 0
      %p160 = por %p158, %p159
      %p161 = scmp.ne.s32.totalorder %s149, %s150
      %p162 = scmp.eq.s32.totalorder %s46, 1
      %p163 = por %p161, %p162
      %p165 = scmp.ne.s32.totalorder %s150, %s164
      %p166 = scmp.eq.s32.totalorder %s46, 0
      %p167 = por %p165, %p166
      %s169 = sadd.s32 %s168, 1
      %p172 = scmp.eq.s32.totalorder %s40, 1
      %p173 = scmp.ne.s32.totalorder %s168, %s170
      %p174 = scmp.eq.s32.totalorder %s40, 0
      %p175 = por %p173, %p174
      %p176 = scmp.ne.s32.totalorder %s168, %s170
      %p177 = scmp.eq.s32.totalorder %s45, 1
      %p178 = por %p176, %p177
      %p179 = scmp.ne.s32.totalorder %s170, %s171
      %p180 = scmp.eq.s32.totalorder %s45, 0
      %p181 = por %p179, %p180
      %p182 = scmp.ne.s32.totalorder %s170, %s171
      %p183 = scmp.eq.s32.totalorder %s46, 1
      %p184 = por %p182, %p183
      %p186 = scmp.ne.s32.totalorder %s171, %s185
      %p187 = scmp.eq.s32.totalorder %s46, 0
      %p188 = por %p186, %p187
      %s190 = sadd.s32 %s189, 1
      %p193 = scmp.eq.s32.totalorder %s40, 1
      %p194 = scmp.ne.s32.totalorder %s189, %s191
      %p195 = scmp.eq.s32.totalorder %s40, 0
      %p196 = por %p194, %p195
      %p197 = scmp.ne.s32.totalorder %s189, %s191
      %p198 = scmp.eq.s32.totalorder %s45, 1
      %p199 = por %p197, %p198
      %p200 = scmp.ne.s32.totalorder %s191, %s192
      %p201 = scmp.eq.s32.totalorder %s45, 0
      %p202 = por %p200, %p201
      %p203 = scmp.ne.s32.totalorder %s191, %s192
      %p204 = scmp.eq.s32.totalorder %s46, 1
      %p205 = por %p203, %p204
      %p207 = scmp.ne.s32.totalorder %s192, %s206
      %p208 = scmp.eq.s32.totalorder %s46, 0
      %p209 = por %p207, %p208
      %s211 = sadd.s32 %s210, 1
      %p214 = scmp.eq.s32.totalorder %s40, 1
      %p215 = scmp.ne.s32.totalorder %s210, %s212
      %p216 = scmp.eq.s32.totalorder %s40, 0
      %p217 = por %p215, %p216
      %p218 = scmp.ne.s32.totalorder %s210, %s212
      %p219 = scmp.eq.s32.totalorder %s45, 1
      %p220 = por %p218, %p219
      %p221 = scmp.ne.s32.totalorder %s212, %s213
      %p222 = scmp.eq.s32.totalorder %s45, 0
      %p223 = por %p221, %p222
      %p224 = scmp.ne.s32.totalorder %s212, %s213
      %p225 = scmp.eq.s32.totalorder %s46, 1
      %p226 = por %p224, %p225
      %p228 = scmp.ne.s32.totalorder %s213, %s227
      %p229 = scmp.eq.s32.totalorder %s46, 0
      %p230 = por %p228, %p229
      %s232 = sadd.s32 %s231, 1
      %p235 = scmp.eq.s32.totalorder %s40, 1
      %p236 = scmp.ne.s32.totalorder %s231, %s233
      %p237 = scmp.eq.s32.totalorder %s40, 0
      %p238 = por %p236, %p237
      %p239 = scmp.ne.s32.totalorder %s231, %s233
      %p240 = scmp.eq.s32.totalorder %s45, 1
      %p241 = por %p239, %p240
      %p242 = scmp.ne.s32.totalorder %s233, %s234
      %p243 = scmp.eq.s32.totalorder %s45, 0
      %p244 = por %p242, %p243
      %p245 = scmp.ne.s32.totalorder %s233, %s234
      %p246 = scmp.eq.s32.totalorder %s46, 1
      %p247 = por %p245, %p246
      %p249 = scmp.ne.s32.totalorder %s234, %s248
      %p250 = scmp.eq.s32.totalorder %s46, 0
      %p251 = por %p249, %p250
      %s253 = sadd.s32 %s252, 1
      %p256 = scmp.eq.s32.totalorder %s40, 1
      %p257 = scmp.ne.s32.totalorder %s252, %s254
      %p258 = scmp.eq.s32.totalorder %s40, 0
      %p259 = por %p257, %p258
      %p260 = scmp.ne.s32.totalorder %s252, %s254
      %p261 = scmp.eq.s32.totalorder %s45, 1
      %p262 = por %p260, %p261
      %p263 = scmp.ne.s32.totalorder %s254, %s255
      %p264 = scmp.eq.s32.totalorder %s45, 0
      %p265 = por %p263, %p264
      %p266 = scmp.ne.s32.totalorder %s254, %s255
      %p267 = scmp.eq.s32.totalorder %s46, 1
      %p268 = por %p266, %p267
      %p270 = scmp.ne.s32.totalorder %s255, %s269
      %p271 = scmp.eq.s32.totalorder %s46, 0
      %p272 = por %p270, %p271
      %s274 = sadd.s32 %s273, 1
      %p277 = scmp.eq.s32.totalorder %s40, 1
      %p278 = scmp.ne.s32.totalorder %s273, %s275
      %p279 = scmp.eq.s32.totalorder %s40, 0
      %p280 = por %p278, %p279
      %p281 = scmp.ne.s32.totalorder %s273, %s275
      %p282 = scmp.eq.s32.totalorder %s45, 1
      %p283 = por %p281, %p282
      %p284 = scmp.ne.s32.totalorder %s275, %s276
      %p285 = scmp.eq.s32.totalorder %s45, 0
      %p286 = por %p284, %p285
      %p287 = scmp.ne.s32.totalorder %s275, %s276
      %p288 = scmp.eq.s32.totalorder %s46, 1
      %p289 = por %p287, %p288
      %p291 = scmp.ne.s32.totalorder %s276, %s290
      %p292 = scmp.eq.s32.totalorder %s46, 0
      %p293 = por %p291, %p292
      %s295 = sadd.s32 %s294, 1
      %p298 = scmp.eq.s32.totalorder %s40, 1
      %p299 = scmp.ne.s32.totalorder %s294, %s296
      %p300 = scmp.eq.s32.totalorder %s40, 0
      %p301 = por %p299, %p300
      %p302 = scmp.ne.s32.totalorder %s294, %s296
      %p303 = scmp.eq.s32.totalorder %s45, 1
      %p304 = por %p302, %p303
      %p305 = scmp.ne.s32.totalorder %s296, %s297
      %p306 = scmp.eq.s32.totalorder %s45, 0
      %p307 = por %p305, %p306
      %p308 = scmp.ne.s32.totalorder %s296, %s297
      %p309 = scmp.eq.s32.totalorder %s46, 1
      %p310 = por %p308, %p309
      %p312 = scmp.ne.s32.totalorder %s297, %s311
      %p313 = scmp.eq.s32.totalorder %s46, 0
      %p314 = por %p312, %p313
      %s316 = sadd.s32 %s315, 1
      %p319 = scmp.eq.s32.totalorder %s40, 1
      %p320 = scmp.ne.s32.totalorder %s315, %s317
      %p321 = scmp.eq.s32.totalorder %s40, 0
      %p322 = por %p320, %p321
      %p323 = scmp.ne.s32.totalorder %s315, %s317
      %p324 = scmp.eq.s32.totalorder %s45, 1
      %p325 = por %p323, %p324
      %p326 = scmp.ne.s32.totalorder %s317, %s318
      %p327 = scmp.eq.s32.totalorder %s45, 0
      %p328 = por %p326, %p327
      %p329 = scmp.ne.s32.totalorder %s317, %s318
      %p330 = scmp.eq.s32.totalorder %s46, 1
      %p331 = por %p329, %p330
      %p333 = scmp.ne.s32.totalorder %s318, %s332
      %p334 = scmp.eq.s32.totalorder %s46, 0
      %p335 = por %p333, %p334
      %s337 = sadd.s32 %s336, 1
      %p340 = scmp.eq.s32.totalorder %s40, 1
      %p341 = scmp.ne.s32.totalorder %s336, %s338
      %p342 = scmp.eq.s32.totalorder %s40, 0
      %p343 = por %p341, %p342
      %p344 = scmp.ne.s32.totalorder %s336, %s338
      %p345 = scmp.eq.s32.totalorder %s45, 1
      %p346 = por %p344, %p345
      %p347 = scmp.ne.s32.totalorder %s338, %s339
      %p348 = scmp.eq.s32.totalorder %s45, 0
      %p349 = por %p347, %p348
      %p350 = scmp.ne.s32.totalorder %s338, %s339
      %p351 = scmp.eq.s32.totalorder %s46, 1
      %p352 = por %p350, %p351
      %p354 = scmp.ne.s32.totalorder %s339, %s353
      %p355 = scmp.eq.s32.totalorder %s46, 0
      %p356 = por %p354, %p355
      %s358 = sadd.s32 %s357, 1
      %p361 = scmp.eq.s32.totalorder %s40, 1
      %p362 = scmp.ne.s32.totalorder %s357, %s359
      %p363 = scmp.eq.s32.totalorder %s40, 0
      %p364 = por %p362, %p363
      %p365 = scmp.ne.s32.totalorder %s357, %s359
      %p366 = scmp.eq.s32.totalorder %s45, 1
      %p367 = por %p365, %p366
      %p368 = scmp.ne.s32.totalorder %s359, %s360
      %p369 = scmp.eq.s32.totalorder %s45, 0
      %p370 = por %p368, %p369
      %p371 = scmp.ne.s32.totalorder %s359, %s360
      %p372 = scmp.eq.s32.totalorder %s46, 1
      %p373 = por %p371, %p372
      %p375 = scmp.ne.s32.totalorder %s360, %s374
      %p376 = scmp.eq.s32.totalorder %s46, 0
      %p377 = por %p375, %p376
      %s379 = sadd.s32 %s378, 1
      %p382 = scmp.eq.s32.totalorder %s40, 1
      %p383 = scmp.ne.s32.totalorder %s378, %s380
      %p384 = scmp.eq.s32.totalorder %s40, 0
      %p385 = por %p383, %p384
      %p386 = scmp.ne.s32.totalorder %s378, %s380
      %p387 = scmp.eq.s32.totalorder %s45, 1
      %p388 = por %p386, %p387
      %p389 = scmp.ne.s32.totalorder %s380, %s381
      %p390 = scmp.eq.s32.totalorder %s45, 0
      %p391 = por %p389, %p390
      %p392 = scmp.ne.s32.totalorder %s380, %s381
      %p393 = scmp.eq.s32.totalorder %s46, 1
      %p394 = por %p392, %p393
      %p396 = scmp.ne.s32.totalorder %s381, %s395
      %p397 = scmp.eq.s32.totalorder %s46, 0
      %p398 = por %p396, %p397
      %s400 = sadd.s32 %s399, 1
      %p403 = scmp.eq.s32.totalorder %s40, 1
      %p404 = scmp.ne.s32.totalorder %s399, %s401
      %p405 = scmp.eq.s32.totalorder %s40, 0
      %p406 = por %p404, %p405
      %p407 = scmp.ne.s32.totalorder %s399, %s401
      %p408 = scmp.eq.s32.totalorder %s45, 1
      %p409 = por %p407, %p408
      %p410 = scmp.ne.s32.totalorder %s401, %s402
      %p411 = scmp.eq.s32.totalorder %s45, 0
      %p412 = por %p410, %p411
      %p413 = scmp.ne.s32.totalorder %s401, %s402
      %p414 = scmp.eq.s32.totalorder %s46, 1
      %p415 = por %p413, %p414
      %p417 = scmp.ne.s32.totalorder %s402, %s416
      %p418 = scmp.eq.s32.totalorder %s46, 0
      %p419 = por %p417, %p418
      %s421 = sadd.s32 %s420, 1
      %p424 = scmp.eq.s32.totalorder %s40, 1
      %p425 = scmp.ne.s32.totalorder %s420, %s422
      %p426 = scmp.eq.s32.totalorder %s40, 0
      %p427 = por %p425, %p426
      %p428 = scmp.ne.s32.totalorder %s420, %s422
      %p429 = scmp.eq.s32.totalorder %s45, 1
      %p430 = por %p428, %p429
      %p431 = scmp.ne.s32.totalorder %s422, %s423
      %p432 = scmp.eq.s32.totalorder %s45, 0
      %p433 = por %p431, %p432
      %p434 = scmp.ne.s32.totalorder %s422, %s423
      %p435 = scmp.eq.s32.totalorder %s46, 1
      %p436 = por %p434, %p435
      %p438 = scmp.ne.s32.totalorder %s423, %s437
      %p439 = scmp.eq.s32.totalorder %s46, 0
      %p440 = por %p438, %p439
      %s442 = sadd.s32 %s441, 1
      %p445 = scmp.eq.s32.totalorder %s40, 1
      %p446 = scmp.ne.s32.totalorder %s441, %s443
      %p447 = scmp.eq.s32.totalorder %s40, 0
      %p448 = por %p446, %p447
      %p449 = scmp.ne.s32.totalorder %s441, %s443
      %p450 = scmp.eq.s32.totalorder %s45, 1
      %p451 = por %p449, %p450
      %p452 = scmp.ne.s32.totalorder %s443, %s444
      %p453 = scmp.eq.s32.totalorder %s45, 0
      %p454 = por %p452, %p453
      %p455 = scmp.ne.s32.totalorder %s443, %s444
      %p456 = scmp.eq.s32.totalorder %s46, 1
      %p457 = por %p455, %p456
      %p459 = scmp.ne.s32.totalorder %s444, %s458
      %p460 = scmp.eq.s32.totalorder %s46, 0
      %p461 = por %p459, %p460
      %s463 = sadd.s32 %s462, 1
      %p466 = scmp.eq.s32.totalorder %s40, 1
      %p467 = scmp.ne.s32.totalorder %s462, %s464
      %p468 = scmp.eq.s32.totalorder %s40, 0
      %p469 = por %p467, %p468
      %p470 = scmp.ne.s32.totalorder %s462, %s464
      %p471 = scmp.eq.s32.totalorder %s45, 1
      %p472 = por %p470, %p471
      %p473 = scmp.ne.s32.totalorder %s464, %s465
      %p474 = scmp.eq.s32.totalorder %s45, 0
      %p475 = por %p473, %p474
      %p476 = scmp.ne.s32.totalorder %s464, %s465
      %p477 = scmp.eq.s32.totalorder %s46, 1
      %p478 = por %p476, %p477
      %p480 = scmp.ne.s32.totalorder %s465, %s479
      %p481 = scmp.eq.s32.totalorder %s46, 0
      %p482 = por %p480, %p481
      %s484 = sadd.s32 %s483, 1
      %p487 = scmp.eq.s32.totalorder %s40, 1
      %p488 = scmp.ne.s32.totalorder %s483, %s485
      %p489 = scmp.eq.s32.totalorder %s40, 0
      %p490 = por %p488, %p489
      %p491 = scmp.ne.s32.totalorder %s483, %s485
      %p492 = scmp.eq.s32.totalorder %s45, 1
      %p493 = por %p491, %p492
      %p494 = scmp.ne.s32.totalorder %s485, %s486
      %p495 = scmp.eq.s32.totalorder %s45, 0
      %p496 = por %p494, %p495
      %p497 = scmp.ne.s32.totalorder %s485, %s486
      %p498 = scmp.eq.s32.totalorder %s46, 1
      %p499 = por %p497, %p498
      %p501 = scmp.ne.s32.totalorder %s486, %s500
      %p502 = scmp.eq.s32.totalorder %s46, 0
      %p503 = por %p501, %p502
      %s505 = sadd.s32 %s504, 1
      %p508 = scmp.eq.s32.totalorder %s40, 1
      %p509 = scmp.ne.s32.totalorder %s504, %s506
      %p510 = scmp.eq.s32.totalorder %s40, 0
      %p511 = por %p509, %p510
      %p512 = scmp.ne.s32.totalorder %s504, %s506
      %p513 = scmp.eq.s32.totalorder %s45, 1
      %p514 = por %p512, %p513
      %p515 = scmp.ne.s32.totalorder %s506, %s507
      %p516 = scmp.eq.s32.totalorder %s45, 0
      %p517 = por %p515, %p516
      %p518 = scmp.ne.s32.totalorder %s506, %s507
      %p519 = scmp.eq.s32.totalorder %s46, 1
      %p520 = por %p518, %p519
      %p522 = scmp.ne.s32.totalorder %s507, %s521
      %p523 = scmp.eq.s32.totalorder %s46, 0
      %p524 = por %p522, %p523
      %s526 = sadd.s32 %s525, 1
      %p529 = scmp.eq.s32.totalorder %s40, 1
      %p530 = scmp.ne.s32.totalorder %s525, %s527
      %p531 = scmp.eq.s32.totalorder %s40, 0
      %p532 = por %p530, %p531
      %p533 = scmp.ne.s32.totalorder %s525, %s527
      %p534 = scmp.eq.s32.totalorder %s45, 1
      %p535 = por %p533, %p534
      %p536 = scmp.ne.s32.totalorder %s527, %s528
      %p537 = scmp.eq.s32.totalorder %s45, 0
      %p538 = por %p536, %p537
      %p539 = scmp.ne.s32.totalorder %s527, %s528
      %p540 = scmp.eq.s32.totalorder %s46, 1
      %p541 = por %p539, %p540
      %p543 = scmp.ne.s32.totalorder %s528, %s542
      %p544 = scmp.eq.s32.totalorder %s46, 0
      %p545 = por %p543, %p544
      %s547 = sadd.s32 %s546, 1
      %p550 = scmp.eq.s32.totalorder %s40, 1
      %p551 = scmp.ne.s32.totalorder %s546, %s548
      %p552 = scmp.eq.s32.totalorder %s40, 0
      %p553 = por %p551, %p552
      %p554 = scmp.ne.s32.totalorder %s546, %s548
      %p555 = scmp.eq.s32.totalorder %s45, 1
      %p556 = por %p554, %p555
      %p557 = scmp.ne.s32.totalorder %s548, %s549
      %p558 = scmp.eq.s32.totalorder %s45, 0
      %p559 = por %p557, %p558
      %p560 = scmp.ne.s32.totalorder %s548, %s549
      %p561 = scmp.eq.s32.totalorder %s46, 1
      %p562 = por %p560, %p561
      %p564 = scmp.ne.s32.totalorder %s549, %s563
      %p565 = scmp.eq.s32.totalorder %s46, 0
      %p566 = por %p564, %p565
      %s568 = sadd.s32 %s567, 1
      %p571 = scmp.eq.s32.totalorder %s40, 1
      %p572 = scmp.ne.s32.totalorder %s567, %s569
      %p573 = scmp.eq.s32.totalorder %s40, 0
      %p574 = por %p572, %p573
      %p575 = scmp.ne.s32.totalorder %s567, %s569
      %p576 = scmp.eq.s32.totalorder %s45, 1
      %p577 = por %p575, %p576
      %p578 = scmp.ne.s32.totalorder %s569, %s570
      %p579 = scmp.eq.s32.totalorder %s45, 0
      %p580 = por %p578, %p579
      %p581 = scmp.ne.s32.totalorder %s569, %s570
      %p582 = scmp.eq.s32.totalorder %s46, 1
      %p583 = por %p581, %p582
      %p585 = scmp.ne.s32.totalorder %s570, %s584
      %p586 = scmp.eq.s32.totalorder %s46, 0
      %p587 = por %p585, %p586
      %s589 = sadd.s32 %s588, 1
      %p592 = scmp.eq.s32.totalorder %s40, 1
      %p593 = scmp.ne.s32.totalorder %s588, %s590
      %p594 = scmp.eq.s32.totalorder %s40, 0
      %p595 = por %p593, %p594
      %p596 = scmp.ne.s32.totalorder %s588, %s590
      %p597 = scmp.eq.s32.totalorder %s45, 1
      %p598 = por %p596, %p597
      %p599 = scmp.ne.s32.totalorder %s590, %s591
      %p600 = scmp.eq.s32.totalorder %s45, 0
      %p601 = por %p599, %p600
      %p602 = scmp.ne.s32.totalorder %s590, %s591
      %p603 = scmp.eq.s32.totalorder %s46, 1
      %p604 = por %p602, %p603
      %p606 = scmp.ne.s32.totalorder %s591, %s605
      %p607 = scmp.eq.s32.totalorder %s46, 0
      %p608 = por %p606, %p607
      %s610 = sadd.s32 %s609, 1
      %p613 = scmp.eq.s32.totalorder %s40, 1
      %p614 = scmp.ne.s32.totalorder %s609, %s611
      %p615 = scmp.eq.s32.totalorder %s40, 0
      %p616 = por %p614, %p615
      %p617 = scmp.ne.s32.totalorder %s609, %s611
      %p618 = scmp.eq.s32.totalorder %s45, 1
      %p619 = por %p617, %p618
      %p620 = scmp.ne.s32.totalorder %s611, %s612
      %p621 = scmp.eq.s32.totalorder %s45, 0
      %p622 = por %p620, %p621
      %p623 = scmp.ne.s32.totalorder %s611, %s612
      %p624 = scmp.eq.s32.totalorder %s46, 1
      %p625 = por %p623, %p624
      %p627 = scmp.ne.s32.totalorder %s612, %s626
      %p628 = scmp.eq.s32.totalorder %s46, 0
      %p629 = por %p627, %p628
      %s631 = sadd.s32 %s630, 1
      %p634 = scmp.eq.s32.totalorder %s40, 1
      %p635 = scmp.ne.s32.totalorder %s630, %s632
      %p636 = scmp.eq.s32.totalorder %s40, 0
      %p637 = por %p635, %p636
      %p638 = scmp.ne.s32.totalorder %s630, %s632
      %p639 = scmp.eq.s32.totalorder %s45, 1
      %p640 = por %p638, %p639
      %p641 = scmp.ne.s32.totalorder %s632, %s633
      %p642 = scmp.eq.s32.totalorder %s45, 0
      %p643 = por %p641, %p642
      %p644 = scmp.ne.s32.totalorder %s632, %s633
      %p645 = scmp.eq.s32.totalorder %s46, 1
      %p646 = por %p644, %p645
      %p648 = scmp.ne.s32.totalorder %s633, %s647
      %p649 = scmp.eq.s32.totalorder %s46, 0
      %p650 = por %p648, %p649
      %s651 = ssub.s32 %s40, %s47
      %p652 = scmp.eq.s32.totalorder %s651, 0
      %s654 = sadd.s32 %s653, 1
      %s655 = scalar_select %p652, %s653, %s654
      %p658 = pneg %p652
      %p659 = scmp.eq.s32.totalorder %s40, 1
      %p660 = por %p658, %p659
      %p661 = scmp.ne.s32.totalorder %s653, %s656
      %p662 = scmp.eq.s32.totalorder %s40, 0
      %p663 = por %p661, %p662
      %p664 = scmp.ne.s32.totalorder %s653, %s656
      %p665 = scmp.eq.s32.totalorder %s45, 1
      %p666 = por %p664, %p665
      %p667 = scmp.ne.s32.totalorder %s656, %s657
      %p668 = scmp.eq.s32.totalorder %s45, 0
      %p669 = por %p667, %p668
      %p670 = scmp.ne.s32.totalorder %s656, %s657
      %p671 = scmp.eq.s32.totalorder %s46, 1
      %p672 = por %p670, %p671
      %p674 = scmp.ne.s32.totalorder %s657, %s673
      %p675 = scmp.eq.s32.totalorder %s46, 0
      %p676 = por %p674, %p675
      %p677 = scmp.le.s32.totalorder 1, %s40
      %p678 = scmp.lt.s32.totalorder %s40, 3
      %p679 = pnand %p677, %p678
      %p680 = pneg %p679
      // Predicated region
      $region9: #{tpu_custom_call.1} parent=5 // pred_check
        _
      $region10: #{tpu_custom_call.1} parent=5 // pred_check_branch
        %682 = sbr.rel (%p679) target = $region12
      $region11: #{tpu_custom_call.1} parent=5 // pred_region
        %s683 = ssub.s32 %s40, 1
        // Predicated region
        $region13: #{tpu_custom_call.1} parent=11 // pred_check
          %p684 = pneg %p139
        $region14: #{tpu_custom_call.1} parent=11 // pred_check_branch
          %686 = sbr.rel (%p684) target = $region16
        $region15: #{tpu_custom_call.1} parent=11 // pred_region
          _
        $region16: #{tpu_custom_call.1} parent=11 // pred_fallthru
          _
        // Predicated region
        $region17: #{tpu_custom_call.1} parent=11 // pred_check
          %p687 = pneg %p160
        $region18: #{tpu_custom_call.1} parent=11 // pred_check_branch
          %689 = sbr.rel (%p687) target = $region20
        $region19: #{tpu_custom_call.1} parent=11 // pred_region
          %s691 = ssub.s32 16, 16
          %692 = vsyncadd [#allocation3], %s691
          %s694 = sshll.u32 [#allocation2], 4
          %s695 = int_to_ptr.vmem [resolvable:$true] %s694
          %697 = dma.hbm_to_vmem [thread:$0]  %s4, 16, %s695, [#allocation3]
        $region20: #{tpu_custom_call.1} parent=11 // pred_fallthru
          _
        // Predicated region
        $region21: #{tpu_custom_call.1} parent=11 // pred_check
          %p698 = pneg %p181
        $region22: #{tpu_custom_call.1} parent=11 // pred_check_branch
          %700 = sbr.rel (%p698) target = $region24
        $region23: #{tpu_custom_call.1} parent=11 // pred_region
          _
        $region24: #{tpu_custom_call.1} parent=11 // pred_fallthru
          _
        // Predicated region
        $region25: #{tpu_custom_call.1} parent=11 // pred_check
          %p701 = pneg %p202
        $region26: #{tpu_custom_call.1} parent=11 // pred_check_branch
          %703 = sbr.rel (%p701) target = $region28
        $region27: #{tpu_custom_call.1} parent=11 // pred_region
          %s705 = ssub.s32 16, 16
          %706 = vsyncadd [#allocation6], %s705
          %s708 = sshll.u32 [#allocation5], 4
          %s709 = int_to_ptr.vmem [resolvable:$true] %s708
          %711 = dma.hbm_to_vmem [thread:$0]  %s6, 16, %s709, [#allocation6]
        $region28: #{tpu_custom_call.1} parent=11 // pred_fallthru
          _
        // Predicated region
        $region29: #{tpu_custom_call.1} parent=11 // pred_check
          %p712 = pneg %p223
        $region30: #{tpu_custom_call.1} parent=11 // pred_check_branch
          %714 = sbr.rel (%p712) target = $region32
        $region31: #{tpu_custom_call.1} parent=11 // pred_region
          %s716 = ssub.s32 16, 16
          %717 = vsyncadd [#allocation6], %s716
          %s719 = sshll.u32 [#allocation7], 4
          %s720 = int_to_ptr.vmem [resolvable:$true] %s719
          %722 = dma.hbm_to_vmem [thread:$0]  %s7, 16, %s720, [#allocation6]
        $region32: #{tpu_custom_call.1} parent=11 // pred_fallthru
          _
        // Predicated region
        $region33: #{tpu_custom_call.1} parent=11 // pred_check
          %p723 = pneg %p244
        $region34: #{tpu_custom_call.1} parent=11 // pred_check_branch
          %725 = sbr.rel (%p723) target = $region36
        $region35: #{tpu_custom_call.1} parent=11 // pred_region
          _
        $region36: #{tpu_custom_call.1} parent=11 // pred_fallthru
          _
        // Predicated region
        $region37: #{tpu_custom_call.1} parent=11 // pred_check
          %p726 = pneg %p265
        $region38: #{tpu_custom_call.1} parent=11 // pred_check_branch
          %728 = sbr.rel (%p726) target = $region40
        $region39: #{tpu_custom_call.1} parent=11 // pred_region
          _
        $region40: #{tpu_custom_call.1} parent=11 // pred_fallthru
          _
        // Predicated region
        $region41: #{tpu_custom_call.1} parent=11 // pred_check
          %p729 = pneg %p286
        $region42: #{tpu_custom_call.1} parent=11 // pred_check_branch
          %731 = sbr.rel (%p729) target = $region44
        $region43: #{tpu_custom_call.1} parent=11 // pred_region
          _
        $region44: #{tpu_custom_call.1} parent=11 // pred_fallthru
          _
        // Predicated region
        $region45: #{tpu_custom_call.1} parent=11 // pred_check
          %p732 = pneg %p307
        $region46: #{tpu_custom_call.1} parent=11 // pred_check_branch
          %734 = sbr.rel (%p732) target = $region48
        $region47: #{tpu_custom_call.1} parent=11 // pred_region
          _
        $region48: #{tpu_custom_call.1} parent=11 // pred_fallthru
          _
        // Predicated region
        $region49: #{tpu_custom_call.1} parent=11 // pred_check
          %p735 = pneg %p328
        $region50: #{tpu_custom_call.1} parent=11 // pred_check_branch
          %737 = sbr.rel (%p735) target = $region52
        $region51: #{tpu_custom_call.1} parent=11 // pred_region
          _
        $region52: #{tpu_custom_call.1} parent=11 // pred_fallthru
          _
        // Predicated region
        $region53: #{tpu_custom_call.1} parent=11 // pred_check
          %p738 = pneg %p349
        $region54: #{tpu_custom_call.1} parent=11 // pred_check_branch
          %740 = sbr.rel (%p738) target = $region56
        $region55: #{tpu_custom_call.1} parent=11 // pred_region
          _
        $region56: #{tpu_custom_call.1} parent=11 // pred_fallthru
          _
        // Predicated region
        $region57: #{tpu_custom_call.1} parent=11 // pred_check
          %p741 = pneg %p370
        $region58: #{tpu_custom_call.1} parent=11 // pred_check_branch
          %743 = sbr.rel (%p741) target = $region60
        $region59: #{tpu_custom_call.1} parent=11 // pred_region
          _
        $region60: #{tpu_custom_call.1} parent=11 // pred_fallthru
          _
        // Predicated region
        $region61: #{tpu_custom_call.1} parent=11 // pred_check
          %p744 = pneg %p391
        $region62: #{tpu_custom_call.1} parent=11 // pred_check_branch
          %746 = sbr.rel (%p744) target = $region64
        $region63: #{tpu_custom_call.1} parent=11 // pred_region
          _
        $region64: #{tpu_custom_call.1} parent=11 // pred_fallthru
          _
        // Predicated region
        $region65: #{tpu_custom_call.1} parent=11 // pred_check
          %p747 = pneg %p412
        $region66: #{tpu_custom_call.1} parent=11 // pred_check_branch
          %749 = sbr.rel (%p747) target = $region68
        $region67: #{tpu_custom_call.1} parent=11 // pred_region
          _
        $region68: #{tpu_custom_call.1} parent=11 // pred_fallthru
          _
        // Predicated region
        $region69: #{tpu_custom_call.1} parent=11 // pred_check
          %p750 = pneg %p433
        $region70: #{tpu_custom_call.1} parent=11 // pred_check_branch
          %752 = sbr.rel (%p750) target = $region72
        $region71: #{tpu_custom_call.1} parent=11 // pred_region
          _
        $region72: #{tpu_custom_call.1} parent=11 // pred_fallthru
          _
        // Predicated region
        $region73: #{tpu_custom_call.1} parent=11 // pred_check
          %p753 = pneg %p454
        $region74: #{tpu_custom_call.1} parent=11 // pred_check_branch
          %755 = sbr.rel (%p753) target = $region76
        $region75: #{tpu_custom_call.1} parent=11 // pred_region
          _
        $region76: #{tpu_custom_call.1} parent=11 // pred_fallthru
          _
        // Predicated region
        $region77: #{tpu_custom_call.1} parent=11 // pred_check
          %p756 = pneg %p475
        $region78: #{tpu_custom_call.1} parent=11 // pred_check_branch
          %758 = sbr.rel (%p756) target = $region80
        $region79: #{tpu_custom_call.1} parent=11 // pred_region
          _
        $region80: #{tpu_custom_call.1} parent=11 // pred_fallthru
          _
        // Predicated region
        $region81: #{tpu_custom_call.1} parent=11 // pred_check
          %p759 = pneg %p496
        $region82: #{tpu_custom_call.1} parent=11 // pred_check_branch
          %761 = sbr.rel (%p759) target = $region84
        $region83: #{tpu_custom_call.1} parent=11 // pred_region
          _
        $region84: #{tpu_custom_call.1} parent=11 // pred_fallthru
          _
        // Predicated region
        $region85: #{tpu_custom_call.1} parent=11 // pred_check
          %p762 = pneg %p517
        $region86: #{tpu_custom_call.1} parent=11 // pred_check_branch
          %764 = sbr.rel (%p762) target = $region88
        $region87: #{tpu_custom_call.1} parent=11 // pred_region
          _
        $region88: #{tpu_custom_call.1} parent=11 // pred_fallthru
          _
        // Predicated region
        $region89: #{tpu_custom_call.1} parent=11 // pred_check
          %p765 = pneg %p538
        $region90: #{tpu_custom_call.1} parent=11 // pred_check_branch
          %767 = sbr.rel (%p765) target = $region92
        $region91: #{tpu_custom_call.1} parent=11 // pred_region
          _
        $region92: #{tpu_custom_call.1} parent=11 // pred_fallthru
          _
        // Predicated region
        $region93: #{tpu_custom_call.1} parent=11 // pred_check
          %p768 = pneg %p559
        $region94: #{tpu_custom_call.1} parent=11 // pred_check_branch
          %770 = sbr.rel (%p768) target = $region96
        $region95: #{tpu_custom_call.1} parent=11 // pred_region
          %s772 = ssub.s32 64, 64
          %773 = vsyncadd [#allocation9], %s772
          %s774 = sshll.u32 [#allocation8], 4
          %s775 = int_to_ptr.vmem [resolvable:$true] %s774
          %780 = dma.hbm_to_vmem [thread:$0]  %s23, 64, %s775, [#allocation9], 16, 16, 1
        $region96: #{tpu_custom_call.1} parent=11 // pred_fallthru
          _
        // Predicated region
        $region97: #{tpu_custom_call.1} parent=11 // pred_check
          %p781 = pneg %p580
        $region98: #{tpu_custom_call.1} parent=11 // pred_check_branch
          %783 = sbr.rel (%p781) target = $region100
        $region99: #{tpu_custom_call.1} parent=11 // pred_region
          _
        $region100: #{tpu_custom_call.1} parent=11 // pred_fallthru
          _
        // Predicated region
        $region101: #{tpu_custom_call.1} parent=11 // pred_check
          %p784 = pneg %p601
        $region102: #{tpu_custom_call.1} parent=11 // pred_check_branch
          %786 = sbr.rel (%p784) target = $region104
        $region103: #{tpu_custom_call.1} parent=11 // pred_region
          _
        $region104: #{tpu_custom_call.1} parent=11 // pred_fallthru
          _
        // Predicated region
        $region105: #{tpu_custom_call.1} parent=11 // pred_check
          %p787 = pneg %p622
        $region106: #{tpu_custom_call.1} parent=11 // pred_check_branch
          %789 = sbr.rel (%p787) target = $region108
        $region107: #{tpu_custom_call.1} parent=11 // pred_region
          _
        $region108: #{tpu_custom_call.1} parent=11 // pred_fallthru
          _
        // Predicated region
        $region109: #{tpu_custom_call.1} parent=11 // pred_check
          %p790 = pneg %p643
        $region110: #{tpu_custom_call.1} parent=11 // pred_check_branch
          %792 = sbr.rel (%p790) target = $region112
        $region111: #{tpu_custom_call.1} parent=11 // pred_region
          _
        $region112: #{tpu_custom_call.1} parent=11 // pred_fallthru
          _
      $region12: #{tpu_custom_call.1} parent=5 // pred_fallthru
        _
      %p793 = scmp.lt.s32.totalorder %s40, 2
      // Predicated region
      $region113: #{tpu_custom_call.1} parent=5 // pred_check
        %p794 = pneg %p793
      $region114: #{tpu_custom_call.1} parent=5 // pred_check_branch
        %796 = sbr.rel (%p794) target = $region116
      $region115: #{tpu_custom_call.1} parent=5 // pred_region
        // Predicated region
        $region117: #{tpu_custom_call.1} parent=115 // pred_check
          %p797 = pneg %p60
        $region118: #{tpu_custom_call.1} parent=115 // pred_check_branch
          %799 = sbr.rel (%p797) target = $region120
        $region119: #{tpu_custom_call.1} parent=115 // pred_region
          %p800 = scmp.lt.s32.totalorder %s40, 1
          %s801 = scalar_select %p800, %s40, 1
          %s802 = smul.addr %s801, 2
          %s803 = smul.addr %s802, 8
          %s804 = scalar_lea.vmem %s0, %s803
        $region120: #{tpu_custom_call.1} parent=115 // pred_fallthru
          _
        // Predicated region
        $region121: #{tpu_custom_call.1} parent=115 // pred_check
          %p805 = pneg %p86
        $region122: #{tpu_custom_call.1} parent=115 // pred_check_branch
          %807 = sbr.rel (%p805) target = $region124
        $region123: #{tpu_custom_call.1} parent=115 // pred_region
          %p808 = scmp.lt.s32.totalorder %s40, 1
          %s809 = scalar_select %p808, %s40, 1
          %s810 = smul.addr %s809, 3
          %s811 = smul.addr %s810, 8
          %s812 = scalar_lea.vmem %s1, %s811
        $region124: #{tpu_custom_call.1} parent=115 // pred_fallthru
          _
        // Predicated region
        $region125: #{tpu_custom_call.1} parent=115 // pred_check
          %p813 = pneg %p112
        $region126: #{tpu_custom_call.1} parent=115 // pred_check_branch
          %815 = sbr.rel (%p813) target = $region128
        $region127: #{tpu_custom_call.1} parent=115 // pred_region
          %p816 = scmp.lt.s32.totalorder %s40, 1
          %s817 = scalar_select %p816, %s40, 1
          %s818 = smul.addr %s817, 3
          %s819 = smul.addr %s818, 8
          %s820 = scalar_lea.vmem %s2, %s819
        $region128: #{tpu_custom_call.1} parent=115 // pred_fallthru
          _
      $region116: #{tpu_custom_call.1} parent=5 // pred_fallthru
        _
      %p821 = scmp.le.s32.totalorder 1, %s40
      %p822 = scmp.lt.s32.totalorder %s40, 3
      %p823 = pnand %p821, %p822
      %p824 = pneg %p823
      // Predicated region
      $region129: #{tpu_custom_call.1} parent=5 // pred_check
        _
      $region130: #{tpu_custom_call.1} parent=5 // pred_check_branch
        %826 = sbr.rel (%p823) target = $region132
      $region131: #{tpu_custom_call.1} parent=5 // pred_region
        %s827 = ssub.s32 %s40, 1
        // Predicated region
        $region133: #{tpu_custom_call.1} parent=131 // pred_check
          %p828 = pneg %p160
        $region134: #{tpu_custom_call.1} parent=131 // pred_check_branch
          %830 = sbr.rel (%p828) target = $region136
        $region135: #{tpu_custom_call.1} parent=131 // pred_region
          %831 = dma.done [#allocation3], 16
        $region136: #{tpu_custom_call.1} parent=131 // pred_fallthru
          _
        // Predicated region
        $region137: #{tpu_custom_call.1} parent=131 // pred_check
          %p832 = pneg %p202
        $region138: #{tpu_custom_call.1} parent=131 // pred_check_branch
          %834 = sbr.rel (%p832) target = $region140
        $region139: #{tpu_custom_call.1} parent=131 // pred_region
          %835 = dma.done [#allocation6], 16
        $region140: #{tpu_custom_call.1} parent=131 // pred_fallthru
          _
        // Predicated region
        $region141: #{tpu_custom_call.1} parent=131 // pred_check
          %p836 = pneg %p223
        $region142: #{tpu_custom_call.1} parent=131 // pred_check_branch
          %838 = sbr.rel (%p836) target = $region144
        $region143: #{tpu_custom_call.1} parent=131 // pred_region
          %839 = dma.done [#allocation6], 16
        $region144: #{tpu_custom_call.1} parent=131 // pred_fallthru
          _
        // Predicated region
        $region145: #{tpu_custom_call.1} parent=131 // pred_check
          %p840 = pneg %p559
        $region146: #{tpu_custom_call.1} parent=131 // pred_check_branch
          %842 = sbr.rel (%p840) target = $region148
        $region147: #{tpu_custom_call.1} parent=131 // pred_region
          %843 = dma.done [#allocation9], 64
        $region148: #{tpu_custom_call.1} parent=131 // pred_fallthru
          _
        %p844 = scmp.lt.s32.totalorder %s45, 1
        %s845 = scalar_select %p844, %s45, 1
        %s846 = smul.addr %s845, 2
        %s847 = smul.addr %s846, 8
        %s848 = scalar_lea.vmem %s0, %s847
        %p849 = pneg %p66
        %p850 = pneg %p63
        %p851 = scmp.lt.s32.totalorder %s45, 1
        %s852 = scalar_select %p851, %s45, 1
        %s853 = smul.addr %s852, 3
        %s854 = smul.addr %s853, 8
        %s855 = scalar_lea.vmem %s1, %s854
        %p856 = pneg %p92
        %p857 = pneg %p89
        %p858 = scmp.lt.s32.totalorder %s45, 1
        %s859 = scalar_select %p858, %s45, 1
        %s860 = smul.addr %s859, 3
        %s861 = smul.addr %s860, 8
        %s862 = scalar_lea.vmem %s2, %s861
        %p863 = pneg %p118
        %p864 = pneg %p115
        %p865 = pneg %p139
        %p866 = pneg %p136
        %p867 = pneg %p160
        %p868 = pneg %p157
        %p869 = pneg %p181
        %p870 = pneg %p178
        %p871 = pneg %p202
        %p872 = pneg %p199
        %p873 = pneg %p223
        %p874 = pneg %p220
        %p875 = pneg %p244
        %p876 = pneg %p241
        %p877 = pneg %p265
        %p878 = pneg %p262
        %p879 = pneg %p286
        %p880 = pneg %p283
        %p881 = pneg %p307
        %p882 = pneg %p304
        %p883 = pneg %p328
        %p884 = pneg %p325
        %p885 = pneg %p349
        %p886 = pneg %p346
        %p887 = pneg %p370
        %p888 = pneg %p367
        %p889 = pneg %p391
        %p890 = pneg %p388
        %p891 = pneg %p412
        %p892 = pneg %p409
        %p893 = pneg %p433
        %p894 = pneg %p430
        %p895 = pneg %p454
        %p896 = pneg %p451
        %p897 = pneg %p475
        %p898 = pneg %p472
        %p899 = pneg %p496
        %p900 = pneg %p493
        %p901 = pneg %p517
        %p902 = pneg %p514
        %p903 = pneg %p538
        %p904 = pneg %p535
        %p905 = pneg %p559
        %p906 = pneg %p556
        %p907 = pneg %p580
        %p908 = pneg %p577
        %p909 = pneg %p601
        %p910 = pneg %p598
        %p911 = pneg %p622
        %p912 = pneg %p619
        %p913 = pneg %p643
        %p914 = pneg %p640
        %p915 = pneg %p669
        %p916 = pneg %p666
        %s917 = sand.u32 %s656, 1
        %s918 = scalar_lea.sflag [#allocation4], %s917
        %s919 = sand.u32 %s656, 1
        %s920 = scalar_lea.vmem [#allocation10], %s919
        %p921 = scmp.lt.s32.totalorder %s45, 1
        %s922 = scalar_select %p921, %s45, 1
        %s923 = smul.addr %s922, 2
        %s924 = smul.addr %s923, 8
        %s925 = scalar_lea.vmem %s0, %s924
        %p926 = scmp.lt.s32.totalorder %s45, 1
        %s927 = scalar_select %p926, %s45, 1
        %s928 = smul.addr %s927, 3
        %s929 = smul.addr %s928, 8
        %s930 = scalar_lea.vmem %s1, %s929
        %p931 = scmp.lt.s32.totalorder %s45, 1
        %s932 = scalar_select %p931, %s45, 1
        %s933 = smul.addr %s932, 3
        %s934 = smul.addr %s933, 8
        %s935 = scalar_lea.vmem %s2, %s934
        %v937 = vld [vmem:[%s925] sm:$0xff]
        %v938 = vld [vmem:[%s925 + $0x8] sm:$0xff]
        %v939 = vmul.f32 %v937, %v937
        %v940 = vmul.f32 %v938, %v938
        %vm941 = vcmask 392192
        %v942 = vsel %vm941, %v939, 0.0
        %943 = vadd.xlane.f32.xlu0 %v942
        %v944 = vpop.xlane.xlu0 %943
        %v945 = vsel %vm941, %v940, 0.0
        %946 = vadd.xlane.f32.xlu0 %v945
        %v947 = vpop.xlane.xlu0 %946
        %v948 = vmax.f32 %v944, 1e-24
        %v949 = vmax.f32 %v947, 1e-24
        %v950 = vrsqrt.pop %v948
        %v951 = vrsqrt.pop %v949
        %v952 = vmul.f32 %v937, %v950
        %v953 = vmul.f32 %v938, %v951
        %v954 = vpack.c.bf16 %v953, %v952
        %v955 = vld [vmem:[%s3] sm:$0xf]
        %v956 = vld [vmem:[%s3 + $0x4] sm:$0xf]
        %v957 = vld [vmem:[%s3 + $0x8] sm:$0xf]
        %v958 = vld [vmem:[%s3 + $0xc] sm:$0xf]
        %v959 = vld [vmem:[%s3 + $0x10] sm:$0xf]
        %v960 = vld [vmem:[%s3 + $0x14] sm:$0xf]
        %v961 = vld [vmem:[#allocation2] sm:$0x1]
        %v963 = vlaneseq
        %v964 = vshrl.u32 %v963, 7
        %v965 = vsub.s32 0, %v964
        %v966 = vrot.slane %v961, %v965
        %v974 = vunpack.c.l.b16 %v955
        %v975 = vunpack.c.l.b16 %v956
        %v976 = vunpack.c.l.b16 %v957
        %v977 = vunpack.c.l.b16 %v958
        %v978 = vunpack.c.l.b16 %v959
        %v979 = vunpack.c.l.b16 %v960
        %v980 = vpack.c.b16 %v975, %v974
        %v981 = vpack.c.b16 %v977, %v976
        %v982 = vpack.c.b16 %v979, %v978
        %v987 = vsel %vm941, %v954, 0
        %989 = vmatprep.subr.bf16.mxu0 0
        %990 = vmatpush1.bf16.msra.mxu0 0
        %991 = vmatprep.subr.bf16.mxu0 0
        %992 = vmatpush1.bf16.msra.mxu0 0
        %993 = vmatprep.subr.bf16.mxu0 0
        %994 = vmatpush1.bf16.msra.mxu0 0
        %995 = vmatprep.subr.bf16.mxu0 0
        %996 = vmatpush1.bf16.msra.mxu0 0
        %997 = vmatprep.subr.bf16.mxu0 0
        %998 = vmatpush1.bf16.msra.mxu0 0
        %999 = vmatprep.subr.bf16.mxu0 0
        %1000 = vmatpush1.bf16.msra.mxu0 %v982
        %1001 = vmatprep.subr.bf16.mxu0 0
        %1002 = vmatpush1.bf16.msra.mxu0 %v981
        %1003 = vmatprep.subr.bf16.mxu0 0
        %1004 = vmatpush1.bf16.msra.mxu0 %v980
        %1005 = vmatprep.subr.bf16.mxu0 0
        %1006 = vmatpush2.bf16.msra.mxu0 0
        %1007 = vmatprep.subr.bf16.mxu0 0
        %1008 = vmatpush2.bf16.msra.mxu0 0
        %1009 = vmatprep.subr.bf16.mxu0 0
        %1010 = vmatpush2.bf16.msra.mxu0 0
        %1011 = vmatprep.subr.bf16.mxu0 0
        %1012 = vmatpush2.bf16.msra.mxu0 0
        %1013 = vmatprep.subr.bf16.mxu0 0
        %1014 = vmatpush2.bf16.msra.mxu0 0
        %1015 = vmatprep.subr.bf16.mxu0 0
        %1016 = vmatpush2.bf16.msra.mxu0 0
        %1017 = vmatprep.subr.bf16.mxu0 0
        %1018 = vmatpush2.bf16.msra.mxu0 0
        %1019 = vmatprep.subr.bf16.mxu0 0
        %1020 = vmatpush2.bf16.msra.mxu0 0
        %1021 = vmatprep.mubr.bf16.mxu0 0
        %1022 = vmatmul.mubr.bf16.gmra.mxu0 %v987
        %v1023 = vpop.f32.mrf.mxu0
        %v1024 = vadd.f32 %v966, %v1023
        %v1025 = vpop.f32.mrf.mxu0
        %v1026 = vpop.f32.mrf.mxu0
        %v1027 = vadd.f32 %v966, %v1026
        %v1028 = vpop.f32.mrf.mxu0
        %1029 = vdwg.mxu0
        %v1030 = vld [vmem:[%s930] sm:$0xff]
        %v1031 = vld [vmem:[%s930 + $0x8] sm:$0xff]
        %v1032 = vld [vmem:[%s930 + $0x10] sm:$0xf]
        %v1033 = vmul.f32 %v1030, %v1030
        %v1034 = vmul.f32 %v1031, %v1031
        %v1035 = vmul.f32 %v1032, %v1032
        %vm1036 = vcmask 195584
        %v1037 = vsel %vm1036, %v1033, 0.0
        %1038 = vadd.xlane.f32.xlu0 %v1037
        %v1039 = vpop.xlane.xlu0 %1038
        %v1040 = vsel %vm1036, %v1034, 0.0
        %1041 = vadd.xlane.f32.xlu0 %v1040
        %v1042 = vpop.xlane.xlu0 %1041
        %vm1043 = vcmask 191488
        %v1044 = vsel %vm1043, %v1035, 0.0
        %1045 = vadd.xlane.f32.xlu0 %v1044
        %v1046 = vpop.xlane.xlu0 %1045
        %v1047 = vmax.f32 %v1039, 1e-24
        %v1048 = vmax.f32 %v1042, 1e-24
        %v1049 = vmax.f32 %v1046, 1e-24
        %v1050 = vrsqrt.pop %v1047
        %v1051 = vrsqrt.pop %v1048
        %v1052 = vrsqrt.pop %v1049
        %v1053 = vmul.f32 %v1030, %v1050
        %v1054 = vmul.f32 %v1031, %v1051
        %v1055 = vmul.f32 %v1032, %v1052
        %v1056 = vpack.c.bf16 %v1054, %v1053
        %v1057 = vpack.c.bf16 %v1055, %v1055
        %v1058 = vld [vmem:[%s5] sm:$0xf]
        %v1059 = vld [vmem:[%s5 + $0x4] sm:$0xf]
        %v1060 = vld [vmem:[%s5 + $0x8] sm:$0xf]
        %v1061 = vld [vmem:[#allocation5] sm:$0x1]
        %v1063 = vlaneseq
        %v1064 = vshrl.u32 %v1063, 7
        %v1065 = vsub.s32 0, %v1064
        %v1066 = vrot.slane %v1061, %v1065
        %v1071 = vunpack.c.l.b16 %v1058
        %v1072 = vunpack.c.l.b16 %v1059
        %v1073 = vunpack.c.l.b16 %v1060
        %v1074 = vpack.c.b16 %v1072, %v1071
        %v1075 = vpack.c.b16 %v1073, %v1073
        %v1078 = vsel %vm1036, %v1056, 0
        %v1081 = vsel %vm1036, %v1057, 0
        %vm1083 = vcmask 1043456
        %v1085 = vsel %vm1083, %v1075, 0
        %1087 = vmatprep.subr.bf16.mxu0 0
        %1088 = vmatpush1.bf16.msra.mxu0 0
        %1089 = vmatprep.subr.bf16.mxu0 0
        %1090 = vmatpush1.bf16.msra.mxu0 0
        %1091 = vmatprep.subr.bf16.mxu0 0
        %1092 = vmatpush1.bf16.msra.mxu0 0
        %1093 = vmatprep.subr.bf16.mxu0 0
        %1094 = vmatpush1.bf16.msra.mxu0 0
        %1095 = vmatprep.subr.bf16.mxu0 0
        %1096 = vmatpush1.bf16.msra.mxu0 0
        %1097 = vmatprep.subr.bf16.mxu0 0
        %1098 = vmatpush1.bf16.msra.mxu0 0
        %1099 = vmatprep.subr.bf16.mxu0 0
        %1100 = vmatpush1.bf16.msra.mxu0 %v1085
        %1101 = vmatprep.subr.bf16.mxu0 0
        %1102 = vmatpush1.bf16.msra.mxu0 %v1074
        %1103 = vmatprep.subr.bf16.mxu0 0
        %1104 = vmatpush2.bf16.msra.mxu0 0
        %1105 = vmatprep.subr.bf16.mxu0 0
        %1106 = vmatpush2.bf16.msra.mxu0 0
        %1107 = vmatprep.subr.bf16.mxu0 0
        %1108 = vmatpush2.bf16.msra.mxu0 0
        %1109 = vmatprep.subr.bf16.mxu0 0
        %1110 = vmatpush2.bf16.msra.mxu0 0
        %1111 = vmatprep.subr.bf16.mxu0 0
        %1112 = vmatpush2.bf16.msra.mxu0 0
        %1113 = vmatprep.subr.bf16.mxu0 0
        %1114 = vmatpush2.bf16.msra.mxu0 0
        %1115 = vmatprep.subr.bf16.mxu0 0
        %1116 = vmatpush2.bf16.msra.mxu0 0
        %1117 = vmatprep.subr.bf16.mxu0 0
        %1118 = vmatpush2.bf16.msra.mxu0 0
        %1119 = vmatprep.mubr.bf16.mxu0 0
        %1120 = vmatmul.mubr.bf16.gmra.mxu0 %v1078
        %v1121 = vpop.f32.mrf.mxu0
        %v1122 = vadd.f32 %v1066, %v1121
        %v1123 = vpop.f32.mrf.mxu0
        %v1124 = vpop.f32.mrf.mxu0
        %v1125 = vadd.f32 %v1066, %v1124
        %v1126 = vpop.f32.mrf.mxu0
        %1127 = vmatprep.mubr.bf16.mxu0 0
        %1128 = vmatmul.mubr.bf16.gmra.mxu0 %v1081
        %v1129 = vpop.f32.mrf.mxu0
        %v1130 = vadd.f32 %v1066, %v1129
        %v1131 = vpop.f32.mrf.mxu0
        %v1132 = vpop.f32.mrf.mxu0
        %v1133 = vpop.f32.mrf.mxu0
        %1134 = vdwg.mxu0
        %v1135 = vld [vmem:[%s935] sm:$0xff]
        %v1136 = vld [vmem:[%s935 + $0x8] sm:$0xff]
        %v1137 = vld [vmem:[%s935 + $0x10] sm:$0xf]
        %vm1138 = vcmp.eq.s32.totalorder %v1135, 0
        %vm1139 = vcmp.eq.s32.totalorder %v1136, 0
        %vm1140 = vcmp.eq.s32.totalorder %v1137, 0
        %v1141 = vsel %vm1138, 1, 0
        %v1142 = vsel %vm1139, 1, 0
        %v1143 = vsel %vm1140, 1, 0
        %1144 = vset.pattern.permute.xlu0 0
        %1145 = vperm.xlu0 %1144, %v1141
        %v1146 = vpop.permute.xlu0 %1145
        %1147 = vset.pattern.permute.xlu0 0
        %1148 = vperm.xlu0 %1147, %v1142
        %v1149 = vpop.permute.xlu0 %1148
        %1150 = vset.pattern.permute.xlu0 0
        %1151 = vperm.xlu0 %1150, %v1143
        %v1152 = vpop.permute.xlu0 %1151
        %vm1153 = vcmp.eq.s32.totalorder %v1146, 1
        %vm1154 = vcmp.eq.s32.totalorder %v1149, 1
        %vm1155 = vcmp.eq.s32.totalorder %v1152, 1
        %v1156 = vsel %vm1153, 0.0, %v1122
        %v1157 = vsel %vm1154, 0.0, %v1125
        %v1158 = vsel %vm1155, 0.0, %v1130
        loop: start=0, step=1, limit=2
        $region149: #{tpu_custom_call.1} parent=131 // loop_pre_header
          _
        $region150: #{tpu_custom_call.1} parent=131 // loop_header
          %s1160 = sphi 0, %s1164
          %p1161 = scmp.ge.s32.totalorder %s1160, 2
          %v1165 = vphi %v1024, %v2915
          %v1166 = vphi %v1027, %v2916
          %v1167 = vphi %v1156, %v2917
          %v1168 = vphi %v1157, %v2918
          %v1169 = vphi %v1158, %v2919
        $region151: #{tpu_custom_call.1} parent=131 // loop_header_branch
          %1163 = sbr.rel (%p1161) target = $region155
        $region152: #{tpu_custom_call.1} parent=131 // loop_body
          %s1170 = scalar_lea.vmem %s8, %s1160
          %v1171 = vld [vmem:[%s1170] sm:$0x1]
          %s1172 = scalar_lea.vmem %s9, %s1160
          %v1173 = vld [vmem:[%s1172] sm:$0x1]
          %vm1174 = vcmask 261120
          %v1175 = vsel %vm1174, %v1165, 0.0
          %1176 = vadd.xlane.f32.xlu0 %v1175
          %v1177 = vpop.xlane.xlu0 %1176
          %v1178 = vsel %vm1174, %v1166, 0.0
          %1179 = vadd.xlane.f32.xlu0 %v1178
          %v1180 = vpop.xlane.xlu0 %1179
          %v1181 = vsel %vm1174, %v1167, 0.0
          %1182 = vadd.xlane.f32.xlu0 %v1181
          %v1183 = vpop.xlane.xlu0 %1182
          %v1184 = vsel %vm1174, %v1168, 0.0
          %1185 = vadd.xlane.f32.xlu0 %v1184
          %v1186 = vpop.xlane.xlu0 %1185
          %vm1187 = vcmask 257024
          %v1188 = vsel %vm1187, %v1169, 0.0
          %1189 = vadd.xlane.f32.xlu0 %v1188
          %v1190 = vpop.xlane.xlu0 %1189
          %v1191 = vrcp.pop 32.0
          %v1192 = vmul.f32 %v1177, %v1191
          %v1193 = vmul.f32 %v1180, %v1191
          %v1194 = vmul.f32 %v1183, %v1191
          %v1195 = vmul.f32 %v1186, %v1191
          %v1196 = vmul.f32 %v1190, %v1191
          %v1197 = vsub.f32 %v1165, %v1192
          %v1198 = vsub.f32 %v1166, %v1193
          %v1199 = vsub.f32 %v1167, %v1194
          %v1200 = vsub.f32 %v1168, %v1195
          %v1201 = vsub.f32 %v1169, %v1196
          %v1202 = vmul.f32 %v1197, %v1197
          %v1203 = vmul.f32 %v1198, %v1198
          %v1204 = vmul.f32 %v1199, %v1199
          %v1205 = vmul.f32 %v1200, %v1200
          %v1206 = vmul.f32 %v1201, %v1201
          %v1207 = vsel %vm1174, %v1202, 0.0
          %1208 = vadd.xlane.f32.xlu0 %v1207
          %v1209 = vpop.xlane.xlu0 %1208
          %v1210 = vsel %vm1174, %v1203, 0.0
          %1211 = vadd.xlane.f32.xlu0 %v1210
          %v1212 = vpop.xlane.xlu0 %1211
          %v1213 = vsel %vm1174, %v1204, 0.0
          %1214 = vadd.xlane.f32.xlu0 %v1213
          %v1215 = vpop.xlane.xlu0 %1214
          %v1216 = vsel %vm1174, %v1205, 0.0
          %1217 = vadd.xlane.f32.xlu0 %v1216
          %v1218 = vpop.xlane.xlu0 %1217
          %v1219 = vsel %vm1187, %v1206, 0.0
          %1220 = vadd.xlane.f32.xlu0 %v1219
          %v1221 = vpop.xlane.xlu0 %1220
          %v1222 = vmul.f32 %v1209, %v1191
          %v1223 = vmul.f32 %v1212, %v1191
          %v1224 = vmul.f32 %v1215, %v1191
          %v1225 = vmul.f32 %v1218, %v1191
          %v1226 = vmul.f32 %v1221, %v1191
          %v1227 = vadd.f32 %v1222, 1e-05
          %v1228 = vadd.f32 %v1223, 1e-05
          %v1229 = vadd.f32 %v1224, 1e-05
          %v1230 = vadd.f32 %v1225, 1e-05
          %v1231 = vadd.f32 %v1226, 1e-05
          %v1232 = vrsqrt.pop %v1227
          %v1233 = vrsqrt.pop %v1228
          %v1234 = vrsqrt.pop %v1229
          %v1235 = vrsqrt.pop %v1230
          %v1236 = vrsqrt.pop %v1231
          %v1237 = vmul.f32 %v1197, %v1232
          %v1238 = vmul.f32 %v1198, %v1233
          %v1239 = vmul.f32 %v1199, %v1234
          %v1240 = vmul.f32 %v1200, %v1235
          %v1241 = vmul.f32 %v1201, %v1236
          %v1243 = vlaneseq
          %v1244 = vshrl.u32 %v1243, 7
          %v1245 = vsub.s32 0, %v1244
          %v1246 = vrot.slane %v1171, %v1245
          %v1248 = vmul.f32 %v1237, %v1246
          %v1249 = vmul.f32 %v1238, %v1246
          %v1250 = vmul.f32 %v1239, %v1246
          %v1251 = vmul.f32 %v1240, %v1246
          %v1252 = vmul.f32 %v1241, %v1246
          %v1254 = vlaneseq
          %v1255 = vshrl.u32 %v1254, 7
          %v1256 = vsub.s32 0, %v1255
          %v1257 = vrot.slane %v1173, %v1256
          %v1259 = vadd.f32 %v1248, %v1257
          %v1260 = vadd.f32 %v1249, %v1257
          %v1261 = vadd.f32 %v1250, %v1257
          %v1262 = vadd.f32 %v1251, %v1257
          %v1263 = vadd.f32 %v1252, %v1257
          %v1264 = vpack.c.bf16 %v1260, %v1259
          %v1265 = vpack.c.bf16 %v1262, %v1261
          %v1266 = vpack.c.bf16 %v1263, %v1263
          %s1267 = smul.u32 %s1160, 4
          %s1268 = smul.addr %s1267, 4
          %s1269 = scalar_lea.vmem %s10, %s1268
          %v1270 = vld [vmem:[%s1269] sm:$0xf]
          %v1271 = vld [vmem:[%s1269 + $0x4] sm:$0xf]
          %v1272 = vld [vmem:[%s1269 + $0x8] sm:$0xf]
          %v1273 = vld [vmem:[%s1269 + $0xc] sm:$0xf]
          %s1274 = scalar_lea.vmem %s13, %s1160
          %v1275 = vld [vmem:[%s1274] sm:$0x1]
          %v1277 = vlaneseq
          %v1278 = vshrl.u32 %v1277, 7
          %v1279 = vsub.s32 0, %v1278
          %v1280 = vrot.slane %v1275, %v1279
          %v1286 = vunpack.c.l.b16 %v1270
          %v1287 = vunpack.c.l.b16 %v1271
          %v1288 = vunpack.c.l.b16 %v1272
          %v1289 = vunpack.c.l.b16 %v1273
          %v1290 = vpack.c.b16 %v1287, %v1286
          %v1291 = vpack.c.b16 %v1289, %v1288
          %v1295 = vsel %vm1174, %v1264, 0
          %v1298 = vsel %vm1174, %v1265, 0
          %v1301 = vsel %vm1174, %v1266, 0
          %1303 = vmatprep.subr.bf16.mxu0 0
          %1304 = vmatpush1.bf16.msra.mxu0 0
          %1305 = vmatprep.subr.bf16.mxu0 0
          %1306 = vmatpush1.bf16.msra.mxu0 0
          %1307 = vmatprep.subr.bf16.mxu0 0
          %1308 = vmatpush1.bf16.msra.mxu0 0
          %1309 = vmatprep.subr.bf16.mxu0 0
          %1310 = vmatpush1.bf16.msra.mxu0 0
          %1311 = vmatprep.subr.bf16.mxu0 0
          %1312 = vmatpush1.bf16.msra.mxu0 0
          %1313 = vmatprep.subr.bf16.mxu0 0
          %1314 = vmatpush1.bf16.msra.mxu0 0
          %1315 = vmatprep.subr.bf16.mxu0 0
          %1316 = vmatpush1.bf16.msra.mxu0 %v1291
          %1317 = vmatprep.subr.bf16.mxu0 0
          %1318 = vmatpush1.bf16.msra.mxu0 %v1290
          %1319 = vmatprep.subr.bf16.mxu0 0
          %1320 = vmatpush2.bf16.msra.mxu0 0
          %1321 = vmatprep.subr.bf16.mxu0 0
          %1322 = vmatpush2.bf16.msra.mxu0 0
          %1323 = vmatprep.subr.bf16.mxu0 0
          %1324 = vmatpush2.bf16.msra.mxu0 0
          %1325 = vmatprep.subr.bf16.mxu0 0
          %1326 = vmatpush2.bf16.msra.mxu0 0
          %1327 = vmatprep.subr.bf16.mxu0 0
          %1328 = vmatpush2.bf16.msra.mxu0 0
          %1329 = vmatprep.subr.bf16.mxu0 0
          %1330 = vmatpush2.bf16.msra.mxu0 0
          %1331 = vmatprep.subr.bf16.mxu0 0
          %1332 = vmatpush2.bf16.msra.mxu0 0
          %1333 = vmatprep.subr.bf16.mxu0 0
          %1334 = vmatpush2.bf16.msra.mxu0 0
          %1335 = vmatprep.mubr.bf16.mxu0 0
          %1336 = vmatmul.mubr.bf16.gmra.mxu0 %v1295
          %v1337 = vpop.f32.mrf.mxu0
          %v1338 = vadd.f32 %v1280, %v1337
          %v1339 = vpop.f32.mrf.mxu0
          %v1340 = vpop.f32.mrf.mxu0
          %v1341 = vadd.f32 %v1280, %v1340
          %v1342 = vpop.f32.mrf.mxu0
          %1343 = vmatprep.mubr.bf16.mxu0 0
          %1344 = vmatmul.mubr.bf16.gmra.mxu0 %v1298
          %v1345 = vpop.f32.mrf.mxu0
          %v1346 = vadd.f32 %v1280, %v1345
          %v1347 = vpop.f32.mrf.mxu0
          %v1348 = vpop.f32.mrf.mxu0
          %v1349 = vadd.f32 %v1280, %v1348
          %v1350 = vpop.f32.mrf.mxu0
          %1351 = vmatprep.mubr.bf16.mxu0 0
          %1352 = vmatmul.mubr.bf16.gmra.mxu0 %v1301
          %v1353 = vpop.f32.mrf.mxu0
          %v1354 = vadd.f32 %v1280, %v1353
          %v1355 = vpop.f32.mrf.mxu0
          %v1356 = vpop.f32.mrf.mxu0
          %v1357 = vpop.f32.mrf.mxu0
          %1358 = vdwg.mxu0
          %s1359 = smul.addr %s1267, 4
          %s1360 = scalar_lea.vmem %s11, %s1359
          %v1361 = vld [vmem:[%s1360] sm:$0xf]
          %v1362 = vld [vmem:[%s1360 + $0x4] sm:$0xf]
          %v1363 = vld [vmem:[%s1360 + $0x8] sm:$0xf]
          %v1364 = vld [vmem:[%s1360 + $0xc] sm:$0xf]
          %s1365 = smul.u32 %s1160, 32
          %s1366 = scalar_lea.vmem %s14, %s1365
          %v1367 = vld [vmem:[%s1366] sm:$0xff]
          %v1368 = vld [vmem:[%s1366 + $0x8] sm:$0xff]
          %v1369 = vld [vmem:[%s1366 + $0x10] sm:$0xff]
          %v1370 = vld [vmem:[%s1366 + $0x18] sm:$0xff]
          %1372 = vset.pattern.permute.xlu0 0
          %1373 = vperm.xlu0 %1372, %v1367
          %v1374 = vpop.permute.xlu0 %1373
          %1377 = vset.pattern.permute.xlu0 0
          %1378 = vperm.xlu0 %1377, %v1368
          %v1379 = vpop.permute.xlu0 %1378
          %1382 = vset.pattern.permute.xlu0 0
          %1383 = vperm.xlu0 %1382, %v1369
          %v1384 = vpop.permute.xlu0 %1383
          %1387 = vset.pattern.permute.xlu0 0
          %1388 = vperm.xlu0 %1387, %v1370
          %v1389 = vpop.permute.xlu0 %1388
          %v1395 = vunpack.c.l.b16 %v1361
          %v1396 = vunpack.c.l.b16 %v1362
          %v1397 = vunpack.c.l.b16 %v1363
          %v1398 = vunpack.c.l.b16 %v1364
          %v1399 = vpack.c.b16 %v1396, %v1395
          %v1400 = vpack.c.b16 %v1398, %v1397
          %v1402 = vsel %vm1174, %v1399, 0
          %v1405 = vsel %vm1174, %v1400, 0
          %1407 = vmatprep.subr.bf16.mxu0 0
          %1408 = vmatpush1.bf16.xpose.msra.mxu0 0
          %1409 = vmatprep.subr.bf16.mxu0 0
          %1410 = vmatpush1.bf16.xpose.msra.mxu0 0
          %1411 = vmatprep.subr.bf16.mxu0 0
          %1412 = vmatpush1.bf16.xpose.msra.mxu0 0
          %1413 = vmatprep.subr.bf16.mxu0 0
          %1414 = vmatpush1.bf16.xpose.msra.mxu0 0
          %1415 = vmatprep.subr.bf16.mxu0 0
          %1416 = vmatpush1.bf16.xpose.msra.mxu0 0
          %1417 = vmatprep.subr.bf16.mxu0 0
          %1418 = vmatpush1.bf16.xpose.msra.mxu0 %v1301
          %1419 = vmatprep.subr.bf16.mxu0 0
          %1420 = vmatpush1.bf16.xpose.msra.mxu0 %v1298
          %1421 = vmatprep.subr.bf16.mxu0 0
          %1422 = vmatpush1.bf16.xpose.msra.mxu0 %v1295
          %1423 = vmatprep.subr.bf16.mxu0 0
          %1424 = vmatpush2.bf16.xpose.msra.mxu0 0
          %1425 = vmatprep.subr.bf16.mxu0 0
          %1426 = vmatpush2.bf16.xpose.msra.mxu0 0
          %1427 = vmatprep.subr.bf16.mxu0 0
          %1428 = vmatpush2.bf16.xpose.msra.mxu0 0
          %1429 = vmatprep.subr.bf16.mxu0 0
          %1430 = vmatpush2.bf16.xpose.msra.mxu0 0
          %1431 = vmatprep.subr.bf16.mxu0 0
          %1432 = vmatpush2.bf16.xpose.msra.mxu0 0
          %1433 = vmatprep.subr.bf16.mxu0 0
          %1434 = vmatpush2.bf16.xpose.msra.mxu0 0
          %1435 = vmatprep.subr.bf16.mxu0 0
          %1436 = vmatpush2.bf16.xpose.msra.mxu0 0
          %1437 = vmatprep.subr.bf16.mxu0 0
          %1438 = vmatpush2.bf16.xpose.msra.mxu0 0
          %1439 = vmatprep.mubr.bf16.mxu0 0
          %1440 = vmatmul.mubr.bf16.gmra.mxu0 %v1402
          %v1441 = vpop.f32.mrf.mxu0
          %v1442 = vadd.f32 %v1374, %v1441
          %v1443 = vpop.f32.mrf.mxu0
          %v1444 = vpop.f32.mrf.mxu0
          %v1445 = vadd.f32 %v1379, %v1444
          %v1446 = vpop.f32.mrf.mxu0
          %1447 = vmatprep.mubr.bf16.mxu0 0
          %1448 = vmatmul.mubr.bf16.gmra.mxu0 %v1405
          %v1449 = vpop.f32.mrf.mxu0
          %v1450 = vadd.f32 %v1384, %v1449
          %v1451 = vpop.f32.mrf.mxu0
          %v1452 = vpop.f32.mrf.mxu0
          %v1453 = vadd.f32 %v1389, %v1452
          %v1454 = vpop.f32.mrf.mxu0
          %1455 = vdwg.mxu0
          %s1456 = smul.addr %s1267, 4
          %s1457 = scalar_lea.vmem %s12, %s1456
          %v1458 = vld [vmem:[%s1457] sm:$0xf]
          %v1459 = vld [vmem:[%s1457 + $0x4] sm:$0xf]
          %v1460 = vld [vmem:[%s1457 + $0x8] sm:$0xf]
          %v1461 = vld [vmem:[%s1457 + $0xc] sm:$0xf]
          %s1462 = scalar_lea.vmem %s15, %s1160
          %v1463 = vld [vmem:[%s1462] sm:$0x1]
          %v1465 = vlaneseq
          %v1466 = vshrl.u32 %v1465, 7
          %v1467 = vsub.s32 0, %v1466
          %v1468 = vrot.slane %v1463, %v1467
          %v1474 = vunpack.c.l.b16 %v1458
          %v1475 = vunpack.c.l.b16 %v1459
          %v1476 = vunpack.c.l.b16 %v1460
          %v1477 = vunpack.c.l.b16 %v1461
          %v1478 = vpack.c.b16 %v1475, %v1474
          %v1479 = vpack.c.b16 %v1477, %v1476
          %1482 = vmatprep.subr.bf16.mxu0 0
          %1483 = vmatpush1.bf16.msra.mxu0 0
          %1484 = vmatprep.subr.bf16.mxu0 0
          %1485 = vmatpush1.bf16.msra.mxu0 0
          %1486 = vmatprep.subr.bf16.mxu0 0
          %1487 = vmatpush1.bf16.msra.mxu0 0
          %1488 = vmatprep.subr.bf16.mxu0 0
          %1489 = vmatpush1.bf16.msra.mxu0 0
          %1490 = vmatprep.subr.bf16.mxu0 0
          %1491 = vmatpush1.bf16.msra.mxu0 0
          %1492 = vmatprep.subr.bf16.mxu0 0
          %1493 = vmatpush1.bf16.msra.mxu0 0
          %1494 = vmatprep.subr.bf16.mxu0 0
          %1495 = vmatpush1.bf16.msra.mxu0 %v1479
          %1496 = vmatprep.subr.bf16.mxu0 0
          %1497 = vmatpush1.bf16.msra.mxu0 %v1478
          %1498 = vmatprep.subr.bf16.mxu0 0
          %1499 = vmatpush2.bf16.msra.mxu0 0
          %1500 = vmatprep.subr.bf16.mxu0 0
          %1501 = vmatpush2.bf16.msra.mxu0 0
          %1502 = vmatprep.subr.bf16.mxu0 0
          %1503 = vmatpush2.bf16.msra.mxu0 0
          %1504 = vmatprep.subr.bf16.mxu0 0
          %1505 = vmatpush2.bf16.msra.mxu0 0
          %1506 = vmatprep.subr.bf16.mxu0 0
          %1507 = vmatpush2.bf16.msra.mxu0 0
          %1508 = vmatprep.subr.bf16.mxu0 0
          %1509 = vmatpush2.bf16.msra.mxu0 0
          %1510 = vmatprep.subr.bf16.mxu0 0
          %1511 = vmatpush2.bf16.msra.mxu0 0
          %1512 = vmatprep.subr.bf16.mxu0 0
          %1513 = vmatpush2.bf16.msra.mxu0 0
          %1514 = vmatprep.mubr.bf16.mxu0 0
          %1515 = vmatmul.mubr.bf16.gmra.mxu0 %v1295
          %v1516 = vpop.f32.mrf.mxu0
          %v1517 = vadd.f32 %v1468, %v1516
          %v1518 = vpop.f32.mrf.mxu0
          %v1519 = vpop.f32.mrf.mxu0
          %v1520 = vadd.f32 %v1468, %v1519
          %v1521 = vpop.f32.mrf.mxu0
          %1522 = vmatprep.mubr.bf16.mxu0 0
          %1523 = vmatmul.mubr.bf16.gmra.mxu0 %v1298
          %v1524 = vpop.f32.mrf.mxu0
          %v1525 = vadd.f32 %v1468, %v1524
          %v1526 = vpop.f32.mrf.mxu0
          %v1527 = vpop.f32.mrf.mxu0
          %v1528 = vadd.f32 %v1468, %v1527
          %v1529 = vpop.f32.mrf.mxu0
          %1530 = vmatprep.mubr.bf16.mxu0 0
          %1531 = vmatmul.mubr.bf16.gmra.mxu0 %v1301
          %v1532 = vpop.f32.mrf.mxu0
          %v1533 = vadd.f32 %v1468, %v1532
          %v1534 = vpop.f32.mrf.mxu0
          %v1535 = vpop.f32.mrf.mxu0
          %v1536 = vpop.f32.mrf.mxu0
          %1537 = vdwg.mxu0
          %v1538 = vpack.c.bf16 %v1341, %v1338
          %v1539 = vpack.c.bf16 %v1349, %v1346
          %v1540 = vpack.c.bf16 %v1354, %v1354
          %v1541 = vpack.c.bf16 %v1445, %v1442
          %v1542 = vpack.c.bf16 %v1453, %v1450
          %v1543 = vpack.c.bf16 %v1520, %v1517
          %v1544 = vpack.c.bf16 %v1528, %v1525
          %v1545 = vpack.c.bf16 %v1533, %v1533
          %vm1546 = vcmask 64512
          %v1548 = vsel %vm1546, %v1538, 0
          %v1551 = vsel %vm1546, %v1539, 0
          %v1554 = vsel %vm1546, %v1540, 0
          %v1557 = vsel %vm1083, %v1541, 0
          %1559 = vmatprep.subr.bf16.mxu0 0
          %1560 = vmatpush1.bf16.msra.mxu0 0
          %1561 = vmatprep.subr.bf16.mxu0 0
          %1562 = vmatpush1.bf16.msra.mxu0 0
          %1563 = vmatprep.subr.bf16.mxu0 0
          %1564 = vmatpush1.bf16.msra.mxu0 0
          %1565 = vmatprep.subr.bf16.mxu0 0
          %1566 = vmatpush1.bf16.msra.mxu0 0
          %1567 = vmatprep.subr.bf16.mxu0 0
          %1568 = vmatpush1.bf16.msra.mxu0 0
          %1569 = vmatprep.subr.bf16.mxu0 0
          %1570 = vmatpush1.bf16.msra.mxu0 0
          %1571 = vmatprep.subr.bf16.mxu0 0
          %1572 = vmatpush1.bf16.msra.mxu0 0
          %1573 = vmatprep.subr.bf16.mxu0 0
          %1574 = vmatpush1.bf16.msra.mxu0 %v1557
          %1575 = vmatprep.subr.bf16.mxu0 0
          %1576 = vmatpush2.bf16.msra.mxu0 0
          %1577 = vmatprep.subr.bf16.mxu0 0
          %1578 = vmatpush2.bf16.msra.mxu0 0
          %1579 = vmatprep.subr.bf16.mxu0 0
          %1580 = vmatpush2.bf16.msra.mxu0 0
          %1581 = vmatprep.subr.bf16.mxu0 0
          %1582 = vmatpush2.bf16.msra.mxu0 0
          %1583 = vmatprep.subr.bf16.mxu0 0
          %1584 = vmatpush2.bf16.msra.mxu0 0
          %1585 = vmatprep.subr.bf16.mxu0 0
          %1586 = vmatpush2.bf16.msra.mxu0 0
          %1587 = vmatprep.subr.bf16.mxu0 0
          %1588 = vmatpush2.bf16.msra.mxu0 0
          %1589 = vmatprep.subr.bf16.mxu0 0
          %1590 = vmatpush2.bf16.msra.mxu0 0
          %1591 = vmatprep.mubr.bf16.mxu0 0
          %1592 = vmatmul.mubr.bf16.gmra.mxu0 %v1548
          %v1593 = vpop.f32.mrf.mxu0
          %v1594 = vadd.f32 0.0, %v1593
          %v1595 = vpop.f32.mrf.mxu0
          %v1596 = vpop.f32.mrf.mxu0
          %v1597 = vadd.f32 0.0, %v1596
          %v1598 = vpop.f32.mrf.mxu0
          %1599 = vmatprep.mubr.bf16.mxu0 0
          %1600 = vmatmul.mubr.bf16.gmra.mxu0 %v1551
          %v1601 = vpop.f32.mrf.mxu0
          %v1602 = vadd.f32 0.0, %v1601
          %v1603 = vpop.f32.mrf.mxu0
          %v1604 = vpop.f32.mrf.mxu0
          %v1605 = vadd.f32 0.0, %v1604
          %v1606 = vpop.f32.mrf.mxu0
          %1607 = vmatprep.mubr.bf16.mxu0 0
          %1608 = vmatmul.mubr.bf16.gmra.mxu0 %v1554
          %v1609 = vpop.f32.mrf.mxu0
          %v1610 = vadd.f32 0.0, %v1609
          %v1611 = vpop.f32.mrf.mxu0
          %v1612 = vpop.f32.mrf.mxu0
          %v1613 = vpop.f32.mrf.mxu0
          %1614 = vdwg.mxu0
          %v1615 = vmul.f32 %v1594, 0.35355338
          %v1616 = vmul.f32 %v1597, 0.35355338
          %v1617 = vmul.f32 %v1602, 0.35355338
          %v1618 = vmul.f32 %v1605, 0.35355338
          %v1619 = vmul.f32 %v1610, 0.35355338
          %vm1620 = vcmask 293888
          %v1621 = vsel %vm1620, %v1615, -inf
          %1622 = vmax.xlane.f32.xlu0 %v1621
          %v1623 = vpop.xlane.xlu0 %1622
          %v1624 = vsel %vm1620, %v1616, -inf
          %1625 = vmax.xlane.f32.xlu0 %v1624
          %v1626 = vpop.xlane.xlu0 %1625
          %v1627 = vsel %vm1620, %v1617, -inf
          %1628 = vmax.xlane.f32.xlu0 %v1627
          %v1629 = vpop.xlane.xlu0 %1628
          %v1630 = vsel %vm1620, %v1618, -inf
          %1631 = vmax.xlane.f32.xlu0 %v1630
          %v1632 = vpop.xlane.xlu0 %1631
          %vm1633 = vcmask 289792
          %v1634 = vsel %vm1633, %v1619, -inf
          %1635 = vmax.xlane.f32.xlu0 %v1634
          %v1636 = vpop.xlane.xlu0 %1635
          %v1637 = vsub.f32 %v1615, %v1623
          %v1638 = vsub.f32 %v1616, %v1626
          %v1639 = vsub.f32 %v1617, %v1629
          %v1640 = vsub.f32 %v1618, %v1632
          %v1641 = vsub.f32 %v1619, %v1636
          %v1642 = vmul.f32 %v1637, 1.442695
          %v1643 = vpow.pop %v1642
          %v1644 = vmul.f32 %v1638, 1.442695
          %v1645 = vpow.pop %v1644
          %v1646 = vmul.f32 %v1639, 1.442695
          %v1647 = vpow.pop %v1646
          %v1648 = vmul.f32 %v1640, 1.442695
          %v1649 = vpow.pop %v1648
          %v1650 = vmul.f32 %v1641, 1.442695
          %v1651 = vpow.pop %v1650
          %v1652 = vsel %vm1620, %v1643, 0.0
          %1653 = vadd.xlane.f32.xlu0 %v1652
          %v1654 = vpop.xlane.xlu0 %1653
          %v1655 = vsel %vm1620, %v1645, 0.0
          %1656 = vadd.xlane.f32.xlu0 %v1655
          %v1657 = vpop.xlane.xlu0 %1656
          %v1658 = vsel %vm1620, %v1647, 0.0
          %1659 = vadd.xlane.f32.xlu0 %v1658
          %v1660 = vpop.xlane.xlu0 %1659
          %v1661 = vsel %vm1620, %v1649, 0.0
          %1662 = vadd.xlane.f32.xlu0 %v1661
          %v1663 = vpop.xlane.xlu0 %1662
          %v1664 = vsel %vm1633, %v1651, 0.0
          %1665 = vadd.xlane.f32.xlu0 %v1664
          %v1666 = vpop.xlane.xlu0 %1665
          %v1667 = vrcp.pop %v1654
          %v1668 = vrcp.pop %v1657
          %v1669 = vrcp.pop %v1660
          %v1670 = vrcp.pop %v1663
          %v1671 = vrcp.pop %v1666
          %v1672 = vmul.f32 %v1643, %v1667
          %v1673 = vmul.f32 %v1645, %v1668
          %v1674 = vmul.f32 %v1647, %v1669
          %v1675 = vmul.f32 %v1649, %v1670
          %v1676 = vmul.f32 %v1651, %v1671
          %v1677 = vpack.c.bf16 %v1673, %v1672
          %v1678 = vpack.c.bf16 %v1675, %v1674
          %v1679 = vpack.c.bf16 %v1676, %v1676
          %v1681 = vsel %vm1620, %v1677, 0
          %v1684 = vsel %vm1620, %v1678, 0
          %v1687 = vsel %vm1620, %v1679, 0
          %vm1689 = vcmask 1041408
          %v1691 = vsel %vm1689, %v1545, 0
          %1693 = vmatprep.subr.bf16.mxu0 0
          %1694 = vmatpush1.bf16.msra.mxu0 0
          %1695 = vmatprep.subr.bf16.mxu0 0
          %1696 = vmatpush1.bf16.msra.mxu0 0
          %1697 = vmatprep.subr.bf16.mxu0 0
          %1698 = vmatpush1.bf16.msra.mxu0 0
          %1699 = vmatprep.subr.bf16.mxu0 0
          %1700 = vmatpush1.bf16.msra.mxu0 0
          %1701 = vmatprep.subr.bf16.mxu0 0
          %1702 = vmatpush1.bf16.msra.mxu0 0
          %1703 = vmatprep.subr.bf16.mxu0 0
          %1704 = vmatpush1.bf16.msra.mxu0 %v1691
          %1705 = vmatprep.subr.bf16.mxu0 0
          %1706 = vmatpush1.bf16.msra.mxu0 %v1544
          %1707 = vmatprep.subr.bf16.mxu0 0
          %1708 = vmatpush1.bf16.msra.mxu0 %v1543
          %1709 = vmatprep.subr.bf16.mxu0 0
          %1710 = vmatpush2.bf16.msra.mxu0 0
          %1711 = vmatprep.subr.bf16.mxu0 0
          %1712 = vmatpush2.bf16.msra.mxu0 0
          %1713 = vmatprep.subr.bf16.mxu0 0
          %1714 = vmatpush2.bf16.msra.mxu0 0
          %1715 = vmatprep.subr.bf16.mxu0 0
          %1716 = vmatpush2.bf16.msra.mxu0 0
          %1717 = vmatprep.subr.bf16.mxu0 0
          %1718 = vmatpush2.bf16.msra.mxu0 0
          %1719 = vmatprep.subr.bf16.mxu0 0
          %1720 = vmatpush2.bf16.msra.mxu0 0
          %1721 = vmatprep.subr.bf16.mxu0 0
          %1722 = vmatpush2.bf16.msra.mxu0 0
          %1723 = vmatprep.subr.bf16.mxu0 0
          %1724 = vmatpush2.bf16.msra.mxu0 0
          %1725 = vmatprep.mubr.bf16.mxu0 0
          %1726 = vmatmul.mubr.bf16.gmra.mxu0 %v1681
          %v1727 = vpop.f32.mrf.mxu0
          %v1728 = vadd.f32 0.0, %v1727
          %v1729 = vpop.f32.mrf.mxu0
          %v1730 = vpop.f32.mrf.mxu0
          %v1731 = vadd.f32 0.0, %v1730
          %v1732 = vpop.f32.mrf.mxu0
          %1733 = vmatprep.mubr.bf16.mxu0 0
          %1734 = vmatmul.mubr.bf16.gmra.mxu0 %v1684
          %v1735 = vpop.f32.mrf.mxu0
          %v1736 = vadd.f32 0.0, %v1735
          %v1737 = vpop.f32.mrf.mxu0
          %v1738 = vpop.f32.mrf.mxu0
          %v1739 = vadd.f32 0.0, %v1738
          %v1740 = vpop.f32.mrf.mxu0
          %1741 = vmatprep.mubr.bf16.mxu0 0
          %1742 = vmatmul.mubr.bf16.gmra.mxu0 %v1687
          %v1743 = vpop.f32.mrf.mxu0
          %v1744 = vadd.f32 0.0, %v1743
          %v1745 = vpop.f32.mrf.mxu0
          %v1746 = vpop.f32.mrf.mxu0
          %v1747 = vpop.f32.mrf.mxu0
          %1748 = vdwg.mxu0
          %1752 = vrot.lane.b32.xlu0 %v1538, 120
          %v1753 = vpop.permute.xlu0 %1752
          %1754 = vrot.lane.b32.xlu0 %v1539, 120
          %v1755 = vpop.permute.xlu0 %1754
          %1756 = vrot.lane.b32.xlu0 %v1540, 120
          %v1757 = vpop.permute.xlu0 %1756
          %v1759 = vrot.slane %v1541, 4
          %v1761 = vsel %vm1546, %v1753, 0
          %v1764 = vsel %vm1546, %v1755, 0
          %v1767 = vsel %vm1546, %v1757, 0
          %v1770 = vsel %vm1083, %v1759, 0
          %1772 = vmatprep.subr.bf16.mxu0 0
          %1773 = vmatpush1.bf16.msra.mxu0 0
          %1774 = vmatprep.subr.bf16.mxu0 0
          %1775 = vmatpush1.bf16.msra.mxu0 0
          %1776 = vmatprep.subr.bf16.mxu0 0
          %1777 = vmatpush1.bf16.msra.mxu0 0
          %1778 = vmatprep.subr.bf16.mxu0 0
          %1779 = vmatpush1.bf16.msra.mxu0 0
          %1780 = vmatprep.subr.bf16.mxu0 0
          %1781 = vmatpush1.bf16.msra.mxu0 0
          %1782 = vmatprep.subr.bf16.mxu0 0
          %1783 = vmatpush1.bf16.msra.mxu0 0
          %1784 = vmatprep.subr.bf16.mxu0 0
          %1785 = vmatpush1.bf16.msra.mxu0 0
          %1786 = vmatprep.subr.bf16.mxu0 0
          %1787 = vmatpush1.bf16.msra.mxu0 %v1770
          %1788 = vmatprep.subr.bf16.mxu0 0
          %1789 = vmatpush2.bf16.msra.mxu0 0
          %1790 = vmatprep.subr.bf16.mxu0 0
          %1791 = vmatpush2.bf16.msra.mxu0 0
          %1792 = vmatprep.subr.bf16.mxu0 0
          %1793 = vmatpush2.bf16.msra.mxu0 0
          %1794 = vmatprep.subr.bf16.mxu0 0
          %1795 = vmatpush2.bf16.msra.mxu0 0
          %1796 = vmatprep.subr.bf16.mxu0 0
          %1797 = vmatpush2.bf16.msra.mxu0 0
          %1798 = vmatprep.subr.bf16.mxu0 0
          %1799 = vmatpush2.bf16.msra.mxu0 0
          %1800 = vmatprep.subr.bf16.mxu0 0
          %1801 = vmatpush2.bf16.msra.mxu0 0
          %1802 = vmatprep.subr.bf16.mxu0 0
          %1803 = vmatpush2.bf16.msra.mxu0 0
          %1804 = vmatprep.mubr.bf16.mxu0 0
          %1805 = vmatmul.mubr.bf16.gmra.mxu0 %v1761
          %v1806 = vpop.f32.mrf.mxu0
          %v1807 = vadd.f32 0.0, %v1806
          %v1808 = vpop.f32.mrf.mxu0
          %v1809 = vpop.f32.mrf.mxu0
          %v1810 = vadd.f32 0.0, %v1809
          %v1811 = vpop.f32.mrf.mxu0
          %1812 = vmatprep.mubr.bf16.mxu0 0
          %1813 = vmatmul.mubr.bf16.gmra.mxu0 %v1764
          %v1814 = vpop.f32.mrf.mxu0
          %v1815 = vadd.f32 0.0, %v1814
          %v1816 = vpop.f32.mrf.mxu0
          %v1817 = vpop.f32.mrf.mxu0
          %v1818 = vadd.f32 0.0, %v1817
          %v1819 = vpop.f32.mrf.mxu0
          %1820 = vmatprep.mubr.bf16.mxu0 0
          %1821 = vmatmul.mubr.bf16.gmra.mxu0 %v1767
          %v1822 = vpop.f32.mrf.mxu0
          %v1823 = vadd.f32 0.0, %v1822
          %v1824 = vpop.f32.mrf.mxu0
          %v1825 = vpop.f32.mrf.mxu0
          %v1826 = vpop.f32.mrf.mxu0
          %1827 = vdwg.mxu0
          %v1828 = vmul.f32 %v1807, 0.35355338
          %v1829 = vmul.f32 %v1810, 0.35355338
          %v1830 = vmul.f32 %v1815, 0.35355338
          %v1831 = vmul.f32 %v1818, 0.35355338
          %v1832 = vmul.f32 %v1823, 0.35355338
          %v1833 = vsel %vm1620, %v1828, -inf
          %1834 = vmax.xlane.f32.xlu0 %v1833
          %v1835 = vpop.xlane.xlu0 %1834
          %v1836 = vsel %vm1620, %v1829, -inf
          %1837 = vmax.xlane.f32.xlu0 %v1836
          %v1838 = vpop.xlane.xlu0 %1837
          %v1839 = vsel %vm1620, %v1830, -inf
          %1840 = vmax.xlane.f32.xlu0 %v1839
          %v1841 = vpop.xlane.xlu0 %1840
          %v1842 = vsel %vm1620, %v1831, -inf
          %1843 = vmax.xlane.f32.xlu0 %v1842
          %v1844 = vpop.xlane.xlu0 %1843
          %v1845 = vsel %vm1633, %v1832, -inf
          %1846 = vmax.xlane.f32.xlu0 %v1845
          %v1847 = vpop.xlane.xlu0 %1846
          %v1848 = vsub.f32 %v1828, %v1835
          %v1849 = vsub.f32 %v1829, %v1838
          %v1850 = vsub.f32 %v1830, %v1841
          %v1851 = vsub.f32 %v1831, %v1844
          %v1852 = vsub.f32 %v1832, %v1847
          %v1853 = vmul.f32 %v1848, 1.442695
          %v1854 = vpow.pop %v1853
          %v1855 = vmul.f32 %v1849, 1.442695
          %v1856 = vpow.pop %v1855
          %v1857 = vmul.f32 %v1850, 1.442695
          %v1858 = vpow.pop %v1857
          %v1859 = vmul.f32 %v1851, 1.442695
          %v1860 = vpow.pop %v1859
          %v1861 = vmul.f32 %v1852, 1.442695
          %v1862 = vpow.pop %v1861
          %v1863 = vsel %vm1620, %v1854, 0.0
          %1864 = vadd.xlane.f32.xlu0 %v1863
          %v1865 = vpop.xlane.xlu0 %1864
          %v1866 = vsel %vm1620, %v1856, 0.0
          %1867 = vadd.xlane.f32.xlu0 %v1866
          %v1868 = vpop.xlane.xlu0 %1867
          %v1869 = vsel %vm1620, %v1858, 0.0
          %1870 = vadd.xlane.f32.xlu0 %v1869
          %v1871 = vpop.xlane.xlu0 %1870
          %v1872 = vsel %vm1620, %v1860, 0.0
          %1873 = vadd.xlane.f32.xlu0 %v1872
          %v1874 = vpop.xlane.xlu0 %1873
          %v1875 = vsel %vm1633, %v1862, 0.0
          %1876 = vadd.xlane.f32.xlu0 %v1875
          %v1877 = vpop.xlane.xlu0 %1876
          %v1878 = vrcp.pop %v1865
          %v1879 = vrcp.pop %v1868
          %v1880 = vrcp.pop %v1871
          %v1881 = vrcp.pop %v1874
          %v1882 = vrcp.pop %v1877
          %v1883 = vmul.f32 %v1854, %v1878
          %v1884 = vmul.f32 %v1856, %v1879
          %v1885 = vmul.f32 %v1858, %v1880
          %v1886 = vmul.f32 %v1860, %v1881
          %v1887 = vmul.f32 %v1862, %v1882
          %v1888 = vpack.c.bf16 %v1884, %v1883
          %v1889 = vpack.c.bf16 %v1886, %v1885
          %v1890 = vpack.c.bf16 %v1887, %v1887
          %1894 = vrot.lane.b32.xlu0 %v1543, 120
          %v1895 = vpop.permute.xlu0 %1894
          %1896 = vrot.lane.b32.xlu0 %v1544, 120
          %v1897 = vpop.permute.xlu0 %1896
          %1898 = vrot.lane.b32.xlu0 %v1545, 120
          %v1899 = vpop.permute.xlu0 %1898
          %v1903 = vsel %vm1620, %v1888, 0
          %v1906 = vsel %vm1620, %v1889, 0
          %v1909 = vsel %vm1620, %v1890, 0
          %v1912 = vsel %vm1689, %v1899, 0
          %1914 = vmatprep.subr.bf16.mxu0 0
          %1915 = vmatpush1.bf16.msra.mxu0 0
          %1916 = vmatprep.subr.bf16.mxu0 0
          %1917 = vmatpush1.bf16.msra.mxu0 0
          %1918 = vmatprep.subr.bf16.mxu0 0
          %1919 = vmatpush1.bf16.msra.mxu0 0
          %1920 = vmatprep.subr.bf16.mxu0 0
          %1921 = vmatpush1.bf16.msra.mxu0 0
          %1922 = vmatprep.subr.bf16.mxu0 0
          %1923 = vmatpush1.bf16.msra.mxu0 0
          %1924 = vmatprep.subr.bf16.mxu0 0
          %1925 = vmatpush1.bf16.msra.mxu0 %v1912
          %1926 = vmatprep.subr.bf16.mxu0 0
          %1927 = vmatpush1.bf16.msra.mxu0 %v1897
          %1928 = vmatprep.subr.bf16.mxu0 0
          %1929 = vmatpush1.bf16.msra.mxu0 %v1895
          %1930 = vmatprep.subr.bf16.mxu0 0
          %1931 = vmatpush2.bf16.msra.mxu0 0
          %1932 = vmatprep.subr.bf16.mxu0 0
          %1933 = vmatpush2.bf16.msra.mxu0 0
          %1934 = vmatprep.subr.bf16.mxu0 0
          %1935 = vmatpush2.bf16.msra.mxu0 0
          %1936 = vmatprep.subr.bf16.mxu0 0
          %1937 = vmatpush2.bf16.msra.mxu0 0
          %1938 = vmatprep.subr.bf16.mxu0 0
          %1939 = vmatpush2.bf16.msra.mxu0 0
          %1940 = vmatprep.subr.bf16.mxu0 0
          %1941 = vmatpush2.bf16.msra.mxu0 0
          %1942 = vmatprep.subr.bf16.mxu0 0
          %1943 = vmatpush2.bf16.msra.mxu0 0
          %1944 = vmatprep.subr.bf16.mxu0 0
          %1945 = vmatpush2.bf16.msra.mxu0 0
          %1946 = vmatprep.mubr.bf16.mxu0 0
          %1947 = vmatmul.mubr.bf16.gmra.mxu0 %v1903
          %v1948 = vpop.f32.mrf.mxu0
          %v1949 = vadd.f32 0.0, %v1948
          %v1950 = vpop.f32.mrf.mxu0
          %v1951 = vpop.f32.mrf.mxu0
          %v1952 = vadd.f32 0.0, %v1951
          %v1953 = vpop.f32.mrf.mxu0
          %1954 = vmatprep.mubr.bf16.mxu0 0
          %1955 = vmatmul.mubr.bf16.gmra.mxu0 %v1906
          %v1956 = vpop.f32.mrf.mxu0
          %v1957 = vadd.f32 0.0, %v1956
          %v1958 = vpop.f32.mrf.mxu0
          %v1959 = vpop.f32.mrf.mxu0
          %v1960 = vadd.f32 0.0, %v1959
          %v1961 = vpop.f32.mrf.mxu0
          %1962 = vmatprep.mubr.bf16.mxu0 0
          %1963 = vmatmul.mubr.bf16.gmra.mxu0 %v1909
          %v1964 = vpop.f32.mrf.mxu0
          %v1965 = vadd.f32 0.0, %v1964
          %v1966 = vpop.f32.mrf.mxu0
          %v1967 = vpop.f32.mrf.mxu0
          %v1968 = vpop.f32.mrf.mxu0
          %1969 = vdwg.mxu0
          %1970 = vrot.lane.b32.xlu0 %v1538, 112
          %v1971 = vpop.permute.xlu0 %1970
          %1972 = vrot.lane.b32.xlu0 %v1539, 112
          %v1973 = vpop.permute.xlu0 %1972
          %1974 = vrot.lane.b32.xlu0 %v1540, 112
          %v1975 = vpop.permute.xlu0 %1974
          %v1977 = vsel %vm1546, %v1971, 0
          %v1980 = vsel %vm1546, %v1973, 0
          %v1983 = vsel %vm1546, %v1975, 0
          %v1986 = vsel %vm1083, %v1542, 0
          %1988 = vmatprep.subr.bf16.mxu0 0
          %1989 = vmatpush1.bf16.msra.mxu0 0
          %1990 = vmatprep.subr.bf16.mxu0 0
          %1991 = vmatpush1.bf16.msra.mxu0 0
          %1992 = vmatprep.subr.bf16.mxu0 0
          %1993 = vmatpush1.bf16.msra.mxu0 0
          %1994 = vmatprep.subr.bf16.mxu0 0
          %1995 = vmatpush1.bf16.msra.mxu0 0
          %1996 = vmatprep.subr.bf16.mxu0 0
          %1997 = vmatpush1.bf16.msra.mxu0 0
          %1998 = vmatprep.subr.bf16.mxu0 0
          %1999 = vmatpush1.bf16.msra.mxu0 0
          %2000 = vmatprep.subr.bf16.mxu0 0
          %2001 = vmatpush1.bf16.msra.mxu0 0
          %2002 = vmatprep.subr.bf16.mxu0 0
          %2003 = vmatpush1.bf16.msra.mxu0 %v1986
          %2004 = vmatprep.subr.bf16.mxu0 0
          %2005 = vmatpush2.bf16.msra.mxu0 0
          %2006 = vmatprep.subr.bf16.mxu0 0
          %2007 = vmatpush2.bf16.msra.mxu0 0
          %2008 = vmatprep.subr.bf16.mxu0 0
          %2009 = vmatpush2.bf16.msra.mxu0 0
          %2010 = vmatprep.subr.bf16.mxu0 0
          %2011 = vmatpush2.bf16.msra.mxu0 0
          %2012 = vmatprep.subr.bf16.mxu0 0
          %2013 = vmatpush2.bf16.msra.mxu0 0
          %2014 = vmatprep.subr.bf16.mxu0 0
          %2015 = vmatpush2.bf16.msra.mxu0 0
          %2016 = vmatprep.subr.bf16.mxu0 0
          %2017 = vmatpush2.bf16.msra.mxu0 0
          %2018 = vmatprep.subr.bf16.mxu0 0
          %2019 = vmatpush2.bf16.msra.mxu0 0
          %2020 = vmatprep.mubr.bf16.mxu0 0
          %2021 = vmatmul.mubr.bf16.gmra.mxu0 %v1977
          %v2022 = vpop.f32.mrf.mxu0
          %v2023 = vadd.f32 0.0, %v2022
          %v2024 = vpop.f32.mrf.mxu0
          %v2025 = vpop.f32.mrf.mxu0
          %v2026 = vadd.f32 0.0, %v2025
          %v2027 = vpop.f32.mrf.mxu0
          %2028 = vmatprep.mubr.bf16.mxu0 0
          %2029 = vmatmul.mubr.bf16.gmra.mxu0 %v1980
          %v2030 = vpop.f32.mrf.mxu0
          %v2031 = vadd.f32 0.0, %v2030
          %v2032 = vpop.f32.mrf.mxu0
          %v2033 = vpop.f32.mrf.mxu0
          %v2034 = vadd.f32 0.0, %v2033
          %v2035 = vpop.f32.mrf.mxu0
          %2036 = vmatprep.mubr.bf16.mxu0 0
          %2037 = vmatmul.mubr.bf16.gmra.mxu0 %v1983
          %v2038 = vpop.f32.mrf.mxu0
          %v2039 = vadd.f32 0.0, %v2038
          %v2040 = vpop.f32.mrf.mxu0
          %v2041 = vpop.f32.mrf.mxu0
          %v2042 = vpop.f32.mrf.mxu0
          %2043 = vdwg.mxu0
          %v2044 = vmul.f32 %v2023, 0.35355338
          %v2045 = vmul.f32 %v2026, 0.35355338
          %v2046 = vmul.f32 %v2031, 0.35355338
          %v2047 = vmul.f32 %v2034, 0.35355338
          %v2048 = vmul.f32 %v2039, 0.35355338
          %v2049 = vsel %vm1620, %v2044, -inf
          %2050 = vmax.xlane.f32.xlu0 %v2049
          %v2051 = vpop.xlane.xlu0 %2050
          %v2052 = vsel %vm1620, %v2045, -inf
          %2053 = vmax.xlane.f32.xlu0 %v2052
          %v2054 = vpop.xlane.xlu0 %2053
          %v2055 = vsel %vm1620, %v2046, -inf
          %2056 = vmax.xlane.f32.xlu0 %v2055
          %v2057 = vpop.xlane.xlu0 %2056
          %v2058 = vsel %vm1620, %v2047, -inf
          %2059 = vmax.xlane.f32.xlu0 %v2058
          %v2060 = vpop.xlane.xlu0 %2059
          %v2061 = vsel %vm1633, %v2048, -inf
          %2062 = vmax.xlane.f32.xlu0 %v2061
          %v2063 = vpop.xlane.xlu0 %2062
          %v2064 = vsub.f32 %v2044, %v2051
          %v2065 = vsub.f32 %v2045, %v2054
          %v2066 = vsub.f32 %v2046, %v2057
          %v2067 = vsub.f32 %v2047, %v2060
          %v2068 = vsub.f32 %v2048, %v2063
          %v2069 = vmul.f32 %v2064, 1.442695
          %v2070 = vpow.pop %v2069
          %v2071 = vmul.f32 %v2065, 1.442695
          %v2072 = vpow.pop %v2071
          %v2073 = vmul.f32 %v2066, 1.442695
          %v2074 = vpow.pop %v2073
          %v2075 = vmul.f32 %v2067, 1.442695
          %v2076 = vpow.pop %v2075
          %v2077 = vmul.f32 %v2068, 1.442695
          %v2078 = vpow.pop %v2077
          %v2079 = vsel %vm1620, %v2070, 0.0
          %2080 = vadd.xlane.f32.xlu0 %v2079
          %v2081 = vpop.xlane.xlu0 %2080
          %v2082 = vsel %vm1620, %v2072, 0.0
          %2083 = vadd.xlane.f32.xlu0 %v2082
          %v2084 = vpop.xlane.xlu0 %2083
          %v2085 = vsel %vm1620, %v2074, 0.0
          %2086 = vadd.xlane.f32.xlu0 %v2085
          %v2087 = vpop.xlane.xlu0 %2086
          %v2088 = vsel %vm1620, %v2076, 0.0
          %2089 = vadd.xlane.f32.xlu0 %v2088
          %v2090 = vpop.xlane.xlu0 %2089
          %v2091 = vsel %vm1633, %v2078, 0.0
          %2092 = vadd.xlane.f32.xlu0 %v2091
          %v2093 = vpop.xlane.xlu0 %2092
          %v2094 = vrcp.pop %v2081
          %v2095 = vrcp.pop %v2084
          %v2096 = vrcp.pop %v2087
          %v2097 = vrcp.pop %v2090
          %v2098 = vrcp.pop %v2093
          %v2099 = vmul.f32 %v2070, %v2094
          %v2100 = vmul.f32 %v2072, %v2095
          %v2101 = vmul.f32 %v2074, %v2096
          %v2102 = vmul.f32 %v2076, %v2097
          %v2103 = vmul.f32 %v2078, %v2098
          %v2104 = vpack.c.bf16 %v2100, %v2099
          %v2105 = vpack.c.bf16 %v2102, %v2101
          %v2106 = vpack.c.bf16 %v2103, %v2103
          %2107 = vrot.lane.b32.xlu0 %v1543, 112
          %v2108 = vpop.permute.xlu0 %2107
          %2109 = vrot.lane.b32.xlu0 %v1544, 112
          %v2110 = vpop.permute.xlu0 %2109
          %2111 = vrot.lane.b32.xlu0 %v1545, 112
          %v2112 = vpop.permute.xlu0 %2111
          %v2116 = vsel %vm1620, %v2104, 0
          %v2119 = vsel %vm1620, %v2105, 0
          %v2122 = vsel %vm1620, %v2106, 0
          %v2125 = vsel %vm1689, %v2112, 0
          %2127 = vmatprep.subr.bf16.mxu0 0
          %2128 = vmatpush1.bf16.msra.mxu0 0
          %2129 = vmatprep.subr.bf16.mxu0 0
          %2130 = vmatpush1.bf16.msra.mxu0 0
          %2131 = vmatprep.subr.bf16.mxu0 0
          %2132 = vmatpush1.bf16.msra.mxu0 0
          %2133 = vmatprep.subr.bf16.mxu0 0
          %2134 = vmatpush1.bf16.msra.mxu0 0
          %2135 = vmatprep.subr.bf16.mxu0 0
          %2136 = vmatpush1.bf16.msra.mxu0 0
          %2137 = vmatprep.subr.bf16.mxu0 0
          %2138 = vmatpush1.bf16.msra.mxu0 %v2125
          %2139 = vmatprep.subr.bf16.mxu0 0
          %2140 = vmatpush1.bf16.msra.mxu0 %v2110
          %2141 = vmatprep.subr.bf16.mxu0 0
          %2142 = vmatpush1.bf16.msra.mxu0 %v2108
          %2143 = vmatprep.subr.bf16.mxu0 0
          %2144 = vmatpush2.bf16.msra.mxu0 0
          %2145 = vmatprep.subr.bf16.mxu0 0
          %2146 = vmatpush2.bf16.msra.mxu0 0
          %2147 = vmatprep.subr.bf16.mxu0 0
          %2148 = vmatpush2.bf16.msra.mxu0 0
          %2149 = vmatprep.subr.bf16.mxu0 0
          %2150 = vmatpush2.bf16.msra.mxu0 0
          %2151 = vmatprep.subr.bf16.mxu0 0
          %2152 = vmatpush2.bf16.msra.mxu0 0
          %2153 = vmatprep.subr.bf16.mxu0 0
          %2154 = vmatpush2.bf16.msra.mxu0 0
          %2155 = vmatprep.subr.bf16.mxu0 0
          %2156 = vmatpush2.bf16.msra.mxu0 0
          %2157 = vmatprep.subr.bf16.mxu0 0
          %2158 = vmatpush2.bf16.msra.mxu0 0
          %2159 = vmatprep.mubr.bf16.mxu0 0
          %2160 = vmatmul.mubr.bf16.gmra.mxu0 %v2116
          %v2161 = vpop.f32.mrf.mxu0
          %v2162 = vadd.f32 0.0, %v2161
          %v2163 = vpop.f32.mrf.mxu0
          %v2164 = vpop.f32.mrf.mxu0
          %v2165 = vadd.f32 0.0, %v2164
          %v2166 = vpop.f32.mrf.mxu0
          %2167 = vmatprep.mubr.bf16.mxu0 0
          %2168 = vmatmul.mubr.bf16.gmra.mxu0 %v2119
          %v2169 = vpop.f32.mrf.mxu0
          %v2170 = vadd.f32 0.0, %v2169
          %v2171 = vpop.f32.mrf.mxu0
          %v2172 = vpop.f32.mrf.mxu0
          %v2173 = vadd.f32 0.0, %v2172
          %v2174 = vpop.f32.mrf.mxu0
          %2175 = vmatprep.mubr.bf16.mxu0 0
          %2176 = vmatmul.mubr.bf16.gmra.mxu0 %v2122
          %v2177 = vpop.f32.mrf.mxu0
          %v2178 = vadd.f32 0.0, %v2177
          %v2179 = vpop.f32.mrf.mxu0
          %v2180 = vpop.f32.mrf.mxu0
          %v2181 = vpop.f32.mrf.mxu0
          %2182 = vdwg.mxu0
          %2183 = vrot.lane.b32.xlu0 %v1538, 104
          %v2184 = vpop.permute.xlu0 %2183
          %2185 = vrot.lane.b32.xlu0 %v1539, 104
          %v2186 = vpop.permute.xlu0 %2185
          %2187 = vrot.lane.b32.xlu0 %v1540, 104
          %v2188 = vpop.permute.xlu0 %2187
          %v2190 = vrot.slane %v1542, 4
          %v2192 = vsel %vm1546, %v2184, 0
          %v2195 = vsel %vm1546, %v2186, 0
          %v2198 = vsel %vm1546, %v2188, 0
          %v2201 = vsel %vm1083, %v2190, 0
          %2203 = vmatprep.subr.bf16.mxu0 0
          %2204 = vmatpush1.bf16.msra.mxu0 0
          %2205 = vmatprep.subr.bf16.mxu0 0
          %2206 = vmatpush1.bf16.msra.mxu0 0
          %2207 = vmatprep.subr.bf16.mxu0 0
          %2208 = vmatpush1.bf16.msra.mxu0 0
          %2209 = vmatprep.subr.bf16.mxu0 0
          %2210 = vmatpush1.bf16.msra.mxu0 0
          %2211 = vmatprep.subr.bf16.mxu0 0
          %2212 = vmatpush1.bf16.msra.mxu0 0
          %2213 = vmatprep.subr.bf16.mxu0 0
          %2214 = vmatpush1.bf16.msra.mxu0 0
          %2215 = vmatprep.subr.bf16.mxu0 0
          %2216 = vmatpush1.bf16.msra.mxu0 0
          %2217 = vmatprep.subr.bf16.mxu0 0
          %2218 = vmatpush1.bf16.msra.mxu0 %v2201
          %2219 = vmatprep.subr.bf16.mxu0 0
          %2220 = vmatpush2.bf16.msra.mxu0 0
          %2221 = vmatprep.subr.bf16.mxu0 0
          %2222 = vmatpush2.bf16.msra.mxu0 0
          %2223 = vmatprep.subr.bf16.mxu0 0
          %2224 = vmatpush2.bf16.msra.mxu0 0
          %2225 = vmatprep.subr.bf16.mxu0 0
          %2226 = vmatpush2.bf16.msra.mxu0 0
          %2227 = vmatprep.subr.bf16.mxu0 0
          %2228 = vmatpush2.bf16.msra.mxu0 0
          %2229 = vmatprep.subr.bf16.mxu0 0
          %2230 = vmatpush2.bf16.msra.mxu0 0
          %2231 = vmatprep.subr.bf16.mxu0 0
          %2232 = vmatpush2.bf16.msra.mxu0 0
          %2233 = vmatprep.subr.bf16.mxu0 0
          %2234 = vmatpush2.bf16.msra.mxu0 0
          %2235 = vmatprep.mubr.bf16.mxu0 0
          %2236 = vmatmul.mubr.bf16.gmra.mxu0 %v2192
          %v2237 = vpop.f32.mrf.mxu0
          %v2238 = vadd.f32 0.0, %v2237
          %v2239 = vpop.f32.mrf.mxu0
          %v2240 = vpop.f32.mrf.mxu0
          %v2241 = vadd.f32 0.0, %v2240
          %v2242 = vpop.f32.mrf.mxu0
          %2243 = vmatprep.mubr.bf16.mxu0 0
          %2244 = vmatmul.mubr.bf16.gmra.mxu0 %v2195
          %v2245 = vpop.f32.mrf.mxu0
          %v2246 = vadd.f32 0.0, %v2245
          %v2247 = vpop.f32.mrf.mxu0
          %v2248 = vpop.f32.mrf.mxu0
          %v2249 = vadd.f32 0.0, %v2248
          %v2250 = vpop.f32.mrf.mxu0
          %2251 = vmatprep.mubr.bf16.mxu0 0
          %2252 = vmatmul.mubr.bf16.gmra.mxu0 %v2198
          %v2253 = vpop.f32.mrf.mxu0
          %v2254 = vadd.f32 0.0, %v2253
          %v2255 = vpop.f32.mrf.mxu0
          %v2256 = vpop.f32.mrf.mxu0
          %v2257 = vpop.f32.mrf.mxu0
          %2258 = vdwg.mxu0
          %v2259 = vmul.f32 %v2238, 0.35355338
          %v2260 = vmul.f32 %v2241, 0.35355338
          %v2261 = vmul.f32 %v2246, 0.35355338
          %v2262 = vmul.f32 %v2249, 0.35355338
          %v2263 = vmul.f32 %v2254, 0.35355338
          %v2264 = vsel %vm1620, %v2259, -inf
          %2265 = vmax.xlane.f32.xlu0 %v2264
          %v2266 = vpop.xlane.xlu0 %2265
          %v2267 = vsel %vm1620, %v2260, -inf
          %2268 = vmax.xlane.f32.xlu0 %v2267
          %v2269 = vpop.xlane.xlu0 %2268
          %v2270 = vsel %vm1620, %v2261, -inf
          %2271 = vmax.xlane.f32.xlu0 %v2270
          %v2272 = vpop.xlane.xlu0 %2271
          %v2273 = vsel %vm1620, %v2262, -inf
          %2274 = vmax.xlane.f32.xlu0 %v2273
          %v2275 = vpop.xlane.xlu0 %2274
          %v2276 = vsel %vm1633, %v2263, -inf
          %2277 = vmax.xlane.f32.xlu0 %v2276
          %v2278 = vpop.xlane.xlu0 %2277
          %v2279 = vsub.f32 %v2259, %v2266
          %v2280 = vsub.f32 %v2260, %v2269
          %v2281 = vsub.f32 %v2261, %v2272
          %v2282 = vsub.f32 %v2262, %v2275
          %v2283 = vsub.f32 %v2263, %v2278
          %v2284 = vmul.f32 %v2279, 1.442695
          %v2285 = vpow.pop %v2284
          %v2286 = vmul.f32 %v2280, 1.442695
          %v2287 = vpow.pop %v2286
          %v2288 = vmul.f32 %v2281, 1.442695
          %v2289 = vpow.pop %v2288
          %v2290 = vmul.f32 %v2282, 1.442695
          %v2291 = vpow.pop %v2290
          %v2292 = vmul.f32 %v2283, 1.442695
          %v2293 = vpow.pop %v2292
          %v2294 = vsel %vm1620, %v2285, 0.0
          %2295 = vadd.xlane.f32.xlu0 %v2294
          %v2296 = vpop.xlane.xlu0 %2295
          %v2297 = vsel %vm1620, %v2287, 0.0
          %2298 = vadd.xlane.f32.xlu0 %v2297
          %v2299 = vpop.xlane.xlu0 %2298
          %v2300 = vsel %vm1620, %v2289, 0.0
          %2301 = vadd.xlane.f32.xlu0 %v2300
          %v2302 = vpop.xlane.xlu0 %2301
          %v2303 = vsel %vm1620, %v2291, 0.0
          %2304 = vadd.xlane.f32.xlu0 %v2303
          %v2305 = vpop.xlane.xlu0 %2304
          %v2306 = vsel %vm1633, %v2293, 0.0
          %2307 = vadd.xlane.f32.xlu0 %v2306
          %v2308 = vpop.xlane.xlu0 %2307
          %v2309 = vrcp.pop %v2296
          %v2310 = vrcp.pop %v2299
          %v2311 = vrcp.pop %v2302
          %v2312 = vrcp.pop %v2305
          %v2313 = vrcp.pop %v2308
          %v2314 = vmul.f32 %v2285, %v2309
          %v2315 = vmul.f32 %v2287, %v2310
          %v2316 = vmul.f32 %v2289, %v2311
          %v2317 = vmul.f32 %v2291, %v2312
          %v2318 = vmul.f32 %v2293, %v2313
          %v2319 = vpack.c.bf16 %v2315, %v2314
          %v2320 = vpack.c.bf16 %v2317, %v2316
          %v2321 = vpack.c.bf16 %v2318, %v2318
          %2322 = vrot.lane.b32.xlu0 %v1543, 104
          %v2323 = vpop.permute.xlu0 %2322
          %2324 = vrot.lane.b32.xlu0 %v1544, 104
          %v2325 = vpop.permute.xlu0 %2324
          %2326 = vrot.lane.b32.xlu0 %v1545, 104
          %v2327 = vpop.permute.xlu0 %2326
          %v2331 = vsel %vm1620, %v2319, 0
          %v2334 = vsel %vm1620, %v2320, 0
          %v2337 = vsel %vm1620, %v2321, 0
          %v2340 = vsel %vm1689, %v2327, 0
          %2342 = vmatprep.subr.bf16.mxu0 0
          %2343 = vmatpush1.bf16.msra.mxu0 0
          %2344 = vmatprep.subr.bf16.mxu0 0
          %2345 = vmatpush1.bf16.msra.mxu0 0
          %2346 = vmatprep.subr.bf16.mxu0 0
          %2347 = vmatpush1.bf16.msra.mxu0 0
          %2348 = vmatprep.subr.bf16.mxu0 0
          %2349 = vmatpush1.bf16.msra.mxu0 0
          %2350 = vmatprep.subr.bf16.mxu0 0
          %2351 = vmatpush1.bf16.msra.mxu0 0
          %2352 = vmatprep.subr.bf16.mxu0 0
          %2353 = vmatpush1.bf16.msra.mxu0 %v2340
          %2354 = vmatprep.subr.bf16.mxu0 0
          %2355 = vmatpush1.bf16.msra.mxu0 %v2325
          %2356 = vmatprep.subr.bf16.mxu0 0
          %2357 = vmatpush1.bf16.msra.mxu0 %v2323
          %2358 = vmatprep.subr.bf16.mxu0 0
          %2359 = vmatpush2.bf16.msra.mxu0 0
          %2360 = vmatprep.subr.bf16.mxu0 0
          %2361 = vmatpush2.bf16.msra.mxu0 0
          %2362 = vmatprep.subr.bf16.mxu0 0
          %2363 = vmatpush2.bf16.msra.mxu0 0
          %2364 = vmatprep.subr.bf16.mxu0 0
          %2365 = vmatpush2.bf16.msra.mxu0 0
          %2366 = vmatprep.subr.bf16.mxu0 0
          %2367 = vmatpush2.bf16.msra.mxu0 0
          %2368 = vmatprep.subr.bf16.mxu0 0
          %2369 = vmatpush2.bf16.msra.mxu0 0
          %2370 = vmatprep.subr.bf16.mxu0 0
          %2371 = vmatpush2.bf16.msra.mxu0 0
          %2372 = vmatprep.subr.bf16.mxu0 0
          %2373 = vmatpush2.bf16.msra.mxu0 0
          %2374 = vmatprep.mubr.bf16.mxu0 0
          %2375 = vmatmul.mubr.bf16.gmra.mxu0 %v2331
          %v2376 = vpop.f32.mrf.mxu0
          %v2377 = vadd.f32 0.0, %v2376
          %v2378 = vpop.f32.mrf.mxu0
          %v2379 = vpop.f32.mrf.mxu0
          %v2380 = vadd.f32 0.0, %v2379
          %v2381 = vpop.f32.mrf.mxu0
          %2382 = vmatprep.mubr.bf16.mxu0 0
          %2383 = vmatmul.mubr.bf16.gmra.mxu0 %v2334
          %v2384 = vpop.f32.mrf.mxu0
          %v2385 = vadd.f32 0.0, %v2384
          %v2386 = vpop.f32.mrf.mxu0
          %v2387 = vpop.f32.mrf.mxu0
          %v2388 = vadd.f32 0.0, %v2387
          %v2389 = vpop.f32.mrf.mxu0
          %2390 = vmatprep.mubr.bf16.mxu0 0
          %2391 = vmatmul.mubr.bf16.gmra.mxu0 %v2337
          %v2392 = vpop.f32.mrf.mxu0
          %v2393 = vadd.f32 0.0, %v2392
          %v2394 = vpop.f32.mrf.mxu0
          %v2395 = vpop.f32.mrf.mxu0
          %v2396 = vpop.f32.mrf.mxu0
          %2397 = vdwg.mxu0
          %2403 = vrot.lane.b32.xlu0 %v1949, 8
          %v2404 = vpop.permute.xlu0 %2403
          %2405 = vrot.lane.b32.xlu0 %v1952, 8
          %v2406 = vpop.permute.xlu0 %2405
          %2407 = vrot.lane.b32.xlu0 %v1957, 8
          %v2408 = vpop.permute.xlu0 %2407
          %2409 = vrot.lane.b32.xlu0 %v1960, 8
          %v2410 = vpop.permute.xlu0 %2409
          %2411 = vrot.lane.b32.xlu0 %v1965, 8
          %v2412 = vpop.permute.xlu0 %2411
          %2423 = vrot.lane.b32.xlu0 %v2162, 16
          %v2424 = vpop.permute.xlu0 %2423
          %2425 = vrot.lane.b32.xlu0 %v2165, 16
          %v2426 = vpop.permute.xlu0 %2425
          %2427 = vrot.lane.b32.xlu0 %v2170, 16
          %v2428 = vpop.permute.xlu0 %2427
          %2429 = vrot.lane.b32.xlu0 %v2173, 16
          %v2430 = vpop.permute.xlu0 %2429
          %2431 = vrot.lane.b32.xlu0 %v2178, 16
          %v2432 = vpop.permute.xlu0 %2431
          %2443 = vrot.lane.b32.xlu0 %v2377, 24
          %v2444 = vpop.permute.xlu0 %2443
          %2445 = vrot.lane.b32.xlu0 %v2380, 24
          %v2446 = vpop.permute.xlu0 %2445
          %2447 = vrot.lane.b32.xlu0 %v2385, 24
          %v2448 = vpop.permute.xlu0 %2447
          %2449 = vrot.lane.b32.xlu0 %v2388, 24
          %v2450 = vpop.permute.xlu0 %2449
          %2451 = vrot.lane.b32.xlu0 %v2393, 24
          %v2452 = vpop.permute.xlu0 %2451
          %v2458 = vsel %vm1546, %v1728, %v2404
          %v2459 = vsel %vm1546, %v1731, %v2406
          %v2460 = vsel %vm1546, %v1736, %v2408
          %v2461 = vsel %vm1546, %v1739, %v2410
          %v2462 = vsel %vm1546, %v1744, %v2412
          %vm2463 = vcmask 130048
          %v2464 = vsel %vm2463, %v2458, %v2424
          %v2465 = vsel %vm2463, %v2459, %v2426
          %v2466 = vsel %vm2463, %v2460, %v2428
          %v2467 = vsel %vm2463, %v2461, %v2430
          %v2468 = vsel %vm2463, %v2462, %v2432
          %v2469 = vsel %vm1036, %v2464, %v2444
          %v2470 = vsel %vm1036, %v2465, %v2446
          %v2471 = vsel %vm1036, %v2466, %v2448
          %v2472 = vsel %vm1036, %v2467, %v2450
          %v2473 = vsel %vm1036, %v2468, %v2452
          %v2474 = vpack.c.bf16 %v2470, %v2469
          %v2475 = vpack.c.bf16 %v2472, %v2471
          %v2476 = vpack.c.bf16 %v2473, %v2473
          %s2477 = smul.addr %s1267, 4
          %s2478 = scalar_lea.vmem %s16, %s2477
          %v2479 = vld [vmem:[%s2478] sm:$0xf]
          %v2480 = vld [vmem:[%s2478 + $0x4] sm:$0xf]
          %v2481 = vld [vmem:[%s2478 + $0x8] sm:$0xf]
          %v2482 = vld [vmem:[%s2478 + $0xc] sm:$0xf]
          %s2483 = scalar_lea.vmem %s17, %s1160
          %v2484 = vld [vmem:[%s2483] sm:$0x1]
          %v2486 = vlaneseq
          %v2487 = vshrl.u32 %v2486, 7
          %v2488 = vsub.s32 0, %v2487
          %v2489 = vrot.slane %v2484, %v2488
          %v2495 = vunpack.c.l.b16 %v2479
          %v2496 = vunpack.c.l.b16 %v2480
          %v2497 = vunpack.c.l.b16 %v2481
          %v2498 = vunpack.c.l.b16 %v2482
          %v2499 = vpack.c.b16 %v2496, %v2495
          %v2500 = vpack.c.b16 %v2498, %v2497
          %v2504 = vsel %vm1174, %v2474, 0
          %v2507 = vsel %vm1174, %v2475, 0
          %v2510 = vsel %vm1174, %v2476, 0
          %2512 = vmatprep.subr.bf16.mxu0 0
          %2513 = vmatpush1.bf16.msra.mxu0 0
          %2514 = vmatprep.subr.bf16.mxu0 0
          %2515 = vmatpush1.bf16.msra.mxu0 0
          %2516 = vmatprep.subr.bf16.mxu0 0
          %2517 = vmatpush1.bf16.msra.mxu0 0
          %2518 = vmatprep.subr.bf16.mxu0 0
          %2519 = vmatpush1.bf16.msra.mxu0 0
          %2520 = vmatprep.subr.bf16.mxu0 0
          %2521 = vmatpush1.bf16.msra.mxu0 0
          %2522 = vmatprep.subr.bf16.mxu0 0
          %2523 = vmatpush1.bf16.msra.mxu0 0
          %2524 = vmatprep.subr.bf16.mxu0 0
          %2525 = vmatpush1.bf16.msra.mxu0 %v2500
          %2526 = vmatprep.subr.bf16.mxu0 0
          %2527 = vmatpush1.bf16.msra.mxu0 %v2499
          %2528 = vmatprep.subr.bf16.mxu0 0
          %2529 = vmatpush2.bf16.msra.mxu0 0
          %2530 = vmatprep.subr.bf16.mxu0 0
          %2531 = vmatpush2.bf16.msra.mxu0 0
          %2532 = vmatprep.subr.bf16.mxu0 0
          %2533 = vmatpush2.bf16.msra.mxu0 0
          %2534 = vmatprep.subr.bf16.mxu0 0
          %2535 = vmatpush2.bf16.msra.mxu0 0
          %2536 = vmatprep.subr.bf16.mxu0 0
          %2537 = vmatpush2.bf16.msra.mxu0 0
          %2538 = vmatprep.subr.bf16.mxu0 0
          %2539 = vmatpush2.bf16.msra.mxu0 0
          %2540 = vmatprep.subr.bf16.mxu0 0
          %2541 = vmatpush2.bf16.msra.mxu0 0
          %2542 = vmatprep.subr.bf16.mxu0 0
          %2543 = vmatpush2.bf16.msra.mxu0 0
          %2544 = vmatprep.mubr.bf16.mxu0 0
          %2545 = vmatmul.mubr.bf16.gmra.mxu0 %v2504
          %v2546 = vpop.f32.mrf.mxu0
          %v2547 = vadd.f32 %v2489, %v2546
          %v2548 = vpop.f32.mrf.mxu0
          %v2549 = vpop.f32.mrf.mxu0
          %v2550 = vadd.f32 %v2489, %v2549
          %v2551 = vpop.f32.mrf.mxu0
          %2552 = vmatprep.mubr.bf16.mxu0 0
          %2553 = vmatmul.mubr.bf16.gmra.mxu0 %v2507
          %v2554 = vpop.f32.mrf.mxu0
          %v2555 = vadd.f32 %v2489, %v2554
          %v2556 = vpop.f32.mrf.mxu0
          %v2557 = vpop.f32.mrf.mxu0
          %v2558 = vadd.f32 %v2489, %v2557
          %v2559 = vpop.f32.mrf.mxu0
          %2560 = vmatprep.mubr.bf16.mxu0 0
          %2561 = vmatmul.mubr.bf16.gmra.mxu0 %v2510
          %v2562 = vpop.f32.mrf.mxu0
          %v2563 = vadd.f32 %v2489, %v2562
          %v2564 = vpop.f32.mrf.mxu0
          %v2565 = vpop.f32.mrf.mxu0
          %v2566 = vpop.f32.mrf.mxu0
          %2567 = vdwg.mxu0
          %v2568 = vadd.f32 %v1165, %v2547
          %v2569 = vadd.f32 %v1166, %v2550
          %v2570 = vadd.f32 %v1167, %v2555
          %v2571 = vadd.f32 %v1168, %v2558
          %v2572 = vadd.f32 %v1169, %v2563
          %s2573 = scalar_lea.vmem %s18, %s1160
          %v2574 = vld [vmem:[%s2573] sm:$0x1]
          %s2575 = scalar_lea.vmem %s19, %s1160
          %v2576 = vld [vmem:[%s2575] sm:$0x1]
          %v2577 = vsel %vm1174, %v2568, 0.0
          %2578 = vadd.xlane.f32.xlu0 %v2577
          %v2579 = vpop.xlane.xlu0 %2578
          %v2580 = vsel %vm1174, %v2569, 0.0
          %2581 = vadd.xlane.f32.xlu0 %v2580
          %v2582 = vpop.xlane.xlu0 %2581
          %v2583 = vsel %vm1174, %v2570, 0.0
          %2584 = vadd.xlane.f32.xlu0 %v2583
          %v2585 = vpop.xlane.xlu0 %2584
          %v2586 = vsel %vm1174, %v2571, 0.0
          %2587 = vadd.xlane.f32.xlu0 %v2586
          %v2588 = vpop.xlane.xlu0 %2587
          %v2589 = vsel %vm1187, %v2572, 0.0
          %2590 = vadd.xlane.f32.xlu0 %v2589
          %v2591 = vpop.xlane.xlu0 %2590
          %v2592 = vmul.f32 %v2579, %v1191
          %v2593 = vmul.f32 %v2582, %v1191
          %v2594 = vmul.f32 %v2585, %v1191
          %v2595 = vmul.f32 %v2588, %v1191
          %v2596 = vmul.f32 %v2591, %v1191
          %v2597 = vsub.f32 %v2568, %v2592
          %v2598 = vsub.f32 %v2569, %v2593
          %v2599 = vsub.f32 %v2570, %v2594
          %v2600 = vsub.f32 %v2571, %v2595
          %v2601 = vsub.f32 %v2572, %v2596
          %v2602 = vmul.f32 %v2597, %v2597
          %v2603 = vmul.f32 %v2598, %v2598
          %v2604 = vmul.f32 %v2599, %v2599
          %v2605 = vmul.f32 %v2600, %v2600
          %v2606 = vmul.f32 %v2601, %v2601
          %v2607 = vsel %vm1174, %v2602, 0.0
          %2608 = vadd.xlane.f32.xlu0 %v2607
          %v2609 = vpop.xlane.xlu0 %2608
          %v2610 = vsel %vm1174, %v2603, 0.0
          %2611 = vadd.xlane.f32.xlu0 %v2610
          %v2612 = vpop.xlane.xlu0 %2611
          %v2613 = vsel %vm1174, %v2604, 0.0
          %2614 = vadd.xlane.f32.xlu0 %v2613
          %v2615 = vpop.xlane.xlu0 %2614
          %v2616 = vsel %vm1174, %v2605, 0.0
          %2617 = vadd.xlane.f32.xlu0 %v2616
          %v2618 = vpop.xlane.xlu0 %2617
          %v2619 = vsel %vm1187, %v2606, 0.0
          %2620 = vadd.xlane.f32.xlu0 %v2619
          %v2621 = vpop.xlane.xlu0 %2620
          %v2622 = vmul.f32 %v2609, %v1191
          %v2623 = vmul.f32 %v2612, %v1191
          %v2624 = vmul.f32 %v2615, %v1191
          %v2625 = vmul.f32 %v2618, %v1191
          %v2626 = vmul.f32 %v2621, %v1191
          %v2627 = vadd.f32 %v2622, 1e-05
          %v2628 = vadd.f32 %v2623, 1e-05
          %v2629 = vadd.f32 %v2624, 1e-05
          %v2630 = vadd.f32 %v2625, 1e-05
          %v2631 = vadd.f32 %v2626, 1e-05
          %v2632 = vrsqrt.pop %v2627
          %v2633 = vrsqrt.pop %v2628
          %v2634 = vrsqrt.pop %v2629
          %v2635 = vrsqrt.pop %v2630
          %v2636 = vrsqrt.pop %v2631
          %v2637 = vmul.f32 %v2597, %v2632
          %v2638 = vmul.f32 %v2598, %v2633
          %v2639 = vmul.f32 %v2599, %v2634
          %v2640 = vmul.f32 %v2600, %v2635
          %v2641 = vmul.f32 %v2601, %v2636
          %v2643 = vlaneseq
          %v2644 = vshrl.u32 %v2643, 7
          %v2645 = vsub.s32 0, %v2644
          %v2646 = vrot.slane %v2574, %v2645
          %v2648 = vmul.f32 %v2637, %v2646
          %v2649 = vmul.f32 %v2638, %v2646
          %v2650 = vmul.f32 %v2639, %v2646
          %v2651 = vmul.f32 %v2640, %v2646
          %v2652 = vmul.f32 %v2641, %v2646
          %v2654 = vlaneseq
          %v2655 = vshrl.u32 %v2654, 7
          %v2656 = vsub.s32 0, %v2655
          %v2657 = vrot.slane %v2576, %v2656
          %v2659 = vadd.f32 %v2648, %v2657
          %v2660 = vadd.f32 %v2649, %v2657
          %v2661 = vadd.f32 %v2650, %v2657
          %v2662 = vadd.f32 %v2651, %v2657
          %v2663 = vadd.f32 %v2652, %v2657
          %v2664 = vpack.c.bf16 %v2660, %v2659
          %v2665 = vpack.c.bf16 %v2662, %v2661
          %v2666 = vpack.c.bf16 %v2663, %v2663
          %s2667 = smul.addr %s1267, 4
          %s2668 = scalar_lea.vmem %s20, %s2667
          %v2669 = vld [vmem:[%s2668] sm:$0xf]
          %v2670 = vld [vmem:[%s2668 + $0x4] sm:$0xf]
          %v2671 = vld [vmem:[%s2668 + $0x8] sm:$0xf]
          %v2672 = vld [vmem:[%s2668 + $0xc] sm:$0xf]
          %s2673 = scalar_lea.vmem %s21, %s1160
          %v2674 = vld [vmem:[%s2673] sm:$0x1]
          %v2676 = vlaneseq
          %v2677 = vshrl.u32 %v2676, 7
          %v2678 = vsub.s32 0, %v2677
          %v2679 = vrot.slane %v2674, %v2678
          %v2685 = vunpack.c.l.b16 %v2669
          %v2686 = vunpack.c.l.b16 %v2670
          %v2687 = vunpack.c.l.b16 %v2671
          %v2688 = vunpack.c.l.b16 %v2672
          %v2689 = vpack.c.b16 %v2686, %v2685
          %v2690 = vpack.c.b16 %v2688, %v2687
          %v2694 = vsel %vm1174, %v2664, 0
          %v2697 = vsel %vm1174, %v2665, 0
          %v2700 = vsel %vm1174, %v2666, 0
          %2702 = vmatprep.subr.bf16.mxu0 0
          %2703 = vmatpush1.bf16.msra.mxu0 0
          %2704 = vmatprep.subr.bf16.mxu0 0
          %2705 = vmatpush1.bf16.msra.mxu0 0
          %2706 = vmatprep.subr.bf16.mxu0 0
          %2707 = vmatpush1.bf16.msra.mxu0 0
          %2708 = vmatprep.subr.bf16.mxu0 0
          %2709 = vmatpush1.bf16.msra.mxu0 0
          %2710 = vmatprep.subr.bf16.mxu0 0
          %2711 = vmatpush1.bf16.msra.mxu0 0
          %2712 = vmatprep.subr.bf16.mxu0 0
          %2713 = vmatpush1.bf16.msra.mxu0 0
          %2714 = vmatprep.subr.bf16.mxu0 0
          %2715 = vmatpush1.bf16.msra.mxu0 %v2690
          %2716 = vmatprep.subr.bf16.mxu0 0
          %2717 = vmatpush1.bf16.msra.mxu0 %v2689
          %2718 = vmatprep.subr.bf16.mxu0 0
          %2719 = vmatpush2.bf16.msra.mxu0 0
          %2720 = vmatprep.subr.bf16.mxu0 0
          %2721 = vmatpush2.bf16.msra.mxu0 0
          %2722 = vmatprep.subr.bf16.mxu0 0
          %2723 = vmatpush2.bf16.msra.mxu0 0
          %2724 = vmatprep.subr.bf16.mxu0 0
          %2725 = vmatpush2.bf16.msra.mxu0 0
          %2726 = vmatprep.subr.bf16.mxu0 0
          %2727 = vmatpush2.bf16.msra.mxu0 0
          %2728 = vmatprep.subr.bf16.mxu0 0
          %2729 = vmatpush2.bf16.msra.mxu0 0
          %2730 = vmatprep.subr.bf16.mxu0 0
          %2731 = vmatpush2.bf16.msra.mxu0 0
          %2732 = vmatprep.subr.bf16.mxu0 0
          %2733 = vmatpush2.bf16.msra.mxu0 0
          %2734 = vmatprep.mubr.bf16.mxu0 0
          %2735 = vmatmul.mubr.bf16.gmra.mxu0 %v2694
          %v2736 = vpop.f32.mrf.mxu0
          %v2737 = vadd.f32 %v2679, %v2736
          %v2738 = vpop.f32.mrf.mxu0
          %v2739 = vpop.f32.mrf.mxu0
          %v2740 = vadd.f32 %v2679, %v2739
          %v2741 = vpop.f32.mrf.mxu0
          %2742 = vmatprep.mubr.bf16.mxu0 0
          %2743 = vmatmul.mubr.bf16.gmra.mxu0 %v2697
          %v2744 = vpop.f32.mrf.mxu0
          %v2745 = vadd.f32 %v2679, %v2744
          %v2746 = vpop.f32.mrf.mxu0
          %v2747 = vpop.f32.mrf.mxu0
          %v2748 = vadd.f32 %v2679, %v2747
          %v2749 = vpop.f32.mrf.mxu0
          %2750 = vmatprep.mubr.bf16.mxu0 0
          %2751 = vmatmul.mubr.bf16.gmra.mxu0 %v2700
          %v2752 = vpop.f32.mrf.mxu0
          %v2753 = vadd.f32 %v2679, %v2752
          %v2754 = vpop.f32.mrf.mxu0
          %v2755 = vpop.f32.mrf.mxu0
          %v2756 = vpop.f32.mrf.mxu0
          %2757 = vdwg.mxu0
          %v2758 = vmul.f32 %v2737, 0.5
          %v2759 = vmul.f32 %v2740, 0.5
          %v2760 = vmul.f32 %v2745, 0.5
          %v2761 = vmul.f32 %v2748, 0.5
          %v2762 = vmul.f32 %v2753, 0.5
          %v2763 = vmul.f32 %v2737, 0.044715
          %v2764 = vmul.f32 %v2740, 0.044715
          %v2765 = vmul.f32 %v2745, 0.044715
          %v2766 = vmul.f32 %v2748, 0.044715
          %v2767 = vmul.f32 %v2753, 0.044715
          %v2768 = vmul.f32 %v2763, %v2737
          %v2769 = vmul.f32 %v2764, %v2740
          %v2770 = vmul.f32 %v2765, %v2745
          %v2771 = vmul.f32 %v2766, %v2748
          %v2772 = vmul.f32 %v2767, %v2753
          %v2773 = vmul.f32 %v2768, %v2737
          %v2774 = vmul.f32 %v2769, %v2740
          %v2775 = vmul.f32 %v2770, %v2745
          %v2776 = vmul.f32 %v2771, %v2748
          %v2777 = vmul.f32 %v2772, %v2753
          %v2778 = vadd.f32 %v2737, %v2773
          %v2779 = vadd.f32 %v2740, %v2774
          %v2780 = vadd.f32 %v2745, %v2775
          %v2781 = vadd.f32 %v2748, %v2776
          %v2782 = vadd.f32 %v2753, %v2777
          %v2783 = vmul.f32 %v2778, 0.7978846
          %v2784 = vmul.f32 %v2779, 0.7978846
          %v2785 = vmul.f32 %v2780, 0.7978846
          %v2786 = vmul.f32 %v2781, 0.7978846
          %v2787 = vmul.f32 %v2782, 0.7978846
          %v2788 = vtanh.pop %v2783
          %v2789 = vtanh.pop %v2784
          %v2790 = vtanh.pop %v2785
          %v2791 = vtanh.pop %v2786
          %v2792 = vtanh.pop %v2787
          %v2793 = vadd.f32 %v2788, 1.0
          %v2794 = vadd.f32 %v2789, 1.0
          %v2795 = vadd.f32 %v2790, 1.0
          %v2796 = vadd.f32 %v2791, 1.0
          %v2797 = vadd.f32 %v2792, 1.0
          %v2798 = vmul.f32 %v2758, %v2793
          %v2799 = vmul.f32 %v2759, %v2794
          %v2800 = vmul.f32 %v2760, %v2795
          %v2801 = vmul.f32 %v2761, %v2796
          %v2802 = vmul.f32 %v2762, %v2797
          %v2803 = vpack.c.bf16 %v2799, %v2798
          %v2804 = vpack.c.bf16 %v2801, %v2800
          %v2805 = vpack.c.bf16 %v2802, %v2802
          %s2806 = smul.u32 %s1160, 8
          %s2807 = smul.addr %s2806, 4
          %s2808 = scalar_lea.vmem %s22, %s2807
          %v2809 = vld [vmem:[%s2808] sm:$0xf]
          %v2810 = vld [vmem:[%s2808 + $0x4] sm:$0xf]
          %v2811 = vld [vmem:[%s2808 + $0x8] sm:$0xf]
          %v2812 = vld [vmem:[%s2808 + $0xc] sm:$0xf]
          %v2813 = vld [vmem:[%s2808 + $0x10] sm:$0xf]
          %v2814 = vld [vmem:[%s2808 + $0x14] sm:$0xf]
          %v2815 = vld [vmem:[%s2808 + $0x18] sm:$0xf]
          %v2816 = vld [vmem:[%s2808 + $0x1c] sm:$0xf]
          %s2817 = scalar_lea.vmem [#allocation8], %s1160
          %v2818 = vld [vmem:[%s2817] sm:$0x1]
          %v2820 = vlaneseq
          %v2821 = vshrl.u32 %v2820, 7
          %v2822 = vsub.s32 0, %v2821
          %v2823 = vrot.slane %v2818, %v2822
          %v2833 = vunpack.c.l.b16 %v2809
          %v2834 = vunpack.c.l.b16 %v2810
          %v2835 = vunpack.c.l.b16 %v2811
          %v2836 = vunpack.c.l.b16 %v2812
          %v2837 = vunpack.c.l.b16 %v2813
          %v2838 = vunpack.c.l.b16 %v2814
          %v2839 = vunpack.c.l.b16 %v2815
          %v2840 = vunpack.c.l.b16 %v2816
          %v2841 = vpack.c.b16 %v2834, %v2833
          %v2842 = vpack.c.b16 %v2836, %v2835
          %v2843 = vpack.c.b16 %v2838, %v2837
          %v2844 = vpack.c.b16 %v2840, %v2839
          %vm2849 = vcmask 523264
          %v2851 = vsel %vm2849, %v2803, 0
          %v2854 = vsel %vm2849, %v2804, 0
          %v2857 = vsel %vm2849, %v2805, 0
          %2859 = vmatprep.subr.bf16.mxu0 0
          %2860 = vmatpush1.bf16.msra.mxu0 0
          %2861 = vmatprep.subr.bf16.mxu0 0
          %2862 = vmatpush1.bf16.msra.mxu0 0
          %2863 = vmatprep.subr.bf16.mxu0 0
          %2864 = vmatpush1.bf16.msra.mxu0 0
          %2865 = vmatprep.subr.bf16.mxu0 0
          %2866 = vmatpush1.bf16.msra.mxu0 0
          %2867 = vmatprep.subr.bf16.mxu0 0
          %2868 = vmatpush1.bf16.msra.mxu0 %v2844
          %2869 = vmatprep.subr.bf16.mxu0 0
          %2870 = vmatpush1.bf16.msra.mxu0 %v2843
          %2871 = vmatprep.subr.bf16.mxu0 0
          %2872 = vmatpush1.bf16.msra.mxu0 %v2842
          %2873 = vmatprep.subr.bf16.mxu0 0
          %2874 = vmatpush1.bf16.msra.mxu0 %v2841
          %2875 = vmatprep.subr.bf16.mxu0 0
          %2876 = vmatpush2.bf16.msra.mxu0 0
          %2877 = vmatprep.subr.bf16.mxu0 0
          %2878 = vmatpush2.bf16.msra.mxu0 0
          %2879 = vmatprep.subr.bf16.mxu0 0
          %2880 = vmatpush2.bf16.msra.mxu0 0
          %2881 = vmatprep.subr.bf16.mxu0 0
          %2882 = vmatpush2.bf16.msra.mxu0 0
          %2883 = vmatprep.subr.bf16.mxu0 0
          %2884 = vmatpush2.bf16.msra.mxu0 0
          %2885 = vmatprep.subr.bf16.mxu0 0
          %2886 = vmatpush2.bf16.msra.mxu0 0
          %2887 = vmatprep.subr.bf16.mxu0 0
          %2888 = vmatpush2.bf16.msra.mxu0 0
          %2889 = vmatprep.subr.bf16.mxu0 0
          %2890 = vmatpush2.bf16.msra.mxu0 0
          %2891 = vmatprep.mubr.bf16.mxu0 0
          %2892 = vmatmul.mubr.bf16.gmra.mxu0 %v2851
          %v2893 = vpop.f32.mrf.mxu0
          %v2894 = vadd.f32 %v2823, %v2893
          %v2895 = vpop.f32.mrf.mxu0
          %v2896 = vpop.f32.mrf.mxu0
          %v2897 = vadd.f32 %v2823, %v2896
          %v2898 = vpop.f32.mrf.mxu0
          %2899 = vmatprep.mubr.bf16.mxu0 0
          %2900 = vmatmul.mubr.bf16.gmra.mxu0 %v2854
          %v2901 = vpop.f32.mrf.mxu0
          %v2902 = vadd.f32 %v2823, %v2901
          %v2903 = vpop.f32.mrf.mxu0
          %v2904 = vpop.f32.mrf.mxu0
          %v2905 = vadd.f32 %v2823, %v2904
          %v2906 = vpop.f32.mrf.mxu0
          %2907 = vmatprep.mubr.bf16.mxu0 0
          %2908 = vmatmul.mubr.bf16.gmra.mxu0 %v2857
          %v2909 = vpop.f32.mrf.mxu0
          %v2910 = vadd.f32 %v2823, %v2909
          %v2911 = vpop.f32.mrf.mxu0
          %v2912 = vpop.f32.mrf.mxu0
          %v2913 = vpop.f32.mrf.mxu0
          %2914 = vdwg.mxu0
          %v2915 = vadd.f32 %v2568, %v2894
          %v2916 = vadd.f32 %v2569, %v2897
          %v2917 = vadd.f32 %v2570, %v2902
          %v2918 = vadd.f32 %v2571, %v2905
          %v2919 = vadd.f32 %v2572, %v2910
        $region153: #{tpu_custom_call.1} parent=131 // loop_footer
          %s1164 = sadd.s32 1, %s1160
        $region154: #{tpu_custom_call.1} parent=131 // loop_footer_branch
          %1159 = sbr.rel target = $region150
        $region155: #{tpu_custom_call.1} parent=131 // loop_exit
          _
        %v2920 = vld [vmem:[#allocation7] sm:$0x1]
        %v2922 = vlaneseq
        %v2923 = vshrl.u32 %v2922, 7
        %v2924 = vsub.s32 0, %v2923
        %v2925 = vrot.slane %v2920, %v2924
        %v2927 = vsel %vm1083, %v1169, %v2925
        loop: start=2, step=1, limit=4
        $region156: #{tpu_custom_call.1} parent=131 // loop_pre_header
          _
        $region157: #{tpu_custom_call.1} parent=131 // loop_header
          %s2929 = sphi 2, %s2933
          %p2930 = scmp.ge.s32.totalorder %s2929, 4
          %v2934 = vphi %v1167, %v4312
          %v2935 = vphi %v1168, %v4313
          %v2936 = vphi %v2927, %v4314
        $region158: #{tpu_custom_call.1} parent=131 // loop_header_branch
          %2932 = sbr.rel (%p2930) target = $region162
        $region159: #{tpu_custom_call.1} parent=131 // loop_body
          %s2937 = scalar_lea.vmem %s8, %s2929
          %v2938 = vld [vmem:[%s2937] sm:$0x1]
          %s2939 = scalar_lea.vmem %s9, %s2929
          %v2940 = vld [vmem:[%s2939] sm:$0x1]
          %vm2941 = vcmask 261120
          %v2942 = vsel %vm2941, %v2934, 0.0
          %2943 = vadd.xlane.f32.xlu0 %v2942
          %v2944 = vpop.xlane.xlu0 %2943
          %v2945 = vsel %vm2941, %v2935, 0.0
          %2946 = vadd.xlane.f32.xlu0 %v2945
          %v2947 = vpop.xlane.xlu0 %2946
          %vm2948 = vcmask 258048
          %v2949 = vsel %vm2948, %v2936, 0.0
          %2950 = vadd.xlane.f32.xlu0 %v2949
          %v2951 = vpop.xlane.xlu0 %2950
          %v2952 = vrcp.pop 32.0
          %v2953 = vmul.f32 %v2944, %v2952
          %v2954 = vmul.f32 %v2947, %v2952
          %v2955 = vmul.f32 %v2951, %v2952
          %v2956 = vsub.f32 %v2934, %v2953
          %v2957 = vsub.f32 %v2935, %v2954
          %v2958 = vsub.f32 %v2936, %v2955
          %v2959 = vmul.f32 %v2956, %v2956
          %v2960 = vmul.f32 %v2957, %v2957
          %v2961 = vmul.f32 %v2958, %v2958
          %v2962 = vsel %vm2941, %v2959, 0.0
          %2963 = vadd.xlane.f32.xlu0 %v2962
          %v2964 = vpop.xlane.xlu0 %2963
          %v2965 = vsel %vm2941, %v2960, 0.0
          %2966 = vadd.xlane.f32.xlu0 %v2965
          %v2967 = vpop.xlane.xlu0 %2966
          %v2968 = vsel %vm2948, %v2961, 0.0
          %2969 = vadd.xlane.f32.xlu0 %v2968
          %v2970 = vpop.xlane.xlu0 %2969
          %v2971 = vmul.f32 %v2964, %v2952
          %v2972 = vmul.f32 %v2967, %v2952
          %v2973 = vmul.f32 %v2970, %v2952
          %v2974 = vadd.f32 %v2971, 1e-05
          %v2975 = vadd.f32 %v2972, 1e-05
          %v2976 = vadd.f32 %v2973, 1e-05
          %v2977 = vrsqrt.pop %v2974
          %v2978 = vrsqrt.pop %v2975
          %v2979 = vrsqrt.pop %v2976
          %v2980 = vmul.f32 %v2956, %v2977
          %v2981 = vmul.f32 %v2957, %v2978
          %v2982 = vmul.f32 %v2958, %v2979
          %v2984 = vlaneseq
          %v2985 = vshrl.u32 %v2984, 7
          %v2986 = vsub.s32 0, %v2985
          %v2987 = vrot.slane %v2938, %v2986
          %v2989 = vmul.f32 %v2980, %v2987
          %v2990 = vmul.f32 %v2981, %v2987
          %v2991 = vmul.f32 %v2982, %v2987
          %v2993 = vlaneseq
          %v2994 = vshrl.u32 %v2993, 7
          %v2995 = vsub.s32 0, %v2994
          %v2996 = vrot.slane %v2940, %v2995
          %v2998 = vadd.f32 %v2989, %v2996
          %v2999 = vadd.f32 %v2990, %v2996
          %v3000 = vadd.f32 %v2991, %v2996
          %v3001 = vpack.c.bf16 %v2999, %v2998
          %v3002 = vpack.c.bf16 %v3000, %v3000
          %s3003 = smul.u32 %s2929, 4
          %s3004 = smul.addr %s3003, 4
          %s3005 = scalar_lea.vmem %s10, %s3004
          %v3006 = vld [vmem:[%s3005] sm:$0xf]
          %v3007 = vld [vmem:[%s3005 + $0x4] sm:$0xf]
          %v3008 = vld [vmem:[%s3005 + $0x8] sm:$0xf]
          %v3009 = vld [vmem:[%s3005 + $0xc] sm:$0xf]
          %s3010 = scalar_lea.vmem %s13, %s2929
          %v3011 = vld [vmem:[%s3010] sm:$0x1]
          %v3013 = vlaneseq
          %v3014 = vshrl.u32 %v3013, 7
          %v3015 = vsub.s32 0, %v3014
          %v3016 = vrot.slane %v3011, %v3015
          %v3022 = vunpack.c.l.b16 %v3006
          %v3023 = vunpack.c.l.b16 %v3007
          %v3024 = vunpack.c.l.b16 %v3008
          %v3025 = vunpack.c.l.b16 %v3009
          %v3026 = vpack.c.b16 %v3023, %v3022
          %v3027 = vpack.c.b16 %v3025, %v3024
          %v3031 = vsel %vm2941, %v3001, 0
          %v3034 = vsel %vm2941, %v3002, 0
          %3036 = vmatprep.subr.bf16.mxu0 0
          %3037 = vmatpush1.bf16.msra.mxu0 0
          %3038 = vmatprep.subr.bf16.mxu0 0
          %3039 = vmatpush1.bf16.msra.mxu0 0
          %3040 = vmatprep.subr.bf16.mxu0 0
          %3041 = vmatpush1.bf16.msra.mxu0 0
          %3042 = vmatprep.subr.bf16.mxu0 0
          %3043 = vmatpush1.bf16.msra.mxu0 0
          %3044 = vmatprep.subr.bf16.mxu0 0
          %3045 = vmatpush1.bf16.msra.mxu0 0
          %3046 = vmatprep.subr.bf16.mxu0 0
          %3047 = vmatpush1.bf16.msra.mxu0 0
          %3048 = vmatprep.subr.bf16.mxu0 0
          %3049 = vmatpush1.bf16.msra.mxu0 %v3027
          %3050 = vmatprep.subr.bf16.mxu0 0
          %3051 = vmatpush1.bf16.msra.mxu0 %v3026
          %3052 = vmatprep.subr.bf16.mxu0 0
          %3053 = vmatpush2.bf16.msra.mxu0 0
          %3054 = vmatprep.subr.bf16.mxu0 0
          %3055 = vmatpush2.bf16.msra.mxu0 0
          %3056 = vmatprep.subr.bf16.mxu0 0
          %3057 = vmatpush2.bf16.msra.mxu0 0
          %3058 = vmatprep.subr.bf16.mxu0 0
          %3059 = vmatpush2.bf16.msra.mxu0 0
          %3060 = vmatprep.subr.bf16.mxu0 0
          %3061 = vmatpush2.bf16.msra.mxu0 0
          %3062 = vmatprep.subr.bf16.mxu0 0
          %3063 = vmatpush2.bf16.msra.mxu0 0
          %3064 = vmatprep.subr.bf16.mxu0 0
          %3065 = vmatpush2.bf16.msra.mxu0 0
          %3066 = vmatprep.subr.bf16.mxu0 0
          %3067 = vmatpush2.bf16.msra.mxu0 0
          %3068 = vmatprep.mubr.bf16.mxu0 0
          %3069 = vmatmul.mubr.bf16.gmra.mxu0 %v3031
          %v3070 = vpop.f32.mrf.mxu0
          %v3071 = vadd.f32 %v3016, %v3070
          %v3072 = vpop.f32.mrf.mxu0
          %v3073 = vpop.f32.mrf.mxu0
          %v3074 = vadd.f32 %v3016, %v3073
          %v3075 = vpop.f32.mrf.mxu0
          %3076 = vmatprep.mubr.bf16.mxu0 0
          %3077 = vmatmul.mubr.bf16.gmra.mxu0 %v3034
          %v3078 = vpop.f32.mrf.mxu0
          %v3079 = vadd.f32 %v3016, %v3078
          %v3080 = vpop.f32.mrf.mxu0
          %v3081 = vpop.f32.mrf.mxu0
          %v3082 = vpop.f32.mrf.mxu0
          %3083 = vdwg.mxu0
          %s3084 = smul.addr %s3003, 4
          %s3085 = scalar_lea.vmem %s11, %s3084
          %v3086 = vld [vmem:[%s3085] sm:$0xf]
          %v3087 = vld [vmem:[%s3085 + $0x4] sm:$0xf]
          %v3088 = vld [vmem:[%s3085 + $0x8] sm:$0xf]
          %v3089 = vld [vmem:[%s3085 + $0xc] sm:$0xf]
          %s3090 = smul.u32 %s2929, 32
          %s3091 = scalar_lea.vmem %s14, %s3090
          %v3092 = vld [vmem:[%s3091] sm:$0xff]
          %v3093 = vld [vmem:[%s3091 + $0x8] sm:$0xff]
          %v3094 = vld [vmem:[%s3091 + $0x10] sm:$0xff]
          %v3095 = vld [vmem:[%s3091 + $0x18] sm:$0xff]
          %3097 = vset.pattern.permute.xlu0 0
          %3098 = vperm.xlu0 %3097, %v3092
          %v3099 = vpop.permute.xlu0 %3098
          %3102 = vset.pattern.permute.xlu0 0
          %3103 = vperm.xlu0 %3102, %v3093
          %v3104 = vpop.permute.xlu0 %3103
          %3107 = vset.pattern.permute.xlu0 0
          %3108 = vperm.xlu0 %3107, %v3094
          %v3109 = vpop.permute.xlu0 %3108
          %3112 = vset.pattern.permute.xlu0 0
          %3113 = vperm.xlu0 %3112, %v3095
          %v3114 = vpop.permute.xlu0 %3113
          %v3120 = vunpack.c.l.b16 %v3086
          %v3121 = vunpack.c.l.b16 %v3087
          %v3122 = vunpack.c.l.b16 %v3088
          %v3123 = vunpack.c.l.b16 %v3089
          %v3124 = vpack.c.b16 %v3121, %v3120
          %v3125 = vpack.c.b16 %v3123, %v3122
          %v3127 = vsel %vm2941, %v3124, 0
          %v3130 = vsel %vm2941, %v3125, 0
          %3132 = vmatprep.subr.bf16.mxu0 0
          %3133 = vmatpush1.bf16.xpose.msra.mxu0 0
          %3134 = vmatprep.subr.bf16.mxu0 0
          %3135 = vmatpush1.bf16.xpose.msra.mxu0 0
          %3136 = vmatprep.subr.bf16.mxu0 0
          %3137 = vmatpush1.bf16.xpose.msra.mxu0 0
          %3138 = vmatprep.subr.bf16.mxu0 0
          %3139 = vmatpush1.bf16.xpose.msra.mxu0 0
          %3140 = vmatprep.subr.bf16.mxu0 0
          %3141 = vmatpush1.bf16.xpose.msra.mxu0 0
          %3142 = vmatprep.subr.bf16.mxu0 0
          %3143 = vmatpush1.bf16.xpose.msra.mxu0 0
          %3144 = vmatprep.subr.bf16.mxu0 0
          %3145 = vmatpush1.bf16.xpose.msra.mxu0 %v3034
          %3146 = vmatprep.subr.bf16.mxu0 0
          %3147 = vmatpush1.bf16.xpose.msra.mxu0 %v3031
          %3148 = vmatprep.subr.bf16.mxu0 0
          %3149 = vmatpush2.bf16.xpose.msra.mxu0 0
          %3150 = vmatprep.subr.bf16.mxu0 0
          %3151 = vmatpush2.bf16.xpose.msra.mxu0 0
          %3152 = vmatprep.subr.bf16.mxu0 0
          %3153 = vmatpush2.bf16.xpose.msra.mxu0 0
          %3154 = vmatprep.subr.bf16.mxu0 0
          %3155 = vmatpush2.bf16.xpose.msra.mxu0 0
          %3156 = vmatprep.subr.bf16.mxu0 0
          %3157 = vmatpush2.bf16.xpose.msra.mxu0 0
          %3158 = vmatprep.subr.bf16.mxu0 0
          %3159 = vmatpush2.bf16.xpose.msra.mxu0 0
          %3160 = vmatprep.subr.bf16.mxu0 0
          %3161 = vmatpush2.bf16.xpose.msra.mxu0 0
          %3162 = vmatprep.subr.bf16.mxu0 0
          %3163 = vmatpush2.bf16.xpose.msra.mxu0 0
          %3164 = vmatprep.mubr.bf16.mxu0 0
          %3165 = vmatmul.mubr.bf16.gmra.mxu0 %v3127
          %v3166 = vpop.f32.mrf.mxu0
          %v3167 = vadd.f32 %v3099, %v3166
          %v3168 = vpop.f32.mrf.mxu0
          %v3169 = vpop.f32.mrf.mxu0
          %v3170 = vadd.f32 %v3104, %v3169
          %v3171 = vpop.f32.mrf.mxu0
          %3172 = vmatprep.mubr.bf16.mxu0 0
          %3173 = vmatmul.mubr.bf16.gmra.mxu0 %v3130
          %v3174 = vpop.f32.mrf.mxu0
          %v3175 = vadd.f32 %v3109, %v3174
          %v3176 = vpop.f32.mrf.mxu0
          %v3177 = vpop.f32.mrf.mxu0
          %v3178 = vadd.f32 %v3114, %v3177
          %v3179 = vpop.f32.mrf.mxu0
          %3180 = vdwg.mxu0
          %s3181 = smul.addr %s3003, 4
          %s3182 = scalar_lea.vmem %s12, %s3181
          %v3183 = vld [vmem:[%s3182] sm:$0xf]
          %v3184 = vld [vmem:[%s3182 + $0x4] sm:$0xf]
          %v3185 = vld [vmem:[%s3182 + $0x8] sm:$0xf]
          %v3186 = vld [vmem:[%s3182 + $0xc] sm:$0xf]
          %s3187 = scalar_lea.vmem %s15, %s2929
          %v3188 = vld [vmem:[%s3187] sm:$0x1]
          %v3190 = vlaneseq
          %v3191 = vshrl.u32 %v3190, 7
          %v3192 = vsub.s32 0, %v3191
          %v3193 = vrot.slane %v3188, %v3192
          %v3199 = vunpack.c.l.b16 %v3183
          %v3200 = vunpack.c.l.b16 %v3184
          %v3201 = vunpack.c.l.b16 %v3185
          %v3202 = vunpack.c.l.b16 %v3186
          %v3203 = vpack.c.b16 %v3200, %v3199
          %v3204 = vpack.c.b16 %v3202, %v3201
          %3207 = vmatprep.subr.bf16.mxu0 0
          %3208 = vmatpush1.bf16.msra.mxu0 0
          %3209 = vmatprep.subr.bf16.mxu0 0
          %3210 = vmatpush1.bf16.msra.mxu0 0
          %3211 = vmatprep.subr.bf16.mxu0 0
          %3212 = vmatpush1.bf16.msra.mxu0 0
          %3213 = vmatprep.subr.bf16.mxu0 0
          %3214 = vmatpush1.bf16.msra.mxu0 0
          %3215 = vmatprep.subr.bf16.mxu0 0
          %3216 = vmatpush1.bf16.msra.mxu0 0
          %3217 = vmatprep.subr.bf16.mxu0 0
          %3218 = vmatpush1.bf16.msra.mxu0 0
          %3219 = vmatprep.subr.bf16.mxu0 0
          %3220 = vmatpush1.bf16.msra.mxu0 %v3204
          %3221 = vmatprep.subr.bf16.mxu0 0
          %3222 = vmatpush1.bf16.msra.mxu0 %v3203
          %3223 = vmatprep.subr.bf16.mxu0 0
          %3224 = vmatpush2.bf16.msra.mxu0 0
          %3225 = vmatprep.subr.bf16.mxu0 0
          %3226 = vmatpush2.bf16.msra.mxu0 0
          %3227 = vmatprep.subr.bf16.mxu0 0
          %3228 = vmatpush2.bf16.msra.mxu0 0
          %3229 = vmatprep.subr.bf16.mxu0 0
          %3230 = vmatpush2.bf16.msra.mxu0 0
          %3231 = vmatprep.subr.bf16.mxu0 0
          %3232 = vmatpush2.bf16.msra.mxu0 0
          %3233 = vmatprep.subr.bf16.mxu0 0
          %3234 = vmatpush2.bf16.msra.mxu0 0
          %3235 = vmatprep.subr.bf16.mxu0 0
          %3236 = vmatpush2.bf16.msra.mxu0 0
          %3237 = vmatprep.subr.bf16.mxu0 0
          %3238 = vmatpush2.bf16.msra.mxu0 0
          %3239 = vmatprep.mubr.bf16.mxu0 0
          %3240 = vmatmul.mubr.bf16.gmra.mxu0 %v3031
          %v3241 = vpop.f32.mrf.mxu0
          %v3242 = vadd.f32 %v3193, %v3241
          %v3243 = vpop.f32.mrf.mxu0
          %v3244 = vpop.f32.mrf.mxu0
          %v3245 = vadd.f32 %v3193, %v3244
          %v3246 = vpop.f32.mrf.mxu0
          %3247 = vmatprep.mubr.bf16.mxu0 0
          %3248 = vmatmul.mubr.bf16.gmra.mxu0 %v3034
          %v3249 = vpop.f32.mrf.mxu0
          %v3250 = vadd.f32 %v3193, %v3249
          %v3251 = vpop.f32.mrf.mxu0
          %v3252 = vpop.f32.mrf.mxu0
          %v3253 = vpop.f32.mrf.mxu0
          %3254 = vdwg.mxu0
          %v3255 = vpack.c.bf16 %v3074, %v3071
          %v3256 = vpack.c.bf16 %v3079, %v3079
          %v3257 = vpack.c.bf16 %v3170, %v3167
          %v3258 = vpack.c.bf16 %v3178, %v3175
          %v3259 = vpack.c.bf16 %v3245, %v3242
          %v3260 = vpack.c.bf16 %v3250, %v3250
          %vm3261 = vcmask 64512
          %v3263 = vsel %vm3261, %v3255, 0
          %v3266 = vsel %vm3261, %v3256, 0
          %v3269 = vsel %vm1083, %v3257, 0
          %3271 = vmatprep.subr.bf16.mxu0 0
          %3272 = vmatpush1.bf16.msra.mxu0 0
          %3273 = vmatprep.subr.bf16.mxu0 0
          %3274 = vmatpush1.bf16.msra.mxu0 0
          %3275 = vmatprep.subr.bf16.mxu0 0
          %3276 = vmatpush1.bf16.msra.mxu0 0
          %3277 = vmatprep.subr.bf16.mxu0 0
          %3278 = vmatpush1.bf16.msra.mxu0 0
          %3279 = vmatprep.subr.bf16.mxu0 0
          %3280 = vmatpush1.bf16.msra.mxu0 0
          %3281 = vmatprep.subr.bf16.mxu0 0
          %3282 = vmatpush1.bf16.msra.mxu0 0
          %3283 = vmatprep.subr.bf16.mxu0 0
          %3284 = vmatpush1.bf16.msra.mxu0 0
          %3285 = vmatprep.subr.bf16.mxu0 0
          %3286 = vmatpush1.bf16.msra.mxu0 %v3269
          %3287 = vmatprep.subr.bf16.mxu0 0
          %3288 = vmatpush2.bf16.msra.mxu0 0
          %3289 = vmatprep.subr.bf16.mxu0 0
          %3290 = vmatpush2.bf16.msra.mxu0 0
          %3291 = vmatprep.subr.bf16.mxu0 0
          %3292 = vmatpush2.bf16.msra.mxu0 0
          %3293 = vmatprep.subr.bf16.mxu0 0
          %3294 = vmatpush2.bf16.msra.mxu0 0
          %3295 = vmatprep.subr.bf16.mxu0 0
          %3296 = vmatpush2.bf16.msra.mxu0 0
          %3297 = vmatprep.subr.bf16.mxu0 0
          %3298 = vmatpush2.bf16.msra.mxu0 0
          %3299 = vmatprep.subr.bf16.mxu0 0
          %3300 = vmatpush2.bf16.msra.mxu0 0
          %3301 = vmatprep.subr.bf16.mxu0 0
          %3302 = vmatpush2.bf16.msra.mxu0 0
          %3303 = vmatprep.mubr.bf16.mxu0 0
          %3304 = vmatmul.mubr.bf16.gmra.mxu0 %v3263
          %v3305 = vpop.f32.mrf.mxu0
          %v3306 = vadd.f32 0.0, %v3305
          %v3307 = vpop.f32.mrf.mxu0
          %v3308 = vpop.f32.mrf.mxu0
          %v3309 = vadd.f32 0.0, %v3308
          %v3310 = vpop.f32.mrf.mxu0
          %3311 = vmatprep.mubr.bf16.mxu0 0
          %3312 = vmatmul.mubr.bf16.gmra.mxu0 %v3266
          %v3313 = vpop.f32.mrf.mxu0
          %v3314 = vadd.f32 0.0, %v3313
          %v3315 = vpop.f32.mrf.mxu0
          %v3316 = vpop.f32.mrf.mxu0
          %v3317 = vpop.f32.mrf.mxu0
          %3318 = vdwg.mxu0
          %v3319 = vmul.f32 %v3306, 0.35355338
          %v3320 = vmul.f32 %v3309, 0.35355338
          %v3321 = vmul.f32 %v3314, 0.35355338
          %vm3322 = vcmask 171008
          %v3323 = vsel %vm3322, %v3319, -inf
          %3324 = vmax.xlane.f32.xlu0 %v3323
          %v3325 = vpop.xlane.xlu0 %3324
          %v3326 = vsel %vm3322, %v3320, -inf
          %3327 = vmax.xlane.f32.xlu0 %v3326
          %v3328 = vpop.xlane.xlu0 %3327
          %vm3329 = vcmask 167936
          %v3330 = vsel %vm3329, %v3321, -inf
          %3331 = vmax.xlane.f32.xlu0 %v3330
          %v3332 = vpop.xlane.xlu0 %3331
          %v3333 = vsub.f32 %v3319, %v3325
          %v3334 = vsub.f32 %v3320, %v3328
          %v3335 = vsub.f32 %v3321, %v3332
          %v3336 = vmul.f32 %v3333, 1.442695
          %v3337 = vpow.pop %v3336
          %v3338 = vmul.f32 %v3334, 1.442695
          %v3339 = vpow.pop %v3338
          %v3340 = vmul.f32 %v3335, 1.442695
          %v3341 = vpow.pop %v3340
          %v3342 = vsel %vm3322, %v3337, 0.0
          %3343 = vadd.xlane.f32.xlu0 %v3342
          %v3344 = vpop.xlane.xlu0 %3343
          %v3345 = vsel %vm3322, %v3339, 0.0
          %3346 = vadd.xlane.f32.xlu0 %v3345
          %v3347 = vpop.xlane.xlu0 %3346
          %v3348 = vsel %vm3329, %v3341, 0.0
          %3349 = vadd.xlane.f32.xlu0 %v3348
          %v3350 = vpop.xlane.xlu0 %3349
          %v3351 = vrcp.pop %v3344
          %v3352 = vrcp.pop %v3347
          %v3353 = vrcp.pop %v3350
          %v3354 = vmul.f32 %v3337, %v3351
          %v3355 = vmul.f32 %v3339, %v3352
          %v3356 = vmul.f32 %v3341, %v3353
          %v3357 = vpack.c.bf16 %v3355, %v3354
          %v3358 = vpack.c.bf16 %v3356, %v3356
          %v3360 = vsel %vm3322, %v3357, 0
          %v3363 = vsel %vm3322, %v3358, 0
          %vm3365 = vcmask 1041408
          %vm3366 = vcmask 1042432
          %v3367 = vsel %vm3365, 4294967295, 65535
          %v3368 = vsel %vm3366, %v3367, 0
          %v3370 = vand.u32 %v3260, %v3368
          %3372 = vmatprep.subr.bf16.mxu0 0
          %3373 = vmatpush1.bf16.msra.mxu0 0
          %3374 = vmatprep.subr.bf16.mxu0 0
          %3375 = vmatpush1.bf16.msra.mxu0 0
          %3376 = vmatprep.subr.bf16.mxu0 0
          %3377 = vmatpush1.bf16.msra.mxu0 0
          %3378 = vmatprep.subr.bf16.mxu0 0
          %3379 = vmatpush1.bf16.msra.mxu0 0
          %3380 = vmatprep.subr.bf16.mxu0 0
          %3381 = vmatpush1.bf16.msra.mxu0 0
          %3382 = vmatprep.subr.bf16.mxu0 0
          %3383 = vmatpush1.bf16.msra.mxu0 0
          %3384 = vmatprep.subr.bf16.mxu0 0
          %3385 = vmatpush1.bf16.msra.mxu0 %v3370
          %3386 = vmatprep.subr.bf16.mxu0 0
          %3387 = vmatpush1.bf16.msra.mxu0 %v3259
          %3388 = vmatprep.subr.bf16.mxu0 0
          %3389 = vmatpush2.bf16.msra.mxu0 0
          %3390 = vmatprep.subr.bf16.mxu0 0
          %3391 = vmatpush2.bf16.msra.mxu0 0
          %3392 = vmatprep.subr.bf16.mxu0 0
          %3393 = vmatpush2.bf16.msra.mxu0 0
          %3394 = vmatprep.subr.bf16.mxu0 0
          %3395 = vmatpush2.bf16.msra.mxu0 0
          %3396 = vmatprep.subr.bf16.mxu0 0
          %3397 = vmatpush2.bf16.msra.mxu0 0
          %3398 = vmatprep.subr.bf16.mxu0 0
          %3399 = vmatpush2.bf16.msra.mxu0 0
          %3400 = vmatprep.subr.bf16.mxu0 0
          %3401 = vmatpush2.bf16.msra.mxu0 0
          %3402 = vmatprep.subr.bf16.mxu0 0
          %3403 = vmatpush2.bf16.msra.mxu0 0
          %3404 = vmatprep.mubr.bf16.mxu0 0
          %3405 = vmatmul.mubr.bf16.gmra.mxu0 %v3360
          %v3406 = vpop.f32.mrf.mxu0
          %v3407 = vadd.f32 0.0, %v3406
          %v3408 = vpop.f32.mrf.mxu0
          %v3409 = vpop.f32.mrf.mxu0
          %v3410 = vadd.f32 0.0, %v3409
          %v3411 = vpop.f32.mrf.mxu0
          %3412 = vmatprep.mubr.bf16.mxu0 0
          %3413 = vmatmul.mubr.bf16.gmra.mxu0 %v3363
          %v3414 = vpop.f32.mrf.mxu0
          %v3415 = vadd.f32 0.0, %v3414
          %v3416 = vpop.f32.mrf.mxu0
          %v3417 = vpop.f32.mrf.mxu0
          %v3418 = vpop.f32.mrf.mxu0
          %3419 = vdwg.mxu0
          %3422 = vrot.lane.b32.xlu0 %v3255, 120
          %v3423 = vpop.permute.xlu0 %3422
          %3424 = vrot.lane.b32.xlu0 %v3256, 120
          %v3425 = vpop.permute.xlu0 %3424
          %v3427 = vrot.slane %v3257, 4
          %v3429 = vsel %vm3261, %v3423, 0
          %v3432 = vsel %vm3261, %v3425, 0
          %v3435 = vsel %vm1083, %v3427, 0
          %3437 = vmatprep.subr.bf16.mxu0 0
          %3438 = vmatpush1.bf16.msra.mxu0 0
          %3439 = vmatprep.subr.bf16.mxu0 0
          %3440 = vmatpush1.bf16.msra.mxu0 0
          %3441 = vmatprep.subr.bf16.mxu0 0
          %3442 = vmatpush1.bf16.msra.mxu0 0
          %3443 = vmatprep.subr.bf16.mxu0 0
          %3444 = vmatpush1.bf16.msra.mxu0 0
          %3445 = vmatprep.subr.bf16.mxu0 0
          %3446 = vmatpush1.bf16.msra.mxu0 0
          %3447 = vmatprep.subr.bf16.mxu0 0
          %3448 = vmatpush1.bf16.msra.mxu0 0
          %3449 = vmatprep.subr.bf16.mxu0 0
          %3450 = vmatpush1.bf16.msra.mxu0 0
          %3451 = vmatprep.subr.bf16.mxu0 0
          %3452 = vmatpush1.bf16.msra.mxu0 %v3435
          %3453 = vmatprep.subr.bf16.mxu0 0
          %3454 = vmatpush2.bf16.msra.mxu0 0
          %3455 = vmatprep.subr.bf16.mxu0 0
          %3456 = vmatpush2.bf16.msra.mxu0 0
          %3457 = vmatprep.subr.bf16.mxu0 0
          %3458 = vmatpush2.bf16.msra.mxu0 0
          %3459 = vmatprep.subr.bf16.mxu0 0
          %3460 = vmatpush2.bf16.msra.mxu0 0
          %3461 = vmatprep.subr.bf16.mxu0 0
          %3462 = vmatpush2.bf16.msra.mxu0 0
          %3463 = vmatprep.subr.bf16.mxu0 0
          %3464 = vmatpush2.bf16.msra.mxu0 0
          %3465 = vmatprep.subr.bf16.mxu0 0
          %3466 = vmatpush2.bf16.msra.mxu0 0
          %3467 = vmatprep.subr.bf16.mxu0 0
          %3468 = vmatpush2.bf16.msra.mxu0 0
          %3469 = vmatprep.mubr.bf16.mxu0 0
          %3470 = vmatmul.mubr.bf16.gmra.mxu0 %v3429
          %v3471 = vpop.f32.mrf.mxu0
          %v3472 = vadd.f32 0.0, %v3471
          %v3473 = vpop.f32.mrf.mxu0
          %v3474 = vpop.f32.mrf.mxu0
          %v3475 = vadd.f32 0.0, %v3474
          %v3476 = vpop.f32.mrf.mxu0
          %3477 = vmatprep.mubr.bf16.mxu0 0
          %3478 = vmatmul.mubr.bf16.gmra.mxu0 %v3432
          %v3479 = vpop.f32.mrf.mxu0
          %v3480 = vadd.f32 0.0, %v3479
          %v3481 = vpop.f32.mrf.mxu0
          %v3482 = vpop.f32.mrf.mxu0
          %v3483 = vpop.f32.mrf.mxu0
          %3484 = vdwg.mxu0
          %v3485 = vmul.f32 %v3472, 0.35355338
          %v3486 = vmul.f32 %v3475, 0.35355338
          %v3487 = vmul.f32 %v3480, 0.35355338
          %v3488 = vsel %vm3322, %v3485, -inf
          %3489 = vmax.xlane.f32.xlu0 %v3488
          %v3490 = vpop.xlane.xlu0 %3489
          %v3491 = vsel %vm3322, %v3486, -inf
          %3492 = vmax.xlane.f32.xlu0 %v3491
          %v3493 = vpop.xlane.xlu0 %3492
          %v3494 = vsel %vm3329, %v3487, -inf
          %3495 = vmax.xlane.f32.xlu0 %v3494
          %v3496 = vpop.xlane.xlu0 %3495
          %v3497 = vsub.f32 %v3485, %v3490
          %v3498 = vsub.f32 %v3486, %v3493
          %v3499 = vsub.f32 %v3487, %v3496
          %v3500 = vmul.f32 %v3497, 1.442695
          %v3501 = vpow.pop %v3500
          %v3502 = vmul.f32 %v3498, 1.442695
          %v3503 = vpow.pop %v3502
          %v3504 = vmul.f32 %v3499, 1.442695
          %v3505 = vpow.pop %v3504
          %v3506 = vsel %vm3322, %v3501, 0.0
          %3507 = vadd.xlane.f32.xlu0 %v3506
          %v3508 = vpop.xlane.xlu0 %3507
          %v3509 = vsel %vm3322, %v3503, 0.0
          %3510 = vadd.xlane.f32.xlu0 %v3509
          %v3511 = vpop.xlane.xlu0 %3510
          %v3512 = vsel %vm3329, %v3505, 0.0
          %3513 = vadd.xlane.f32.xlu0 %v3512
          %v3514 = vpop.xlane.xlu0 %3513
          %v3515 = vrcp.pop %v3508
          %v3516 = vrcp.pop %v3511
          %v3517 = vrcp.pop %v3514
          %v3518 = vmul.f32 %v3501, %v3515
          %v3519 = vmul.f32 %v3503, %v3516
          %v3520 = vmul.f32 %v3505, %v3517
          %v3521 = vpack.c.bf16 %v3519, %v3518
          %v3522 = vpack.c.bf16 %v3520, %v3520
          %3525 = vrot.lane.b32.xlu0 %v3259, 120
          %v3526 = vpop.permute.xlu0 %3525
          %3527 = vrot.lane.b32.xlu0 %v3260, 120
          %v3528 = vpop.permute.xlu0 %3527
          %v3531 = vsel %vm3322, %v3521, 0
          %v3534 = vsel %vm3322, %v3522, 0
          %v3537 = vand.u32 %v3528, %v3368
          %3539 = vmatprep.subr.bf16.mxu0 0
          %3540 = vmatpush1.bf16.msra.mxu0 0
          %3541 = vmatprep.subr.bf16.mxu0 0
          %3542 = vmatpush1.bf16.msra.mxu0 0
          %3543 = vmatprep.subr.bf16.mxu0 0
          %3544 = vmatpush1.bf16.msra.mxu0 0
          %3545 = vmatprep.subr.bf16.mxu0 0
          %3546 = vmatpush1.bf16.msra.mxu0 0
          %3547 = vmatprep.subr.bf16.mxu0 0
          %3548 = vmatpush1.bf16.msra.mxu0 0
          %3549 = vmatprep.subr.bf16.mxu0 0
          %3550 = vmatpush1.bf16.msra.mxu0 0
          %3551 = vmatprep.subr.bf16.mxu0 0
          %3552 = vmatpush1.bf16.msra.mxu0 %v3537
          %3553 = vmatprep.subr.bf16.mxu0 0
          %3554 = vmatpush1.bf16.msra.mxu0 %v3526
          %3555 = vmatprep.subr.bf16.mxu0 0
          %3556 = vmatpush2.bf16.msra.mxu0 0
          %3557 = vmatprep.subr.bf16.mxu0 0
          %3558 = vmatpush2.bf16.msra.mxu0 0
          %3559 = vmatprep.subr.bf16.mxu0 0
          %3560 = vmatpush2.bf16.msra.mxu0 0
          %3561 = vmatprep.subr.bf16.mxu0 0
          %3562 = vmatpush2.bf16.msra.mxu0 0
          %3563 = vmatprep.subr.bf16.mxu0 0
          %3564 = vmatpush2.bf16.msra.mxu0 0
          %3565 = vmatprep.subr.bf16.mxu0 0
          %3566 = vmatpush2.bf16.msra.mxu0 0
          %3567 = vmatprep.subr.bf16.mxu0 0
          %3568 = vmatpush2.bf16.msra.mxu0 0
          %3569 = vmatprep.subr.bf16.mxu0 0
          %3570 = vmatpush2.bf16.msra.mxu0 0
          %3571 = vmatprep.mubr.bf16.mxu0 0
          %3572 = vmatmul.mubr.bf16.gmra.mxu0 %v3531
          %v3573 = vpop.f32.mrf.mxu0
          %v3574 = vadd.f32 0.0, %v3573
          %v3575 = vpop.f32.mrf.mxu0
          %v3576 = vpop.f32.mrf.mxu0
          %v3577 = vadd.f32 0.0, %v3576
          %v3578 = vpop.f32.mrf.mxu0
          %3579 = vmatprep.mubr.bf16.mxu0 0
          %3580 = vmatmul.mubr.bf16.gmra.mxu0 %v3534
          %v3581 = vpop.f32.mrf.mxu0
          %v3582 = vadd.f32 0.0, %v3581
          %v3583 = vpop.f32.mrf.mxu0
          %v3584 = vpop.f32.mrf.mxu0
          %v3585 = vpop.f32.mrf.mxu0
          %3586 = vdwg.mxu0
          %3587 = vrot.lane.b32.xlu0 %v3255, 112
          %v3588 = vpop.permute.xlu0 %3587
          %3589 = vrot.lane.b32.xlu0 %v3256, 112
          %v3590 = vpop.permute.xlu0 %3589
          %v3592 = vsel %vm3261, %v3588, 0
          %v3595 = vsel %vm3261, %v3590, 0
          %v3598 = vsel %vm1083, %v3258, 0
          %3600 = vmatprep.subr.bf16.mxu0 0
          %3601 = vmatpush1.bf16.msra.mxu0 0
          %3602 = vmatprep.subr.bf16.mxu0 0
          %3603 = vmatpush1.bf16.msra.mxu0 0
          %3604 = vmatprep.subr.bf16.mxu0 0
          %3605 = vmatpush1.bf16.msra.mxu0 0
          %3606 = vmatprep.subr.bf16.mxu0 0
          %3607 = vmatpush1.bf16.msra.mxu0 0
          %3608 = vmatprep.subr.bf16.mxu0 0
          %3609 = vmatpush1.bf16.msra.mxu0 0
          %3610 = vmatprep.subr.bf16.mxu0 0
          %3611 = vmatpush1.bf16.msra.mxu0 0
          %3612 = vmatprep.subr.bf16.mxu0 0
          %3613 = vmatpush1.bf16.msra.mxu0 0
          %3614 = vmatprep.subr.bf16.mxu0 0
          %3615 = vmatpush1.bf16.msra.mxu0 %v3598
          %3616 = vmatprep.subr.bf16.mxu0 0
          %3617 = vmatpush2.bf16.msra.mxu0 0
          %3618 = vmatprep.subr.bf16.mxu0 0
          %3619 = vmatpush2.bf16.msra.mxu0 0
          %3620 = vmatprep.subr.bf16.mxu0 0
          %3621 = vmatpush2.bf16.msra.mxu0 0
          %3622 = vmatprep.subr.bf16.mxu0 0
          %3623 = vmatpush2.bf16.msra.mxu0 0
          %3624 = vmatprep.subr.bf16.mxu0 0
          %3625 = vmatpush2.bf16.msra.mxu0 0
          %3626 = vmatprep.subr.bf16.mxu0 0
          %3627 = vmatpush2.bf16.msra.mxu0 0
          %3628 = vmatprep.subr.bf16.mxu0 0
          %3629 = vmatpush2.bf16.msra.mxu0 0
          %3630 = vmatprep.subr.bf16.mxu0 0
          %3631 = vmatpush2.bf16.msra.mxu0 0
          %3632 = vmatprep.mubr.bf16.mxu0 0
          %3633 = vmatmul.mubr.bf16.gmra.mxu0 %v3592
          %v3634 = vpop.f32.mrf.mxu0
          %v3635 = vadd.f32 0.0, %v3634
          %v3636 = vpop.f32.mrf.mxu0
          %v3637 = vpop.f32.mrf.mxu0
          %v3638 = vadd.f32 0.0, %v3637
          %v3639 = vpop.f32.mrf.mxu0
          %3640 = vmatprep.mubr.bf16.mxu0 0
          %3641 = vmatmul.mubr.bf16.gmra.mxu0 %v3595
          %v3642 = vpop.f32.mrf.mxu0
          %v3643 = vadd.f32 0.0, %v3642
          %v3644 = vpop.f32.mrf.mxu0
          %v3645 = vpop.f32.mrf.mxu0
          %v3646 = vpop.f32.mrf.mxu0
          %3647 = vdwg.mxu0
          %v3648 = vmul.f32 %v3635, 0.35355338
          %v3649 = vmul.f32 %v3638, 0.35355338
          %v3650 = vmul.f32 %v3643, 0.35355338
          %v3651 = vsel %vm3322, %v3648, -inf
          %3652 = vmax.xlane.f32.xlu0 %v3651
          %v3653 = vpop.xlane.xlu0 %3652
          %v3654 = vsel %vm3322, %v3649, -inf
          %3655 = vmax.xlane.f32.xlu0 %v3654
          %v3656 = vpop.xlane.xlu0 %3655
          %v3657 = vsel %vm3329, %v3650, -inf
          %3658 = vmax.xlane.f32.xlu0 %v3657
          %v3659 = vpop.xlane.xlu0 %3658
          %v3660 = vsub.f32 %v3648, %v3653
          %v3661 = vsub.f32 %v3649, %v3656
          %v3662 = vsub.f32 %v3650, %v3659
          %v3663 = vmul.f32 %v3660, 1.442695
          %v3664 = vpow.pop %v3663
          %v3665 = vmul.f32 %v3661, 1.442695
          %v3666 = vpow.pop %v3665
          %v3667 = vmul.f32 %v3662, 1.442695
          %v3668 = vpow.pop %v3667
          %v3669 = vsel %vm3322, %v3664, 0.0
          %3670 = vadd.xlane.f32.xlu0 %v3669
          %v3671 = vpop.xlane.xlu0 %3670
          %v3672 = vsel %vm3322, %v3666, 0.0
          %3673 = vadd.xlane.f32.xlu0 %v3672
          %v3674 = vpop.xlane.xlu0 %3673
          %v3675 = vsel %vm3329, %v3668, 0.0
          %3676 = vadd.xlane.f32.xlu0 %v3675
          %v3677 = vpop.xlane.xlu0 %3676
          %v3678 = vrcp.pop %v3671
          %v3679 = vrcp.pop %v3674
          %v3680 = vrcp.pop %v3677
          %v3681 = vmul.f32 %v3664, %v3678
          %v3682 = vmul.f32 %v3666, %v3679
          %v3683 = vmul.f32 %v3668, %v3680
          %v3684 = vpack.c.bf16 %v3682, %v3681
          %v3685 = vpack.c.bf16 %v3683, %v3683
          %3686 = vrot.lane.b32.xlu0 %v3259, 112
          %v3687 = vpop.permute.xlu0 %3686
          %3688 = vrot.lane.b32.xlu0 %v3260, 112
          %v3689 = vpop.permute.xlu0 %3688
          %v3692 = vsel %vm3322, %v3684, 0
          %v3695 = vsel %vm3322, %v3685, 0
          %v3698 = vand.u32 %v3689, %v3368
          %3700 = vmatprep.subr.bf16.mxu0 0
          %3701 = vmatpush1.bf16.msra.mxu0 0
          %3702 = vmatprep.subr.bf16.mxu0 0
          %3703 = vmatpush1.bf16.msra.mxu0 0
          %3704 = vmatprep.subr.bf16.mxu0 0
          %3705 = vmatpush1.bf16.msra.mxu0 0
          %3706 = vmatprep.subr.bf16.mxu0 0
          %3707 = vmatpush1.bf16.msra.mxu0 0
          %3708 = vmatprep.subr.bf16.mxu0 0
          %3709 = vmatpush1.bf16.msra.mxu0 0
          %3710 = vmatprep.subr.bf16.mxu0 0
          %3711 = vmatpush1.bf16.msra.mxu0 0
          %3712 = vmatprep.subr.bf16.mxu0 0
          %3713 = vmatpush1.bf16.msra.mxu0 %v3698
          %3714 = vmatprep.subr.bf16.mxu0 0
          %3715 = vmatpush1.bf16.msra.mxu0 %v3687
          %3716 = vmatprep.subr.bf16.mxu0 0
          %3717 = vmatpush2.bf16.msra.mxu0 0
          %3718 = vmatprep.subr.bf16.mxu0 0
          %3719 = vmatpush2.bf16.msra.mxu0 0
          %3720 = vmatprep.subr.bf16.mxu0 0
          %3721 = vmatpush2.bf16.msra.mxu0 0
          %3722 = vmatprep.subr.bf16.mxu0 0
          %3723 = vmatpush2.bf16.msra.mxu0 0
          %3724 = vmatprep.subr.bf16.mxu0 0
          %3725 = vmatpush2.bf16.msra.mxu0 0
          %3726 = vmatprep.subr.bf16.mxu0 0
          %3727 = vmatpush2.bf16.msra.mxu0 0
          %3728 = vmatprep.subr.bf16.mxu0 0
          %3729 = vmatpush2.bf16.msra.mxu0 0
          %3730 = vmatprep.subr.bf16.mxu0 0
          %3731 = vmatpush2.bf16.msra.mxu0 0
          %3732 = vmatprep.mubr.bf16.mxu0 0
          %3733 = vmatmul.mubr.bf16.gmra.mxu0 %v3692
          %v3734 = vpop.f32.mrf.mxu0
          %v3735 = vadd.f32 0.0, %v3734
          %v3736 = vpop.f32.mrf.mxu0
          %v3737 = vpop.f32.mrf.mxu0
          %v3738 = vadd.f32 0.0, %v3737
          %v3739 = vpop.f32.mrf.mxu0
          %3740 = vmatprep.mubr.bf16.mxu0 0
          %3741 = vmatmul.mubr.bf16.gmra.mxu0 %v3695
          %v3742 = vpop.f32.mrf.mxu0
          %v3743 = vadd.f32 0.0, %v3742
          %v3744 = vpop.f32.mrf.mxu0
          %v3745 = vpop.f32.mrf.mxu0
          %v3746 = vpop.f32.mrf.mxu0
          %3747 = vdwg.mxu0
          %3748 = vrot.lane.b32.xlu0 %v3255, 104
          %v3749 = vpop.permute.xlu0 %3748
          %3750 = vrot.lane.b32.xlu0 %v3256, 104
          %v3751 = vpop.permute.xlu0 %3750
          %v3753 = vrot.slane %v3258, 4
          %v3755 = vsel %vm3261, %v3749, 0
          %v3758 = vsel %vm3261, %v3751, 0
          %v3761 = vsel %vm1083, %v3753, 0
          %3763 = vmatprep.subr.bf16.mxu0 0
          %3764 = vmatpush1.bf16.msra.mxu0 0
          %3765 = vmatprep.subr.bf16.mxu0 0
          %3766 = vmatpush1.bf16.msra.mxu0 0
          %3767 = vmatprep.subr.bf16.mxu0 0
          %3768 = vmatpush1.bf16.msra.mxu0 0
          %3769 = vmatprep.subr.bf16.mxu0 0
          %3770 = vmatpush1.bf16.msra.mxu0 0
          %3771 = vmatprep.subr.bf16.mxu0 0
          %3772 = vmatpush1.bf16.msra.mxu0 0
          %3773 = vmatprep.subr.bf16.mxu0 0
          %3774 = vmatpush1.bf16.msra.mxu0 0
          %3775 = vmatprep.subr.bf16.mxu0 0
          %3776 = vmatpush1.bf16.msra.mxu0 0
          %3777 = vmatprep.subr.bf16.mxu0 0
          %3778 = vmatpush1.bf16.msra.mxu0 %v3761
          %3779 = vmatprep.subr.bf16.mxu0 0
          %3780 = vmatpush2.bf16.msra.mxu0 0
          %3781 = vmatprep.subr.bf16.mxu0 0
          %3782 = vmatpush2.bf16.msra.mxu0 0
          %3783 = vmatprep.subr.bf16.mxu0 0
          %3784 = vmatpush2.bf16.msra.mxu0 0
          %3785 = vmatprep.subr.bf16.mxu0 0
          %3786 = vmatpush2.bf16.msra.mxu0 0
          %3787 = vmatprep.subr.bf16.mxu0 0
          %3788 = vmatpush2.bf16.msra.mxu0 0
          %3789 = vmatprep.subr.bf16.mxu0 0
          %3790 = vmatpush2.bf16.msra.mxu0 0
          %3791 = vmatprep.subr.bf16.mxu0 0
          %3792 = vmatpush2.bf16.msra.mxu0 0
          %3793 = vmatprep.subr.bf16.mxu0 0
          %3794 = vmatpush2.bf16.msra.mxu0 0
          %3795 = vmatprep.mubr.bf16.mxu0 0
          %3796 = vmatmul.mubr.bf16.gmra.mxu0 %v3755
          %v3797 = vpop.f32.mrf.mxu0
          %v3798 = vadd.f32 0.0, %v3797
          %v3799 = vpop.f32.mrf.mxu0
          %v3800 = vpop.f32.mrf.mxu0
          %v3801 = vadd.f32 0.0, %v3800
          %v3802 = vpop.f32.mrf.mxu0
          %3803 = vmatprep.mubr.bf16.mxu0 0
          %3804 = vmatmul.mubr.bf16.gmra.mxu0 %v3758
          %v3805 = vpop.f32.mrf.mxu0
          %v3806 = vadd.f32 0.0, %v3805
          %v3807 = vpop.f32.mrf.mxu0
          %v3808 = vpop.f32.mrf.mxu0
          %v3809 = vpop.f32.mrf.mxu0
          %3810 = vdwg.mxu0
          %v3811 = vmul.f32 %v3798, 0.35355338
          %v3812 = vmul.f32 %v3801, 0.35355338
          %v3813 = vmul.f32 %v3806, 0.35355338
          %v3814 = vsel %vm3322, %v3811, -inf
          %3815 = vmax.xlane.f32.xlu0 %v3814
          %v3816 = vpop.xlane.xlu0 %3815
          %v3817 = vsel %vm3322, %v3812, -inf
          %3818 = vmax.xlane.f32.xlu0 %v3817
          %v3819 = vpop.xlane.xlu0 %3818
          %v3820 = vsel %vm3329, %v3813, -inf
          %3821 = vmax.xlane.f32.xlu0 %v3820
          %v3822 = vpop.xlane.xlu0 %3821
          %v3823 = vsub.f32 %v3811, %v3816
          %v3824 = vsub.f32 %v3812, %v3819
          %v3825 = vsub.f32 %v3813, %v3822
          %v3826 = vmul.f32 %v3823, 1.442695
          %v3827 = vpow.pop %v3826
          %v3828 = vmul.f32 %v3824, 1.442695
          %v3829 = vpow.pop %v3828
          %v3830 = vmul.f32 %v3825, 1.442695
          %v3831 = vpow.pop %v3830
          %v3832 = vsel %vm3322, %v3827, 0.0
          %3833 = vadd.xlane.f32.xlu0 %v3832
          %v3834 = vpop.xlane.xlu0 %3833
          %v3835 = vsel %vm3322, %v3829, 0.0
          %3836 = vadd.xlane.f32.xlu0 %v3835
          %v3837 = vpop.xlane.xlu0 %3836
          %v3838 = vsel %vm3329, %v3831, 0.0
          %3839 = vadd.xlane.f32.xlu0 %v3838
          %v3840 = vpop.xlane.xlu0 %3839
          %v3841 = vrcp.pop %v3834
          %v3842 = vrcp.pop %v3837
          %v3843 = vrcp.pop %v3840
          %v3844 = vmul.f32 %v3827, %v3841
          %v3845 = vmul.f32 %v3829, %v3842
          %v3846 = vmul.f32 %v3831, %v3843
          %v3847 = vpack.c.bf16 %v3845, %v3844
          %v3848 = vpack.c.bf16 %v3846, %v3846
          %3849 = vrot.lane.b32.xlu0 %v3259, 104
          %v3850 = vpop.permute.xlu0 %3849
          %3851 = vrot.lane.b32.xlu0 %v3260, 104
          %v3852 = vpop.permute.xlu0 %3851
          %v3855 = vsel %vm3322, %v3847, 0
          %v3858 = vsel %vm3322, %v3848, 0
          %v3861 = vand.u32 %v3852, %v3368
          %3863 = vmatprep.subr.bf16.mxu0 0
          %3864 = vmatpush1.bf16.msra.mxu0 0
          %3865 = vmatprep.subr.bf16.mxu0 0
          %3866 = vmatpush1.bf16.msra.mxu0 0
          %3867 = vmatprep.subr.bf16.mxu0 0
          %3868 = vmatpush1.bf16.msra.mxu0 0
          %3869 = vmatprep.subr.bf16.mxu0 0
          %3870 = vmatpush1.bf16.msra.mxu0 0
          %3871 = vmatprep.subr.bf16.mxu0 0
          %3872 = vmatpush1.bf16.msra.mxu0 0
          %3873 = vmatprep.subr.bf16.mxu0 0
          %3874 = vmatpush1.bf16.msra.mxu0 0
          %3875 = vmatprep.subr.bf16.mxu0 0
          %3876 = vmatpush1.bf16.msra.mxu0 %v3861
          %3877 = vmatprep.subr.bf16.mxu0 0
          %3878 = vmatpush1.bf16.msra.mxu0 %v3850
          %3879 = vmatprep.subr.bf16.mxu0 0
          %3880 = vmatpush2.bf16.msra.mxu0 0
          %3881 = vmatprep.subr.bf16.mxu0 0
          %3882 = vmatpush2.bf16.msra.mxu0 0
          %3883 = vmatprep.subr.bf16.mxu0 0
          %3884 = vmatpush2.bf16.msra.mxu0 0
          %3885 = vmatprep.subr.bf16.mxu0 0
          %3886 = vmatpush2.bf16.msra.mxu0 0
          %3887 = vmatprep.subr.bf16.mxu0 0
          %3888 = vmatpush2.bf16.msra.mxu0 0
          %3889 = vmatprep.subr.bf16.mxu0 0
          %3890 = vmatpush2.bf16.msra.mxu0 0
          %3891 = vmatprep.subr.bf16.mxu0 0
          %3892 = vmatpush2.bf16.msra.mxu0 0
          %3893 = vmatprep.subr.bf16.mxu0 0
          %3894 = vmatpush2.bf16.msra.mxu0 0
          %3895 = vmatprep.mubr.bf16.mxu0 0
          %3896 = vmatmul.mubr.bf16.gmra.mxu0 %v3855
          %v3897 = vpop.f32.mrf.mxu0
          %v3898 = vadd.f32 0.0, %v3897
          %v3899 = vpop.f32.mrf.mxu0
          %v3900 = vpop.f32.mrf.mxu0
          %v3901 = vadd.f32 0.0, %v3900
          %v3902 = vpop.f32.mrf.mxu0
          %3903 = vmatprep.mubr.bf16.mxu0 0
          %3904 = vmatmul.mubr.bf16.gmra.mxu0 %v3858
          %v3905 = vpop.f32.mrf.mxu0
          %v3906 = vadd.f32 0.0, %v3905
          %v3907 = vpop.f32.mrf.mxu0
          %v3908 = vpop.f32.mrf.mxu0
          %v3909 = vpop.f32.mrf.mxu0
          %3910 = vdwg.mxu0
          %3914 = vrot.lane.b32.xlu0 %v3574, 8
          %v3915 = vpop.permute.xlu0 %3914
          %3916 = vrot.lane.b32.xlu0 %v3577, 8
          %v3917 = vpop.permute.xlu0 %3916
          %3918 = vrot.lane.b32.xlu0 %v3582, 8
          %v3919 = vpop.permute.xlu0 %3918
          %3926 = vrot.lane.b32.xlu0 %v3735, 16
          %v3927 = vpop.permute.xlu0 %3926
          %3928 = vrot.lane.b32.xlu0 %v3738, 16
          %v3929 = vpop.permute.xlu0 %3928
          %3930 = vrot.lane.b32.xlu0 %v3743, 16
          %v3931 = vpop.permute.xlu0 %3930
          %3938 = vrot.lane.b32.xlu0 %v3898, 24
          %v3939 = vpop.permute.xlu0 %3938
          %3940 = vrot.lane.b32.xlu0 %v3901, 24
          %v3941 = vpop.permute.xlu0 %3940
          %3942 = vrot.lane.b32.xlu0 %v3906, 24
          %v3943 = vpop.permute.xlu0 %3942
          %v3947 = vsel %vm3261, %v3407, %v3915
          %v3948 = vsel %vm3261, %v3410, %v3917
          %v3949 = vsel %vm3261, %v3415, %v3919
          %vm3950 = vcmask 130048
          %v3951 = vsel %vm3950, %v3947, %v3927
          %v3952 = vsel %vm3950, %v3948, %v3929
          %v3953 = vsel %vm3950, %v3949, %v3931
          %v3954 = vsel %vm1036, %v3951, %v3939
          %v3955 = vsel %vm1036, %v3952, %v3941
          %v3956 = vsel %vm1036, %v3953, %v3943
          %v3957 = vpack.c.bf16 %v3955, %v3954
          %v3958 = vpack.c.bf16 %v3956, %v3956
          %s3959 = smul.addr %s3003, 4
          %s3960 = scalar_lea.vmem %s16, %s3959
          %v3961 = vld [vmem:[%s3960] sm:$0xf]
          %v3962 = vld [vmem:[%s3960 + $0x4] sm:$0xf]
          %v3963 = vld [vmem:[%s3960 + $0x8] sm:$0xf]
          %v3964 = vld [vmem:[%s3960 + $0xc] sm:$0xf]
          %s3965 = scalar_lea.vmem %s17, %s2929
          %v3966 = vld [vmem:[%s3965] sm:$0x1]
          %v3968 = vlaneseq
          %v3969 = vshrl.u32 %v3968, 7
          %v3970 = vsub.s32 0, %v3969
          %v3971 = vrot.slane %v3966, %v3970
          %v3977 = vunpack.c.l.b16 %v3961
          %v3978 = vunpack.c.l.b16 %v3962
          %v3979 = vunpack.c.l.b16 %v3963
          %v3980 = vunpack.c.l.b16 %v3964
          %v3981 = vpack.c.b16 %v3978, %v3977
          %v3982 = vpack.c.b16 %v3980, %v3979
          %v3986 = vsel %vm2941, %v3957, 0
          %v3989 = vsel %vm2941, %v3958, 0
          %3991 = vmatprep.subr.bf16.mxu0 0
          %3992 = vmatpush1.bf16.msra.mxu0 0
          %3993 = vmatprep.subr.bf16.mxu0 0
          %3994 = vmatpush1.bf16.msra.mxu0 0
          %3995 = vmatprep.subr.bf16.mxu0 0
          %3996 = vmatpush1.bf16.msra.mxu0 0
          %3997 = vmatprep.subr.bf16.mxu0 0
          %3998 = vmatpush1.bf16.msra.mxu0 0
          %3999 = vmatprep.subr.bf16.mxu0 0
          %4000 = vmatpush1.bf16.msra.mxu0 0
          %4001 = vmatprep.subr.bf16.mxu0 0
          %4002 = vmatpush1.bf16.msra.mxu0 0
          %4003 = vmatprep.subr.bf16.mxu0 0
          %4004 = vmatpush1.bf16.msra.mxu0 %v3982
          %4005 = vmatprep.subr.bf16.mxu0 0
          %4006 = vmatpush1.bf16.msra.mxu0 %v3981
          %4007 = vmatprep.subr.bf16.mxu0 0
          %4008 = vmatpush2.bf16.msra.mxu0 0
          %4009 = vmatprep.subr.bf16.mxu0 0
          %4010 = vmatpush2.bf16.msra.mxu0 0
          %4011 = vmatprep.subr.bf16.mxu0 0
          %4012 = vmatpush2.bf16.msra.mxu0 0
          %4013 = vmatprep.subr.bf16.mxu0 0
          %4014 = vmatpush2.bf16.msra.mxu0 0
          %4015 = vmatprep.subr.bf16.mxu0 0
          %4016 = vmatpush2.bf16.msra.mxu0 0
          %4017 = vmatprep.subr.bf16.mxu0 0
          %4018 = vmatpush2.bf16.msra.mxu0 0
          %4019 = vmatprep.subr.bf16.mxu0 0
          %4020 = vmatpush2.bf16.msra.mxu0 0
          %4021 = vmatprep.subr.bf16.mxu0 0
          %4022 = vmatpush2.bf16.msra.mxu0 0
          %4023 = vmatprep.mubr.bf16.mxu0 0
          %4024 = vmatmul.mubr.bf16.gmra.mxu0 %v3986
          %v4025 = vpop.f32.mrf.mxu0
          %v4026 = vadd.f32 %v3971, %v4025
          %v4027 = vpop.f32.mrf.mxu0
          %v4028 = vpop.f32.mrf.mxu0
          %v4029 = vadd.f32 %v3971, %v4028
          %v4030 = vpop.f32.mrf.mxu0
          %4031 = vmatprep.mubr.bf16.mxu0 0
          %4032 = vmatmul.mubr.bf16.gmra.mxu0 %v3989
          %v4033 = vpop.f32.mrf.mxu0
          %v4034 = vadd.f32 %v3971, %v4033
          %v4035 = vpop.f32.mrf.mxu0
          %v4036 = vpop.f32.mrf.mxu0
          %v4037 = vpop.f32.mrf.mxu0
          %4038 = vdwg.mxu0
          %v4039 = vadd.f32 %v2934, %v4026
          %v4040 = vadd.f32 %v2935, %v4029
          %v4041 = vadd.f32 %v2936, %v4034
          %s4042 = scalar_lea.vmem %s18, %s2929
          %v4043 = vld [vmem:[%s4042] sm:$0x1]
          %s4044 = scalar_lea.vmem %s19, %s2929
          %v4045 = vld [vmem:[%s4044] sm:$0x1]
          %v4046 = vsel %vm2941, %v4039, 0.0
          %4047 = vadd.xlane.f32.xlu0 %v4046
          %v4048 = vpop.xlane.xlu0 %4047
          %v4049 = vsel %vm2941, %v4040, 0.0
          %4050 = vadd.xlane.f32.xlu0 %v4049
          %v4051 = vpop.xlane.xlu0 %4050
          %v4052 = vsel %vm2948, %v4041, 0.0
          %4053 = vadd.xlane.f32.xlu0 %v4052
          %v4054 = vpop.xlane.xlu0 %4053
          %v4055 = vmul.f32 %v4048, %v2952
          %v4056 = vmul.f32 %v4051, %v2952
          %v4057 = vmul.f32 %v4054, %v2952
          %v4058 = vsub.f32 %v4039, %v4055
          %v4059 = vsub.f32 %v4040, %v4056
          %v4060 = vsub.f32 %v4041, %v4057
          %v4061 = vmul.f32 %v4058, %v4058
          %v4062 = vmul.f32 %v4059, %v4059
          %v4063 = vmul.f32 %v4060, %v4060
          %v4064 = vsel %vm2941, %v4061, 0.0
          %4065 = vadd.xlane.f32.xlu0 %v4064
          %v4066 = vpop.xlane.xlu0 %4065
          %v4067 = vsel %vm2941, %v4062, 0.0
          %4068 = vadd.xlane.f32.xlu0 %v4067
          %v4069 = vpop.xlane.xlu0 %4068
          %v4070 = vsel %vm2948, %v4063, 0.0
          %4071 = vadd.xlane.f32.xlu0 %v4070
          %v4072 = vpop.xlane.xlu0 %4071
          %v4073 = vmul.f32 %v4066, %v2952
          %v4074 = vmul.f32 %v4069, %v2952
          %v4075 = vmul.f32 %v4072, %v2952
          %v4076 = vadd.f32 %v4073, 1e-05
          %v4077 = vadd.f32 %v4074, 1e-05
          %v4078 = vadd.f32 %v4075, 1e-05
          %v4079 = vrsqrt.pop %v4076
          %v4080 = vrsqrt.pop %v4077
          %v4081 = vrsqrt.pop %v4078
          %v4082 = vmul.f32 %v4058, %v4079
          %v4083 = vmul.f32 %v4059, %v4080
          %v4084 = vmul.f32 %v4060, %v4081
          %v4086 = vlaneseq
          %v4087 = vshrl.u32 %v4086, 7
          %v4088 = vsub.s32 0, %v4087
          %v4089 = vrot.slane %v4043, %v4088
          %v4091 = vmul.f32 %v4082, %v4089
          %v4092 = vmul.f32 %v4083, %v4089
          %v4093 = vmul.f32 %v4084, %v4089
          %v4095 = vlaneseq
          %v4096 = vshrl.u32 %v4095, 7
          %v4097 = vsub.s32 0, %v4096
          %v4098 = vrot.slane %v4045, %v4097
          %v4100 = vadd.f32 %v4091, %v4098
          %v4101 = vadd.f32 %v4092, %v4098
          %v4102 = vadd.f32 %v4093, %v4098
          %v4103 = vpack.c.bf16 %v4101, %v4100
          %v4104 = vpack.c.bf16 %v4102, %v4102
          %s4105 = smul.addr %s3003, 4
          %s4106 = scalar_lea.vmem %s20, %s4105
          %v4107 = vld [vmem:[%s4106] sm:$0xf]
          %v4108 = vld [vmem:[%s4106 + $0x4] sm:$0xf]
          %v4109 = vld [vmem:[%s4106 + $0x8] sm:$0xf]
          %v4110 = vld [vmem:[%s4106 + $0xc] sm:$0xf]
          %s4111 = scalar_lea.vmem %s21, %s2929
          %v4112 = vld [vmem:[%s4111] sm:$0x1]
          %v4114 = vlaneseq
          %v4115 = vshrl.u32 %v4114, 7
          %v4116 = vsub.s32 0, %v4115
          %v4117 = vrot.slane %v4112, %v4116
          %v4123 = vunpack.c.l.b16 %v4107
          %v4124 = vunpack.c.l.b16 %v4108
          %v4125 = vunpack.c.l.b16 %v4109
          %v4126 = vunpack.c.l.b16 %v4110
          %v4127 = vpack.c.b16 %v4124, %v4123
          %v4128 = vpack.c.b16 %v4126, %v4125
          %v4132 = vsel %vm2941, %v4103, 0
          %v4135 = vsel %vm2941, %v4104, 0
          %4137 = vmatprep.subr.bf16.mxu0 0
          %4138 = vmatpush1.bf16.msra.mxu0 0
          %4139 = vmatprep.subr.bf16.mxu0 0
          %4140 = vmatpush1.bf16.msra.mxu0 0
          %4141 = vmatprep.subr.bf16.mxu0 0
          %4142 = vmatpush1.bf16.msra.mxu0 0
          %4143 = vmatprep.subr.bf16.mxu0 0
          %4144 = vmatpush1.bf16.msra.mxu0 0
          %4145 = vmatprep.subr.bf16.mxu0 0
          %4146 = vmatpush1.bf16.msra.mxu0 0
          %4147 = vmatprep.subr.bf16.mxu0 0
          %4148 = vmatpush1.bf16.msra.mxu0 0
          %4149 = vmatprep.subr.bf16.mxu0 0
          %4150 = vmatpush1.bf16.msra.mxu0 %v4128
          %4151 = vmatprep.subr.bf16.mxu0 0
          %4152 = vmatpush1.bf16.msra.mxu0 %v4127
          %4153 = vmatprep.subr.bf16.mxu0 0
          %4154 = vmatpush2.bf16.msra.mxu0 0
          %4155 = vmatprep.subr.bf16.mxu0 0
          %4156 = vmatpush2.bf16.msra.mxu0 0
          %4157 = vmatprep.subr.bf16.mxu0 0
          %4158 = vmatpush2.bf16.msra.mxu0 0
          %4159 = vmatprep.subr.bf16.mxu0 0
          %4160 = vmatpush2.bf16.msra.mxu0 0
          %4161 = vmatprep.subr.bf16.mxu0 0
          %4162 = vmatpush2.bf16.msra.mxu0 0
          %4163 = vmatprep.subr.bf16.mxu0 0
          %4164 = vmatpush2.bf16.msra.mxu0 0
          %4165 = vmatprep.subr.bf16.mxu0 0
          %4166 = vmatpush2.bf16.msra.mxu0 0
          %4167 = vmatprep.subr.bf16.mxu0 0
          %4168 = vmatpush2.bf16.msra.mxu0 0
          %4169 = vmatprep.mubr.bf16.mxu0 0
          %4170 = vmatmul.mubr.bf16.gmra.mxu0 %v4132
          %v4171 = vpop.f32.mrf.mxu0
          %v4172 = vadd.f32 %v4117, %v4171
          %v4173 = vpop.f32.mrf.mxu0
          %v4174 = vpop.f32.mrf.mxu0
          %v4175 = vadd.f32 %v4117, %v4174
          %v4176 = vpop.f32.mrf.mxu0
          %4177 = vmatprep.mubr.bf16.mxu0 0
          %4178 = vmatmul.mubr.bf16.gmra.mxu0 %v4135
          %v4179 = vpop.f32.mrf.mxu0
          %v4180 = vadd.f32 %v4117, %v4179
          %v4181 = vpop.f32.mrf.mxu0
          %v4182 = vpop.f32.mrf.mxu0
          %v4183 = vpop.f32.mrf.mxu0
          %4184 = vdwg.mxu0
          %v4185 = vmul.f32 %v4172, 0.5
          %v4186 = vmul.f32 %v4175, 0.5
          %v4187 = vmul.f32 %v4180, 0.5
          %v4188 = vmul.f32 %v4172, 0.044715
          %v4189 = vmul.f32 %v4175, 0.044715
          %v4190 = vmul.f32 %v4180, 0.044715
          %v4191 = vmul.f32 %v4188, %v4172
          %v4192 = vmul.f32 %v4189, %v4175
          %v4193 = vmul.f32 %v4190, %v4180
          %v4194 = vmul.f32 %v4191, %v4172
          %v4195 = vmul.f32 %v4192, %v4175
          %v4196 = vmul.f32 %v4193, %v4180
          %v4197 = vadd.f32 %v4172, %v4194
          %v4198 = vadd.f32 %v4175, %v4195
          %v4199 = vadd.f32 %v4180, %v4196
          %v4200 = vmul.f32 %v4197, 0.7978846
          %v4201 = vmul.f32 %v4198, 0.7978846
          %v4202 = vmul.f32 %v4199, 0.7978846
          %v4203 = vtanh.pop %v4200
          %v4204 = vtanh.pop %v4201
          %v4205 = vtanh.pop %v4202
          %v4206 = vadd.f32 %v4203, 1.0
          %v4207 = vadd.f32 %v4204, 1.0
          %v4208 = vadd.f32 %v4205, 1.0
          %v4209 = vmul.f32 %v4185, %v4206
          %v4210 = vmul.f32 %v4186, %v4207
          %v4211 = vmul.f32 %v4187, %v4208
          %v4212 = vpack.c.bf16 %v4210, %v4209
          %v4213 = vpack.c.bf16 %v4211, %v4211
          %s4214 = smul.u32 %s2929, 8
          %s4215 = smul.addr %s4214, 4
          %s4216 = scalar_lea.vmem %s22, %s4215
          %v4217 = vld [vmem:[%s4216] sm:$0xf]
          %v4218 = vld [vmem:[%s4216 + $0x4] sm:$0xf]
          %v4219 = vld [vmem:[%s4216 + $0x8] sm:$0xf]
          %v4220 = vld [vmem:[%s4216 + $0xc] sm:$0xf]
          %v4221 = vld [vmem:[%s4216 + $0x10] sm:$0xf]
          %v4222 = vld [vmem:[%s4216 + $0x14] sm:$0xf]
          %v4223 = vld [vmem:[%s4216 + $0x18] sm:$0xf]
          %v4224 = vld [vmem:[%s4216 + $0x1c] sm:$0xf]
          %s4225 = scalar_lea.vmem [#allocation8], %s2929
          %v4226 = vld [vmem:[%s4225] sm:$0x1]
          %v4228 = vlaneseq
          %v4229 = vshrl.u32 %v4228, 7
          %v4230 = vsub.s32 0, %v4229
          %v4231 = vrot.slane %v4226, %v4230
          %v4241 = vunpack.c.l.b16 %v4217
          %v4242 = vunpack.c.l.b16 %v4218
          %v4243 = vunpack.c.l.b16 %v4219
          %v4244 = vunpack.c.l.b16 %v4220
          %v4245 = vunpack.c.l.b16 %v4221
          %v4246 = vunpack.c.l.b16 %v4222
          %v4247 = vunpack.c.l.b16 %v4223
          %v4248 = vunpack.c.l.b16 %v4224
          %v4249 = vpack.c.b16 %v4242, %v4241
          %v4250 = vpack.c.b16 %v4244, %v4243
          %v4251 = vpack.c.b16 %v4246, %v4245
          %v4252 = vpack.c.b16 %v4248, %v4247
          %vm4257 = vcmask 523264
          %v4259 = vsel %vm4257, %v4212, 0
          %v4262 = vsel %vm4257, %v4213, 0
          %4264 = vmatprep.subr.bf16.mxu0 0
          %4265 = vmatpush1.bf16.msra.mxu0 0
          %4266 = vmatprep.subr.bf16.mxu0 0
          %4267 = vmatpush1.bf16.msra.mxu0 0
          %4268 = vmatprep.subr.bf16.mxu0 0
          %4269 = vmatpush1.bf16.msra.mxu0 0
          %4270 = vmatprep.subr.bf16.mxu0 0
          %4271 = vmatpush1.bf16.msra.mxu0 0
          %4272 = vmatprep.subr.bf16.mxu0 0
          %4273 = vmatpush1.bf16.msra.mxu0 %v4252
          %4274 = vmatprep.subr.bf16.mxu0 0
          %4275 = vmatpush1.bf16.msra.mxu0 %v4251
          %4276 = vmatprep.subr.bf16.mxu0 0
          %4277 = vmatpush1.bf16.msra.mxu0 %v4250
          %4278 = vmatprep.subr.bf16.mxu0 0
          %4279 = vmatpush1.bf16.msra.mxu0 %v4249
          %4280 = vmatprep.subr.bf16.mxu0 0
          %4281 = vmatpush2.bf16.msra.mxu0 0
          %4282 = vmatprep.subr.bf16.mxu0 0
          %4283 = vmatpush2.bf16.msra.mxu0 0
          %4284 = vmatprep.subr.bf16.mxu0 0
          %4285 = vmatpush2.bf16.msra.mxu0 0
          %4286 = vmatprep.subr.bf16.mxu0 0
          %4287 = vmatpush2.bf16.msra.mxu0 0
          %4288 = vmatprep.subr.bf16.mxu0 0
          %4289 = vmatpush2.bf16.msra.mxu0 0
          %4290 = vmatprep.subr.bf16.mxu0 0
          %4291 = vmatpush2.bf16.msra.mxu0 0
          %4292 = vmatprep.subr.bf16.mxu0 0
          %4293 = vmatpush2.bf16.msra.mxu0 0
          %4294 = vmatprep.subr.bf16.mxu0 0
          %4295 = vmatpush2.bf16.msra.mxu0 0
          %4296 = vmatprep.mubr.bf16.mxu0 0
          %4297 = vmatmul.mubr.bf16.gmra.mxu0 %v4259
          %v4298 = vpop.f32.mrf.mxu0
          %v4299 = vadd.f32 %v4231, %v4298
          %v4300 = vpop.f32.mrf.mxu0
          %v4301 = vpop.f32.mrf.mxu0
          %v4302 = vadd.f32 %v4231, %v4301
          %v4303 = vpop.f32.mrf.mxu0
          %4304 = vmatprep.mubr.bf16.mxu0 0
          %4305 = vmatmul.mubr.bf16.gmra.mxu0 %v4262
          %v4306 = vpop.f32.mrf.mxu0
          %v4307 = vadd.f32 %v4231, %v4306
          %v4308 = vpop.f32.mrf.mxu0
          %v4309 = vpop.f32.mrf.mxu0
          %v4310 = vpop.f32.mrf.mxu0
          %4311 = vdwg.mxu0
          %v4312 = vadd.f32 %v4039, %v4299
          %v4313 = vadd.f32 %v4040, %v4302
          %v4314 = vadd.f32 %v4041, %v4307
        $region160: #{tpu_custom_call.1} parent=131 // loop_footer
          %s2933 = sadd.s32 1, %s2929
        $region161: #{tpu_custom_call.1} parent=131 // loop_footer_branch
          %2928 = sbr.rel target = $region157
        $region162: #{tpu_custom_call.1} parent=131 // loop_exit
          _
        %v4315 = vld [vmem:[%s24] sm:$0x1]
        %v4316 = vld [vmem:[%s25] sm:$0x1]
        %vm4317 = vcmask 258048
        %v4318 = vsel %vm4317, %v2936, 0.0
        %4319 = vadd.xlane.f32.xlu0 %v4318
        %v4320 = vpop.xlane.xlu0 %4319
        %v4321 = vrcp.pop 32.0
        %v4322 = vmul.f32 %v4320, %v4321
        %v4323 = vsub.f32 %v2936, %v4322
        %v4324 = vmul.f32 %v4323, %v4323
        %v4325 = vsel %vm4317, %v4324, 0.0
        %4326 = vadd.xlane.f32.xlu0 %v4325
        %v4327 = vpop.xlane.xlu0 %4326
        %v4328 = vmul.f32 %v4327, %v4321
        %v4329 = vadd.f32 %v4328, 1e-05
        %v4330 = vrsqrt.pop %v4329
        %v4331 = vmul.f32 %v4323, %v4330
        %v4333 = vlaneseq
        %v4334 = vshrl.u32 %v4333, 7
        %v4335 = vsub.s32 0, %v4334
        %v4336 = vrot.slane %v4315, %v4335
        %v4338 = vmul.f32 %v4331, %v4336
        %v4340 = vlaneseq
        %v4341 = vshrl.u32 %v4340, 7
        %v4342 = vsub.s32 0, %v4341
        %v4343 = vrot.slane %v4316, %v4342
        %v4345 = vadd.f32 %v4338, %v4343
        %v4346 = vpack.c.bf16 %v1166, %v1165
        %v4347 = vld [vmem:[%s26] sm:$0xf]
        %v4348 = vld [vmem:[%s26 + $0x4] sm:$0xf]
        %v4349 = vld [vmem:[%s26 + $0x8] sm:$0xf]
        %v4350 = vld [vmem:[%s26 + $0xc] sm:$0xf]
        %v4355 = vunpack.c.l.b16 %v4347
        %v4356 = vunpack.c.l.b16 %v4348
        %v4357 = vunpack.c.l.b16 %v4349
        %v4358 = vunpack.c.l.b16 %v4350
        %v4359 = vpack.c.b16 %v4356, %v4355
        %v4360 = vpack.c.b16 %v4358, %v4357
        %vm4363 = vcmask 261120
        %v4365 = vsel %vm4363, %v4346, 0
        %4367 = vmatprep.subr.bf16.mxu0 0
        %4368 = vmatpush1.bf16.msra.mxu0 0
        %4369 = vmatprep.subr.bf16.mxu0 0
        %4370 = vmatpush1.bf16.msra.mxu0 0
        %4371 = vmatprep.subr.bf16.mxu0 0
        %4372 = vmatpush1.bf16.msra.mxu0 0
        %4373 = vmatprep.subr.bf16.mxu0 0
        %4374 = vmatpush1.bf16.msra.mxu0 0
        %4375 = vmatprep.subr.bf16.mxu0 0
        %4376 = vmatpush1.bf16.msra.mxu0 0
        %4377 = vmatprep.subr.bf16.mxu0 0
        %4378 = vmatpush1.bf16.msra.mxu0 0
        %4379 = vmatprep.subr.bf16.mxu0 0
        %4380 = vmatpush1.bf16.msra.mxu0 %v4360
        %4381 = vmatprep.subr.bf16.mxu0 0
        %4382 = vmatpush1.bf16.msra.mxu0 %v4359
        %4383 = vmatprep.subr.bf16.mxu0 0
        %4384 = vmatpush2.bf16.msra.mxu0 0
        %4385 = vmatprep.subr.bf16.mxu0 0
        %4386 = vmatpush2.bf16.msra.mxu0 0
        %4387 = vmatprep.subr.bf16.mxu0 0
        %4388 = vmatpush2.bf16.msra.mxu0 0
        %4389 = vmatprep.subr.bf16.mxu0 0
        %4390 = vmatpush2.bf16.msra.mxu0 0
        %4391 = vmatprep.subr.bf16.mxu0 0
        %4392 = vmatpush2.bf16.msra.mxu0 0
        %4393 = vmatprep.subr.bf16.mxu0 0
        %4394 = vmatpush2.bf16.msra.mxu0 0
        %4395 = vmatprep.subr.bf16.mxu0 0
        %4396 = vmatpush2.bf16.msra.mxu0 0
        %4397 = vmatprep.subr.bf16.mxu0 0
        %4398 = vmatpush2.bf16.msra.mxu0 0
        %4399 = vmatprep.mubr.bf16.mxu0 0
        %4400 = vmatmul.mubr.bf16.gmra.mxu0 %v4365
        %v4401 = vpop.f32.mrf.mxu0
        %v4402 = vadd.f32 0.0, %v4401
        %v4403 = vpop.f32.mrf.mxu0
        %v4404 = vpop.f32.mrf.mxu0
        %v4405 = vadd.f32 0.0, %v4404
        %v4406 = vpop.f32.mrf.mxu0
        %4407 = vdwg.mxu0
        %v4408 = vpack.c.bf16 %v4345, %v4345
        %v4409 = vld [vmem:[%s27] sm:$0xf]
        %v4410 = vld [vmem:[%s27 + $0x4] sm:$0xf]
        %v4411 = vld [vmem:[%s27 + $0x8] sm:$0xf]
        %v4412 = vld [vmem:[%s27 + $0xc] sm:$0xf]
        %v4414 = vrot.slane %v4408, 2
        %v4419 = vunpack.c.l.b16 %v4409
        %v4420 = vunpack.c.l.b16 %v4410
        %v4421 = vunpack.c.l.b16 %v4411
        %v4422 = vunpack.c.l.b16 %v4412
        %v4423 = vpack.c.b16 %v4420, %v4419
        %v4424 = vpack.c.b16 %v4422, %v4421
        %v4428 = vsel %vm4363, %v4414, 0
        %4430 = vmatprep.subr.bf16.mxu0 0
        %4431 = vmatpush1.bf16.msra.mxu0 0
        %4432 = vmatprep.subr.bf16.mxu0 0
        %4433 = vmatpush1.bf16.msra.mxu0 0
        %4434 = vmatprep.subr.bf16.mxu0 0
        %4435 = vmatpush1.bf16.msra.mxu0 0
        %4436 = vmatprep.subr.bf16.mxu0 0
        %4437 = vmatpush1.bf16.msra.mxu0 0
        %4438 = vmatprep.subr.bf16.mxu0 0
        %4439 = vmatpush1.bf16.msra.mxu0 0
        %4440 = vmatprep.subr.bf16.mxu0 0
        %4441 = vmatpush1.bf16.msra.mxu0 0
        %4442 = vmatprep.subr.bf16.mxu0 0
        %4443 = vmatpush1.bf16.msra.mxu0 %v4424
        %4444 = vmatprep.subr.bf16.mxu0 0
        %4445 = vmatpush1.bf16.msra.mxu0 %v4423
        %4446 = vmatprep.subr.bf16.mxu0 0
        %4447 = vmatpush2.bf16.msra.mxu0 0
        %4448 = vmatprep.subr.bf16.mxu0 0
        %4449 = vmatpush2.bf16.msra.mxu0 0
        %4450 = vmatprep.subr.bf16.mxu0 0
        %4451 = vmatpush2.bf16.msra.mxu0 0
        %4452 = vmatprep.subr.bf16.mxu0 0
        %4453 = vmatpush2.bf16.msra.mxu0 0
        %4454 = vmatprep.subr.bf16.mxu0 0
        %4455 = vmatpush2.bf16.msra.mxu0 0
        %4456 = vmatprep.subr.bf16.mxu0 0
        %4457 = vmatpush2.bf16.msra.mxu0 0
        %4458 = vmatprep.subr.bf16.mxu0 0
        %4459 = vmatpush2.bf16.msra.mxu0 0
        %4460 = vmatprep.subr.bf16.mxu0 0
        %4461 = vmatpush2.bf16.msra.mxu0 0
        %4462 = vmatprep.mubr.bf16.mxu0 0
        %4463 = vmatmul.mubr.bf16.gmra.mxu0 %v4428
        %v4464 = vpop.f32.mrf.mxu0
        %v4465 = vadd.f32 0.0, %v4464
        %v4466 = vpop.f32.mrf.mxu0
        %v4467 = vpop.f32.mrf.mxu0
        %v4468 = vpop.f32.mrf.mxu0
        %4469 = vdwg.mxu0
        %v4470 = vpack.c.bf16 %v4465, %v4465
        %v4471 = vpack.c.bf16 %v4405, %v4402
        %v4473 = vsel %vm4363, %v4470, 0
        %v4476 = vsel %vm4363, %v4471, 0
        %4478 = vmatprep.subr.bf16.mxu0 0
        %4479 = vmatpush1.bf16.xpose.msra.mxu0 0
        %4480 = vmatprep.subr.bf16.mxu0 0
        %4481 = vmatpush1.bf16.xpose.msra.mxu0 0
        %4482 = vmatprep.subr.bf16.mxu0 0
        %4483 = vmatpush1.bf16.xpose.msra.mxu0 0
        %4484 = vmatprep.subr.bf16.mxu0 0
        %4485 = vmatpush1.bf16.xpose.msra.mxu0 0
        %4486 = vmatprep.subr.bf16.mxu0 0
        %4487 = vmatpush1.bf16.xpose.msra.mxu0 0
        %4488 = vmatprep.subr.bf16.mxu0 0
        %4489 = vmatpush1.bf16.xpose.msra.mxu0 0
        %4490 = vmatprep.subr.bf16.mxu0 0
        %4491 = vmatpush1.bf16.xpose.msra.mxu0 0
        %4492 = vmatprep.subr.bf16.mxu0 0
        %4493 = vmatpush1.bf16.xpose.msra.mxu0 %v4476
        %4494 = vmatprep.subr.bf16.mxu0 0
        %4495 = vmatpush2.bf16.xpose.msra.mxu0 0
        %4496 = vmatprep.subr.bf16.mxu0 0
        %4497 = vmatpush2.bf16.xpose.msra.mxu0 0
        %4498 = vmatprep.subr.bf16.mxu0 0
        %4499 = vmatpush2.bf16.xpose.msra.mxu0 0
        %4500 = vmatprep.subr.bf16.mxu0 0
        %4501 = vmatpush2.bf16.xpose.msra.mxu0 0
        %4502 = vmatprep.subr.bf16.mxu0 0
        %4503 = vmatpush2.bf16.xpose.msra.mxu0 0
        %4504 = vmatprep.subr.bf16.mxu0 0
        %4505 = vmatpush2.bf16.xpose.msra.mxu0 0
        %4506 = vmatprep.subr.bf16.mxu0 0
        %4507 = vmatpush2.bf16.xpose.msra.mxu0 0
        %4508 = vmatprep.subr.bf16.mxu0 0
        %4509 = vmatpush2.bf16.xpose.msra.mxu0 0
        %4510 = vmatprep.mubr.bf16.mxu0 0
        %4511 = vmatmul.mubr.bf16.gmra.mxu0 %v4473
        %v4512 = vpop.f32.mrf.mxu0
        %v4513 = vadd.f32 0.0, %v4512
        %v4514 = vpop.f32.mrf.mxu0
        %v4515 = vpop.f32.mrf.mxu0
        %v4516 = vpop.f32.mrf.mxu0
        %4517 = vdwg.mxu0
        %vm4518 = vcmask 122880
        %4519 = vst.msk [vmem:[%s920] sm:$0x1] %vm4518, %v4513
        %s4520 = sand.u32 %s656, 1
        %s4521 = scalar_lea.sflag [#allocation4], %s4520
        %s4522 = sand.u32 %s656, 1
        %s4523 = scalar_lea.vmem [#allocation10], %s4522
        // Predicated region
        $region163: #{tpu_custom_call.1} parent=131 // pred_check
          %p4524 = pneg %p666
        $region164: #{tpu_custom_call.1} parent=131 // pred_check_branch
          %4526 = sbr.rel (%p4524) target = $region166
        $region165: #{tpu_custom_call.1} parent=131 // pred_region
          %s4528 = ssub.s32 16, 16
          %4529 = vsyncadd %s4521, %s4528
          %s4530 = smul.addr %s45, 16
          %s4531 = scalar_lea.hbm %s28, %s4530
          %s4533 = sshll.u32 %s4523, 4
          %s4534 = int_to_ptr.vmem [resolvable:$true] %s4533
          %4536 = dma.vmem_to_hbm [thread:$0]  %s4534, 16, %s4531, %s4521
        $region166: #{tpu_custom_call.1} parent=131 // pred_fallthru
          _
      $region132: #{tpu_custom_call.1} parent=5 // pred_fallthru
        _
      %p4537 = scmp.le.s32.totalorder 2, %s40
      // Predicated region
      $region167: #{tpu_custom_call.1} parent=5 // pred_check
        %p4538 = pneg %p4537
      $region168: #{tpu_custom_call.1} parent=5 // pred_check_branch
        %4540 = sbr.rel (%p4538) target = $region170
      $region169: #{tpu_custom_call.1} parent=5 // pred_region
        %s4541 = ssub.s32 %s40, 2
        // Predicated region
        $region171: #{tpu_custom_call.1} parent=169 // pred_check
          %p4542 = pneg %p672
        $region172: #{tpu_custom_call.1} parent=169 // pred_check_branch
          %4544 = sbr.rel (%p4542) target = $region174
        $region173: #{tpu_custom_call.1} parent=169 // pred_region
          %s4545 = sand.u32 %s657, 1
          %s4546 = scalar_lea.sflag [#allocation4], %s4545
          %s4547 = sand.u32 %s657, 1
          %s4548 = scalar_lea.vmem [#allocation10], %s4547
          %4549 = dma.done %s4546, 16
        $region174: #{tpu_custom_call.1} parent=169 // pred_fallthru
          _
      $region170: #{tpu_custom_call.1} parent=5 // pred_fallthru
        _
    $region6: #{tpu_custom_call.1} parent=1 // loop_footer
      %s44 = sadd.s32 1, %s40
    $region7: #{tpu_custom_call.1} parent=1 // loop_footer_branch
      %39 = sbr.rel target = $region3
    $region8: #{tpu_custom_call.1} parent=1 // loop_exit
      _
    %4550 = vsyncpa [#allocation3], 1
    %s4551 = scalar_lea.sflag [#allocation3], 1
    %4552 = vsyncpa %s4551, 1
    %4553 = vsyncpa [#allocation6], 1
    %4554 = vsyncpa [#allocation9], 1
    %4555 = vsyncpa [#allocation4], 1
    %s4556 = scalar_lea.sflag [#allocation4], 1
    %4557 = vsyncpa %s4556, 1

</llo_original>
